<compile_context>
chip_gen: v7x
topology: tpu7x:2x2x1
jax: 0.10.0
libtpu: 0.0.40
codegen_flags: <defaults>
</compile_context>

<pallas_src>
import math

import jax
import jax.numpy as jnp
from jax.experimental import pallas as pl
from jax.experimental.pallas import tpu as pltpu


def _pe_concat_kernel(x_ref, stamp_ref, out_ref):
    # x_ref:     [TS, B, 1]  (input dtype)
    # stamp_ref: [TS, B, 1]  (input dtype)
    # out_ref:   [TS, B, 3]  f32: ch0 = x, ch1 = sin(pi*aux), ch2 = cos(pi*aux)
    stamp = stamp_ref[...].astype(jnp.float32)            # [TS, B, 1]
    b = stamp.shape[1]
    s0 = stamp[:, 0:1, :]                                  # [TS, 1, 1] stamp_init
    sf = stamp[:, b - 1:b, :]                              # [TS, 1, 1] stamp_final
    # One reciprocal per row instead of B divides per row.  approx=False keeps
    # full f32 precision (approx=True would be a free EUP slot but ~1e-3 rel
    # error, which breaks parity with the f32 reference at 1e-5 tolerance).
    inv_T = pl.reciprocal(sf - s0, approx=False)           # [TS, 1, 1]
    # math.pi is a Python float -> scalar literal in the jaxpr (not a captured
    # device constant).
    ang = math.pi * ((stamp - s0) * inv_T)                 # [TS, B, 1]

    xv = x_ref[...].astype(jnp.float32)                    # [TS, B, 1]
    sinv = jnp.sin(ang)
    cosv = jnp.cos(ang)

    # Assemble the [TS, B, 3] block with lane broadcasts + selects (all values
    # already live in the [*, B, last] layout, so no relayout is required) and
    # store it in one shot.
    ch = jax.lax.broadcasted_iota(jnp.int32, out_ref.shape, 2)
    out_ref[...] = jnp.where(ch == 0, xv, jnp.where(ch == 1, sinv, cosv))


def _tile_rows(S, B):
    # VMEM per leading row of a block: ceil(B/8) (8,128)-tiles of 4 KiB for
    # each of {x, stamp, out}, each double-buffered by the pipeline.
    tiles_per_row = -(-B // 8)
    bytes_per_row = 3 * 2 * tiles_per_row * 8 * 128 * 4
    budget = 8 * 1024 * 1024   # stays well inside v5e's 16 MiB scoped default
    return max(1, min(S, 512, budget // bytes_per_row))


@jax.jit
def dummy_positional_encoding(x, stamp):
    """x: [S, B, 1]; stamp: [S_stamp, B], S_stamp >= S. Returns [S, B, 3] f32."""
    S, B, _ = x.shape
    # Free (bitcast) reshape so the kernel sees stamp in the same [*, B, 1]
    # layout as x/out; no slice/cast HBM round trip in the wrapper.  Rows of
    # stamp beyond S are simply never touched by the grid (aux is row-wise,
    # so this matches pe[:x.size(0)] exactly).
    stamp3 = stamp.reshape(stamp.shape[0], B, 1)

    ts = _tile_rows(S, B)
    grid = (pl.cdiv(S, ts),)

    return pl.pallas_call(
        _pe_concat_kernel,
        out_shape=jax.ShapeDtypeStruct((S, B, 3), jnp.float32),
        grid=grid,
        in_specs=[
            pl.BlockSpec((ts, B, 1), lambda i: (i, 0, 0)),   # x
            pl.BlockSpec((ts, B, 1), lambda i: (i, 0, 0)),   # stamp
        ],
        out_specs=pl.BlockSpec((ts, B, 3), lambda i: (i, 0, 0)),
        compiler_params=pltpu.CompilerParams(
            dimension_semantics=("parallel",)),
    )(x, stamp3)


def _reference(x, stamp):
    """Pure-JAX reference mirroring the torch code exactly."""
    stamp = stamp.astype(jnp.float32)
    s0 = stamp[:, 0][:, None]
    sf = stamp[:, -1][:, None]
    aux = (stamp - s0) / (sf - s0)
    pe = jnp.stack([jnp.sin(jnp.pi * aux), jnp.cos(jnp.pi * aux)], axis=-1)
    return jnp.concatenate([x.astype(jnp.float32), pe[: x.shape[0]]], axis=2)


if __name__ == "__main__":
    key = jax.random.PRNGKey(0)
    kx, ks = jax.random.split(key)

    seq_len, batch = 8, 16
    x = jax.random.normal(kx, (seq_len, batch, 1), dtype=jnp.float32)
    # timestamps with distinct first/last columns so (stamp_final - stamp_init) != 0
    base = jnp.linspace(0.0, 1.0, batch, dtype=jnp.float32)[None, :]
    jitter = 0.01 * jax.random.uniform(ks, (seq_len, batch), dtype=jnp.float32)
    stamp = base + jitter
    stamp = stamp.at[:, 0].set(0.0).at[:, -1].set(1.0 + jitter[:, -1])

    out = jax.block_until_ready(dummy_positional_encoding(x, stamp))
    ref = _reference(x, stamp)

    assert out.shape == (seq_len, batch, 3), out.shape
    assert jnp.allclose(out, ref, atol=1e-5, rtol=1e-5), "mismatch vs reference"

    print("KERNEL_OK")
</pallas_src>

<mosaic_0001>
module attributes {stable_mosaic.version = 11 : i64} {
  func.func @_pe_concat_kernel(%arg0: i32, %arg1: memref<8x16x1xf32, #tpu.memory_space<vmem>>, %arg2: memref<8x16x1xf32, #tpu.memory_space<vmem>>, %arg3: memref<8x16x3xf32, #tpu.memory_space<vmem>>) attributes {dimension_semantics = [#tpu.dimension_semantics<parallel>], iteration_bounds = array<i64: 1>, scalar_prefetch = 0 : i64, scratch_operands = 0 : i64, tpu.core_type = #tpu.core_type<tc>, window_params = [{transform_indices = @transform_0, window_bounds = array<i64: 8, 16, 1>}, {transform_indices = @transform_1, window_bounds = array<i64: 8, 16, 1>}, {transform_indices = @transform_2, window_bounds = array<i64: 8, 16, 3>}]} {
    %c0 = arith.constant 0 : index
    %c0_0 = arith.constant 0 : index
    %c0_1 = arith.constant 0 : index
    %0 = vector.load %arg2[%c0, %c0_0, %c0_1] : memref<8x16x1xf32, #tpu.memory_space<vmem>>, vector<8x16x1xf32>
    %1 = vector.extract_strided_slice %0 {offsets = [0, 0, 0], sizes = [8, 1, 1], strides = [1, 1, 1]} : vector<8x16x1xf32> to vector<8x1x1xf32>
    %2 = vector.extract_strided_slice %0 {offsets = [0, 15, 0], sizes = [8, 1, 1], strides = [1, 1, 1]} : vector<8x16x1xf32> to vector<8x1x1xf32>
    %3 = arith.subf %2, %1 : vector<8x1x1xf32>
    %4 = tpu.reciprocal %3 : vector<8x1x1xf32> -> vector<8x1x1xf32>
    %5 = vector.broadcast %1 : vector<8x1x1xf32> to vector<8x16x1xf32>
    %6 = arith.subf %0, %5 : vector<8x16x1xf32>
    %7 = vector.broadcast %4 : vector<8x1x1xf32> to vector<8x16x1xf32>
    %8 = arith.mulf %6, %7 : vector<8x16x1xf32>
    %cst = arith.constant 3.14159274 : f32
    %9 = vector.broadcast %cst : f32 to vector<8x16x1xf32>
    %10 = arith.mulf %9, %8 : vector<8x16x1xf32>
    %c0_2 = arith.constant 0 : index
    %c0_3 = arith.constant 0 : index
    %c0_4 = arith.constant 0 : index
    %11 = vector.load %arg1[%c0_2, %c0_3, %c0_4] : memref<8x16x1xf32, #tpu.memory_space<vmem>>, vector<8x16x1xf32>
    %12 = math.sin %10 : vector<8x16x1xf32>
    %13 = math.cos %10 : vector<8x16x1xf32>
    %14 = tpu.iota {dimensions = array<i32: 2>} : vector<8x16x3xi32>
    %c0_i32 = arith.constant 0 : i32
    %15 = vector.broadcast %c0_i32 : i32 to vector<8x16x3xi32>
    %16 = arith.cmpi eq, %14, %15 : vector<8x16x3xi32>
    %c1_i32 = arith.constant 1 : i32
    %17 = vector.broadcast %c1_i32 : i32 to vector<8x16x3xi32>
    %18 = arith.cmpi eq, %14, %17 : vector<8x16x3xi32>
    %19 = vector.shape_cast %12 : vector<8x16x1xf32> to vector<8x16x1xf32>
    %20 = vector.broadcast %19 : vector<8x16x1xf32> to vector<8x16x3xf32>
    %21 = vector.shape_cast %13 : vector<8x16x1xf32> to vector<8x16x1xf32>
    %22 = vector.broadcast %21 : vector<8x16x1xf32> to vector<8x16x3xf32>
    %23 = arith.select %18, %20, %22 : vector<8x16x3xi1>, vector<8x16x3xf32>
    %24 = vector.shape_cast %11 : vector<8x16x1xf32> to vector<8x16x1xf32>
    %25 = vector.broadcast %24 : vector<8x16x1xf32> to vector<8x16x3xf32>
    %26 = arith.select %16, %25, %23 : vector<8x16x3xi1>, vector<8x16x3xf32>
    %c0_5 = arith.constant 0 : index
    %c0_6 = arith.constant 0 : index
    %c0_7 = arith.constant 0 : index
    %27 = vector.load %arg3[%c0_5, %c0_6, %c0_7] : memref<8x16x3xf32, #tpu.memory_space<vmem>>, vector<8x16x3xf32>
    tpu.vector_store %arg3[%c0_5, %c0_6, %c0_7], %26 {strides = array<i32>} : memref<8x16x3xf32, #tpu.memory_space<vmem>>, vector<8x16x3xf32>,
    return
  }
  func.func @transform_0(%arg0: i32) -> (i32, i32, i32) {
    %c0_i32 = arith.constant 0 : i32
    %c0_i32_0 = arith.constant 0 : i32
    %c0_i32_1 = arith.constant 0 : i32
    return %arg0, %c0_i32, %c0_i32_0 : i32, i32, i32
  }
  func.func @transform_1(%arg0: i32) -> (i32, i32, i32) {
    %c0_i32 = arith.constant 0 : i32
    %c0_i32_0 = arith.constant 0 : i32
    %c0_i32_1 = arith.constant 0 : i32
    return %arg0, %c0_i32, %c0_i32_0 : i32, i32, i32
  }
  func.func @transform_2(%arg0: i32) -> (i32, i32, i32) {
    %c0_i32 = arith.constant 0 : i32
    %c0_i32_0 = arith.constant 0 : i32
    %c0_i32_1 = arith.constant 0 : i32
    return %arg0, %c0_i32, %c0_i32_0 : i32, i32, i32
  }
}

</mosaic_0001>

<llo_original>
// kernel: dummy_positional_encoding.1
$region0: #{dummy_positional_encoding.1}
  #allocation0 [shape = 'u32[]', space=smem, size = 0x4, offset = 0x4, fixed_abs, tag = 'smem constant byte address 0x4 - core index']
  #allocation1 [shape = 'u32[144,128]{1,0:T(1,128)}', space=vmem, size = 0x12000, scoped, tag = 'internal scratch']
  %s0 = inlined_call_operand.vmem [shape: f32[8,16,1], index: 0, kind: input, shape index: {}]
  %s1 = inlined_call_operand.vmem [shape: f32[8,16,1], index: 1, kind: input, shape index: {}]
  %s2 = inlined_call_operand.vmem [shape: f32[8,16,3], index: 2, kind: output, shape index: {}]
  %s3 = sld [smem:[#allocation0]]
  $region18: #{dummy_positional_encoding.1} parent=0
    _
  %s5 = ssub.s32 1, %s3
  %s6 = scalar_select 0, %s5, %s3
  // Predicated region
  $region2: #{dummy_positional_encoding.1} parent=0 // pred_check
    _
  $region3: #{dummy_positional_encoding.1} parent=0 // pred_check_branch
    %8 = sbr.rel (0) target = $region5
  $region4: #{dummy_positional_encoding.1} parent=0 // pred_region
    _
  $region5: #{dummy_positional_encoding.1} parent=0 // pred_fallthru
    _
  // Predicated region
  $region6: #{dummy_positional_encoding.1} parent=0 // pred_check
    _
  $region7: #{dummy_positional_encoding.1} parent=0 // pred_check_branch
    %10 = sbr.rel (0) target = $region9
  $region8: #{dummy_positional_encoding.1} parent=0 // pred_region
    _
  $region9: #{dummy_positional_encoding.1} parent=0 // pred_fallthru
    _
  %v11 = vld [vmem:[%s1] sm:$0xff]
  %v12 = vld [vmem:[%s1 + $0x8] sm:$0xff]
  %v13 = vld [vmem:[%s1 + $0x10] sm:$0xff]
  %v14 = vld [vmem:[%s1 + $0x18] sm:$0xff]
  %v15 = vld [vmem:[%s1 + $0x20] sm:$0xff]
  %v16 = vld [vmem:[%s1 + $0x28] sm:$0xff]
  %v17 = vld [vmem:[%s1 + $0x30] sm:$0xff]
  %v18 = vld [vmem:[%s1 + $0x38] sm:$0xff]
  %v19 = vld [vmem:[%s1 + $0x40] sm:$0xff]
  %v20 = vld [vmem:[%s1 + $0x48] sm:$0xff]
  %v21 = vld [vmem:[%s1 + $0x50] sm:$0xff]
  %v22 = vld [vmem:[%s1 + $0x58] sm:$0xff]
  %v23 = vld [vmem:[%s1 + $0x60] sm:$0xff]
  %v24 = vld [vmem:[%s1 + $0x68] sm:$0xff]
  %v25 = vld [vmem:[%s1 + $0x70] sm:$0xff]
  %v26 = vld [vmem:[%s1 + $0x78] sm:$0xff]
  %v35 = vrot.slane %v11, 1
  %v36 = vrot.slane %v13, 1
  %v37 = vrot.slane %v15, 1
  %v38 = vrot.slane %v17, 1
  %v39 = vrot.slane %v19, 1
  %v40 = vrot.slane %v21, 1
  %v41 = vrot.slane %v23, 1
  %v42 = vrot.slane %v25, 1
  %v51 = vsub.f32 %v12, %v35
  %v52 = vsub.f32 %v14, %v36
  %v53 = vsub.f32 %v16, %v37
  %v54 = vsub.f32 %v18, %v38
  %v55 = vsub.f32 %v20, %v39
  %v56 = vsub.f32 %v22, %v40
  %v57 = vsub.f32 %v24, %v41
  %v58 = vsub.f32 %v26, %v42
  %v59 = vrcp.pop %v51
  %v60 = vrcp.pop %v52
  %v61 = vrcp.pop %v53
  %v62 = vrcp.pop %v54
  %v63 = vrcp.pop %v55
  %v64 = vrcp.pop %v56
  %v65 = vrcp.pop %v57
  %v66 = vrcp.pop %v58
  %v67 = vlaneseq
  %v68 = vshrl.u32 %v67, 7
  %v69 = vsub.s32 0, %v68
  %v70 = vrot.slane %v11, %v69
  %v71 = vlaneseq
  %v72 = vshrl.u32 %v71, 7
  %v73 = vsub.s32 0, %v72
  %v74 = vrot.slane %v13, %v73
  %v75 = vlaneseq
  %v76 = vshrl.u32 %v75, 7
  %v77 = vsub.s32 0, %v76
  %v78 = vrot.slane %v15, %v77
  %v79 = vlaneseq
  %v80 = vshrl.u32 %v79, 7
  %v81 = vsub.s32 0, %v80
  %v82 = vrot.slane %v17, %v81
  %v83 = vlaneseq
  %v84 = vshrl.u32 %v83, 7
  %v85 = vsub.s32 0, %v84
  %v86 = vrot.slane %v19, %v85
  %v87 = vlaneseq
  %v88 = vshrl.u32 %v87, 7
  %v89 = vsub.s32 0, %v88
  %v90 = vrot.slane %v21, %v89
  %v91 = vlaneseq
  %v92 = vshrl.u32 %v91, 7
  %v93 = vsub.s32 0, %v92
  %v94 = vrot.slane %v23, %v93
  %v95 = vlaneseq
  %v96 = vshrl.u32 %v95, 7
  %v97 = vsub.s32 0, %v96
  %v98 = vrot.slane %v25, %v97
  %v99 = vsub.f32 %v11, %v70
  %v100 = vsub.f32 %v12, %v70
  %v101 = vsub.f32 %v13, %v74
  %v102 = vsub.f32 %v14, %v74
  %v103 = vsub.f32 %v15, %v78
  %v104 = vsub.f32 %v16, %v78
  %v105 = vsub.f32 %v17, %v82
  %v106 = vsub.f32 %v18, %v82
  %v107 = vsub.f32 %v19, %v86
  %v108 = vsub.f32 %v20, %v86
  %v109 = vsub.f32 %v21, %v90
  %v110 = vsub.f32 %v22, %v90
  %v111 = vsub.f32 %v23, %v94
  %v112 = vsub.f32 %v24, %v94
  %v113 = vsub.f32 %v25, %v98
  %v114 = vsub.f32 %v26, %v98
  %v115 = vlaneseq
  %v116 = vshrl.u32 %v115, 7
  %v117 = vsub.s32 7, %v116
  %v118 = vrot.slane %v59, %v117
  %v119 = vlaneseq
  %v120 = vshrl.u32 %v119, 7
  %v121 = vsub.s32 7, %v120
  %v122 = vrot.slane %v60, %v121
  %v123 = vlaneseq
  %v124 = vshrl.u32 %v123, 7
  %v125 = vsub.s32 7, %v124
  %v126 = vrot.slane %v61, %v125
  %v127 = vlaneseq
  %v128 = vshrl.u32 %v127, 7
  %v129 = vsub.s32 7, %v128
  %v130 = vrot.slane %v62, %v129
  %v131 = vlaneseq
  %v132 = vshrl.u32 %v131, 7
  %v133 = vsub.s32 7, %v132
  %v134 = vrot.slane %v63, %v133
  %v135 = vlaneseq
  %v136 = vshrl.u32 %v135, 7
  %v137 = vsub.s32 7, %v136
  %v138 = vrot.slane %v64, %v137
  %v139 = vlaneseq
  %v140 = vshrl.u32 %v139, 7
  %v141 = vsub.s32 7, %v140
  %v142 = vrot.slane %v65, %v141
  %v143 = vlaneseq
  %v144 = vshrl.u32 %v143, 7
  %v145 = vsub.s32 7, %v144
  %v146 = vrot.slane %v66, %v145
  %v147 = vmul.f32 %v99, %v118
  %v148 = vmul.f32 %v100, %v118
  %v149 = vmul.f32 %v101, %v122
  %v150 = vmul.f32 %v102, %v122
  %v151 = vmul.f32 %v103, %v126
  %v152 = vmul.f32 %v104, %v126
  %v153 = vmul.f32 %v105, %v130
  %v154 = vmul.f32 %v106, %v130
  %v155 = vmul.f32 %v107, %v134
  %v156 = vmul.f32 %v108, %v134
  %v157 = vmul.f32 %v109, %v138
  %v158 = vmul.f32 %v110, %v138
  %v159 = vmul.f32 %v111, %v142
  %v160 = vmul.f32 %v112, %v142
  %v161 = vmul.f32 %v113, %v146
  %v162 = vmul.f32 %v114, %v146
  %v163 = vmul.f32 %v147, 3.1415927
  %v164 = vmul.f32 %v148, 3.1415927
  %v165 = vmul.f32 %v149, 3.1415927
  %v166 = vmul.f32 %v150, 3.1415927
  %v167 = vmul.f32 %v151, 3.1415927
  %v168 = vmul.f32 %v152, 3.1415927
  %v169 = vmul.f32 %v153, 3.1415927
  %v170 = vmul.f32 %v154, 3.1415927
  %v171 = vmul.f32 %v155, 3.1415927
  %v172 = vmul.f32 %v156, 3.1415927
  %v173 = vmul.f32 %v157, 3.1415927
  %v174 = vmul.f32 %v158, 3.1415927
  %v175 = vmul.f32 %v159, 3.1415927
  %v176 = vmul.f32 %v160, 3.1415927
  %v177 = vmul.f32 %v161, 3.1415927
  %v178 = vmul.f32 %v162, 3.1415927
  %v179 = vld [vmem:[%s0] sm:$0xff]
  %v180 = vld [vmem:[%s0 + $0x8] sm:$0xff]
  %v181 = vld [vmem:[%s0 + $0x10] sm:$0xff]
  %v182 = vld [vmem:[%s0 + $0x18] sm:$0xff]
  %v183 = vld [vmem:[%s0 + $0x20] sm:$0xff]
  %v184 = vld [vmem:[%s0 + $0x28] sm:$0xff]
  %v185 = vld [vmem:[%s0 + $0x30] sm:$0xff]
  %v186 = vld [vmem:[%s0 + $0x38] sm:$0xff]
  %v187 = vld [vmem:[%s0 + $0x40] sm:$0xff]
  %v188 = vld [vmem:[%s0 + $0x48] sm:$0xff]
  %v189 = vld [vmem:[%s0 + $0x50] sm:$0xff]
  %v190 = vld [vmem:[%s0 + $0x58] sm:$0xff]
  %v191 = vld [vmem:[%s0 + $0x60] sm:$0xff]
  %v192 = vld [vmem:[%s0 + $0x68] sm:$0xff]
  %v193 = vld [vmem:[%s0 + $0x70] sm:$0xff]
  %v194 = vld [vmem:[%s0 + $0x78] sm:$0xff]
  %v195 = vand.u32 2147483647, %v163
  %vm196 = vcmp.le.f32.partialorder %v195, 0.7853982
  %vm197 = vcmp.lt.s32.totalorder %v163, 0
  %v198 = vand.u32 %v163, 2139095040
  %v199 = vshrl.u32 %v198, 23
  %v200 = vsub.s32 %v199, 127
  %v201 = vand.u32 2147483647, %v163
  %v202 = vand.u32 %v201, 8388607
  %v203 = vor.u32 %v202, 8388608
  %v204 = vsub.s32 0, %v203
  %v205 = vadd.s32 %v200, 1
  %vm206 = vcmp.gt.s32.totalorder %v205, 0
  %v207 = vsel %vm206, %v205, 0
  %v208 = vshrl.u32 %v207, 5
  %v209 = vand.u32 %v207, 31
  %v210 = vsub.s32 32, %v209
  %v211 = vshrl.u32 683565275, %v210
  %v212 = vshll.u32 683565275, %v209
  %v213 = vshrl.u32 2475754826, %v210
  %v214 = vor.u32 %v212, %v213
  %v215 = vshll.u32 2475754826, %v209
  %v216 = vshrl.u32 2131351028, %v210
  %v217 = vor.u32 %v215, %v216
  %v218 = vshll.u32 2131351028, %v209
  %v219 = vshrl.u32 2102212464, %v210
  %v220 = vor.u32 %v218, %v219
  %v221 = vshll.u32 2102212464, %v209
  %v222 = vshrl.u32 920167782, %v210
  %v223 = vor.u32 %v221, %v222
  %v224 = vshll.u32 920167782, %v209
  %v225 = vshrl.u32 1326507024, %v210
  %v226 = vor.u32 %v224, %v225
  %vm227 = vcmp.lt.s32.totalorder %v208, 1
  %vm228 = vcmp.lt.s32.totalorder %v208, 2
  %vm229 = vcmp.lt.s32.totalorder %v208, 3
  %vm230 = vcmp.lt.s32.totalorder %v208, 4
  %v231 = vsel %vm227, %v211, %v214
  %v232 = vsel %vm230, %v220, 2102212464
  %v233 = vsel %vm229, %v217, %v232
  %v234 = vsel %vm228, %v231, %v233
  %v235 = vsel %vm227, %v214, %v217
  %v236 = vsel %vm230, %v223, 920167782
  %v237 = vsel %vm229, %v220, %v236
  %v238 = vsel %vm228, %v235, %v237
  %v239 = vsel %vm227, %v217, %v220
  %v240 = vsel %vm230, %v226, 1326507024
  %v241 = vsel %vm229, %v223, %v240
  %v242 = vsel %vm228, %v239, %v241
  %v243 = vshll.u32 %v203, 8
  %v244 = vmul.u32.u64.compose %v243, %v242
  %v245 = vextract.low.u32 %v244
  %v246 = vextract.high.u32 %v244
  %v247 = vmul.u32.u64.compose %v243, %v238
  %v248 = vextract.low.u32 %v247
  %v249 = vextract.high.u32 %v247
  %v250 = vmul.u32 %v243, %v234
  %v251 = vadd.s32 %v246, %v248
  %vm252 = vc.u32 %v246, %v248
  %v253 = vadd.s32 %v249, 1
  %v254 = vsel %vm252, %v253, %v249
  %v255 = vadd.s32 %v250, %v254
  %v256 = vadd.s32 %v255, 536870912
  %v257 = vshrl.u32 %v256, 30
  %v258 = vshll.u32 %v257, 30
  %v259 = vsub.s32 %v255, %v258
  %vm260 = vcmp.lt.s32.totalorder %v259, 0
  %v261 = vsub.s32 0, %v259
  %v262 = vsel %vm260, %v261, %v259
  %v263 = vclz %v262
  %v264 = vsub.s32 %v263, 2
  %vm265 = vcmp.gt.s32.totalorder 0, %v264
  %v266 = vsel %vm265, 0, %v264
  %v267 = vsub.s32 32, %v266
  %v268 = vshll.u32 %v259, %v266
  %v269 = vshrl.u32 %v251, %v267
  %v270 = vor.u32 %v268, %v269
  %v271 = vsub.s32 4294967266, %v266
  %v272 = vadd.s32 %v271, 127
  %v273 = vshll.u32 %v272, 23
  %v274 = vor.u32 4788187, %v273
  %v275 = vand.u32 2147483647, %v274
  %v277 = vcvt.s32.f32 %v270
  %v278 = vmul.f32 %v277, %v275
  %v279 = vxor.u32 %v278, 2147483648
  %v280 = vsel %vm197, %v279, %v278
  %v281 = vsub.s32 4, %v257
  %v282 = vsel %vm197, %v281, %v257
  %v283 = vsel %vm196, %v163, %v280
  %v284 = vsel %vm196, 0, %v282
  %v285 = vcosq.f32.pop %v283
  %v286 = vsinq.f32.pop %v283
  %vm287 = vweird.f32 %v163
  %v288 = vadd.s32 %v284, 3
  %v289 = vand.u32 %v288, 3
  %vm290 = vcmp.lt.s32.totalorder %v289, 2
  %vm291 = vcmp.eq.s32.totalorder %v289, 0
  %v292 = vxor.u32 %v286, 2147483648
  %v293 = vsel %vm291, %v285, %v292
  %vm294 = vcmp.eq.s32.totalorder %v289, 2
  %v295 = vxor.u32 %v285, 2147483648
  %v296 = vsel %vm294, %v295, %v286
  %v297 = vsel %vm290, %v293, %v296
  %v298 = vsel %vm287, nan, %v297
  %v299 = vand.u32 2147483647, %v164
  %vm300 = vcmp.le.f32.partialorder %v299, 0.7853982
  %vm301 = vcmp.lt.s32.totalorder %v164, 0
  %v302 = vand.u32 %v164, 2139095040
  %v303 = vshrl.u32 %v302, 23
  %v304 = vsub.s32 %v303, 127
  %v305 = vand.u32 2147483647, %v164
  %v306 = vand.u32 %v305, 8388607
  %v307 = vor.u32 %v306, 8388608
  %v308 = vsub.s32 0, %v307
  %v309 = vadd.s32 %v304, 1
  %vm310 = vcmp.gt.s32.totalorder %v309, 0
  %v311 = vsel %vm310, %v309, 0
  %v312 = vshrl.u32 %v311, 5
  %v313 = vand.u32 %v311, 31
  %v314 = vsub.s32 32, %v313
  %v315 = vshrl.u32 683565275, %v314
  %v316 = vshll.u32 683565275, %v313
  %v317 = vshrl.u32 2475754826, %v314
  %v318 = vor.u32 %v316, %v317
  %v319 = vshll.u32 2475754826, %v313
  %v320 = vshrl.u32 2131351028, %v314
  %v321 = vor.u32 %v319, %v320
  %v322 = vshll.u32 2131351028, %v313
  %v323 = vshrl.u32 2102212464, %v314
  %v324 = vor.u32 %v322, %v323
  %v325 = vshll.u32 2102212464, %v313
  %v326 = vshrl.u32 920167782, %v314
  %v327 = vor.u32 %v325, %v326
  %v328 = vshll.u32 920167782, %v313
  %v329 = vshrl.u32 1326507024, %v314
  %v330 = vor.u32 %v328, %v329
  %vm331 = vcmp.lt.s32.totalorder %v312, 1
  %vm332 = vcmp.lt.s32.totalorder %v312, 2
  %vm333 = vcmp.lt.s32.totalorder %v312, 3
  %vm334 = vcmp.lt.s32.totalorder %v312, 4
  %v335 = vsel %vm331, %v315, %v318
  %v336 = vsel %vm334, %v324, 2102212464
  %v337 = vsel %vm333, %v321, %v336
  %v338 = vsel %vm332, %v335, %v337
  %v339 = vsel %vm331, %v318, %v321
  %v340 = vsel %vm334, %v327, 920167782
  %v341 = vsel %vm333, %v324, %v340
  %v342 = vsel %vm332, %v339, %v341
  %v343 = vsel %vm331, %v321, %v324
  %v344 = vsel %vm334, %v330, 1326507024
  %v345 = vsel %vm333, %v327, %v344
  %v346 = vsel %vm332, %v343, %v345
  %v347 = vshll.u32 %v307, 8
  %v348 = vmul.u32.u64.compose %v347, %v346
  %v349 = vextract.low.u32 %v348
  %v350 = vextract.high.u32 %v348
  %v351 = vmul.u32.u64.compose %v347, %v342
  %v352 = vextract.low.u32 %v351
  %v353 = vextract.high.u32 %v351
  %v354 = vmul.u32 %v347, %v338
  %v355 = vadd.s32 %v350, %v352
  %vm356 = vc.u32 %v350, %v352
  %v357 = vadd.s32 %v353, 1
  %v358 = vsel %vm356, %v357, %v353
  %v359 = vadd.s32 %v354, %v358
  %v360 = vadd.s32 %v359, 536870912
  %v361 = vshrl.u32 %v360, 30
  %v362 = vshll.u32 %v361, 30
  %v363 = vsub.s32 %v359, %v362
  %vm364 = vcmp.lt.s32.totalorder %v363, 0
  %v365 = vsub.s32 0, %v363
  %v366 = vsel %vm364, %v365, %v363
  %v367 = vclz %v366
  %v368 = vsub.s32 %v367, 2
  %vm369 = vcmp.gt.s32.totalorder 0, %v368
  %v370 = vsel %vm369, 0, %v368
  %v371 = vsub.s32 32, %v370
  %v372 = vshll.u32 %v363, %v370
  %v373 = vshrl.u32 %v355, %v371
  %v374 = vor.u32 %v372, %v373
  %v375 = vsub.s32 4294967266, %v370
  %v376 = vadd.s32 %v375, 127
  %v377 = vshll.u32 %v376, 23
  %v378 = vor.u32 4788187, %v377
  %v379 = vand.u32 2147483647, %v378
  %v381 = vcvt.s32.f32 %v374
  %v382 = vmul.f32 %v381, %v379
  %v383 = vxor.u32 %v382, 2147483648
  %v384 = vsel %vm301, %v383, %v382
  %v385 = vsub.s32 4, %v361
  %v386 = vsel %vm301, %v385, %v361
  %v387 = vsel %vm300, %v164, %v384
  %v388 = vsel %vm300, 0, %v386
  %v389 = vcosq.f32.pop %v387
  %v390 = vsinq.f32.pop %v387
  %vm391 = vweird.f32 %v164
  %v392 = vadd.s32 %v388, 3
  %v393 = vand.u32 %v392, 3
  %vm394 = vcmp.lt.s32.totalorder %v393, 2
  %vm395 = vcmp.eq.s32.totalorder %v393, 0
  %v396 = vxor.u32 %v390, 2147483648
  %v397 = vsel %vm395, %v389, %v396
  %vm398 = vcmp.eq.s32.totalorder %v393, 2
  %v399 = vxor.u32 %v389, 2147483648
  %v400 = vsel %vm398, %v399, %v390
  %v401 = vsel %vm394, %v397, %v400
  %v402 = vsel %vm391, nan, %v401
  %v403 = vand.u32 2147483647, %v165
  %vm404 = vcmp.le.f32.partialorder %v403, 0.7853982
  %vm405 = vcmp.lt.s32.totalorder %v165, 0
  %v406 = vand.u32 %v165, 2139095040
  %v407 = vshrl.u32 %v406, 23
  %v408 = vsub.s32 %v407, 127
  %v409 = vand.u32 2147483647, %v165
  %v410 = vand.u32 %v409, 8388607
  %v411 = vor.u32 %v410, 8388608
  %v412 = vsub.s32 0, %v411
  %v413 = vadd.s32 %v408, 1
  %vm414 = vcmp.gt.s32.totalorder %v413, 0
  %v415 = vsel %vm414, %v413, 0
  %v416 = vshrl.u32 %v415, 5
  %v417 = vand.u32 %v415, 31
  %v418 = vsub.s32 32, %v417
  %v419 = vshrl.u32 683565275, %v418
  %v420 = vshll.u32 683565275, %v417
  %v421 = vshrl.u32 2475754826, %v418
  %v422 = vor.u32 %v420, %v421
  %v423 = vshll.u32 2475754826, %v417
  %v424 = vshrl.u32 2131351028, %v418
  %v425 = vor.u32 %v423, %v424
  %v426 = vshll.u32 2131351028, %v417
  %v427 = vshrl.u32 2102212464, %v418
  %v428 = vor.u32 %v426, %v427
  %v429 = vshll.u32 2102212464, %v417
  %v430 = vshrl.u32 920167782, %v418
  %v431 = vor.u32 %v429, %v430
  %v432 = vshll.u32 920167782, %v417
  %v433 = vshrl.u32 1326507024, %v418
  %v434 = vor.u32 %v432, %v433
  %vm435 = vcmp.lt.s32.totalorder %v416, 1
  %vm436 = vcmp.lt.s32.totalorder %v416, 2
  %vm437 = vcmp.lt.s32.totalorder %v416, 3
  %vm438 = vcmp.lt.s32.totalorder %v416, 4
  %v439 = vsel %vm435, %v419, %v422
  %v440 = vsel %vm438, %v428, 2102212464
  %v441 = vsel %vm437, %v425, %v440
  %v442 = vsel %vm436, %v439, %v441
  %v443 = vsel %vm435, %v422, %v425
  %v444 = vsel %vm438, %v431, 920167782
  %v445 = vsel %vm437, %v428, %v444
  %v446 = vsel %vm436, %v443, %v445
  %v447 = vsel %vm435, %v425, %v428
  %v448 = vsel %vm438, %v434, 1326507024
  %v449 = vsel %vm437, %v431, %v448
  %v450 = vsel %vm436, %v447, %v449
  %v451 = vshll.u32 %v411, 8
  %v452 = vmul.u32.u64.compose %v451, %v450
  %v453 = vextract.low.u32 %v452
  %v454 = vextract.high.u32 %v452
  %v455 = vmul.u32.u64.compose %v451, %v446
  %v456 = vextract.low.u32 %v455
  %v457 = vextract.high.u32 %v455
  %v458 = vmul.u32 %v451, %v442
  %v459 = vadd.s32 %v454, %v456
  %vm460 = vc.u32 %v454, %v456
  %v461 = vadd.s32 %v457, 1
  %v462 = vsel %vm460, %v461, %v457
  %v463 = vadd.s32 %v458, %v462
  %v464 = vadd.s32 %v463, 536870912
  %v465 = vshrl.u32 %v464, 30
  %v466 = vshll.u32 %v465, 30
  %v467 = vsub.s32 %v463, %v466
  %vm468 = vcmp.lt.s32.totalorder %v467, 0
  %v469 = vsub.s32 0, %v467
  %v470 = vsel %vm468, %v469, %v467
  %v471 = vclz %v470
  %v472 = vsub.s32 %v471, 2
  %vm473 = vcmp.gt.s32.totalorder 0, %v472
  %v474 = vsel %vm473, 0, %v472
  %v475 = vsub.s32 32, %v474
  %v476 = vshll.u32 %v467, %v474
  %v477 = vshrl.u32 %v459, %v475
  %v478 = vor.u32 %v476, %v477
  %v479 = vsub.s32 4294967266, %v474
  %v480 = vadd.s32 %v479, 127
  %v481 = vshll.u32 %v480, 23
  %v482 = vor.u32 4788187, %v481
  %v483 = vand.u32 2147483647, %v482
  %v485 = vcvt.s32.f32 %v478
  %v486 = vmul.f32 %v485, %v483
  %v487 = vxor.u32 %v486, 2147483648
  %v488 = vsel %vm405, %v487, %v486
  %v489 = vsub.s32 4, %v465
  %v490 = vsel %vm405, %v489, %v465
  %v491 = vsel %vm404, %v165, %v488
  %v492 = vsel %vm404, 0, %v490
  %v493 = vcosq.f32.pop %v491
  %v494 = vsinq.f32.pop %v491
  %vm495 = vweird.f32 %v165
  %v496 = vadd.s32 %v492, 3
  %v497 = vand.u32 %v496, 3
  %vm498 = vcmp.lt.s32.totalorder %v497, 2
  %vm499 = vcmp.eq.s32.totalorder %v497, 0
  %v500 = vxor.u32 %v494, 2147483648
  %v501 = vsel %vm499, %v493, %v500
  %vm502 = vcmp.eq.s32.totalorder %v497, 2
  %v503 = vxor.u32 %v493, 2147483648
  %v504 = vsel %vm502, %v503, %v494
  %v505 = vsel %vm498, %v501, %v504
  %v506 = vsel %vm495, nan, %v505
  %v507 = vand.u32 2147483647, %v166
  %vm508 = vcmp.le.f32.partialorder %v507, 0.7853982
  %vm509 = vcmp.lt.s32.totalorder %v166, 0
  %v510 = vand.u32 %v166, 2139095040
  %v511 = vshrl.u32 %v510, 23
  %v512 = vsub.s32 %v511, 127
  %v513 = vand.u32 2147483647, %v166
  %v514 = vand.u32 %v513, 8388607
  %v515 = vor.u32 %v514, 8388608
  %v516 = vsub.s32 0, %v515
  %v517 = vadd.s32 %v512, 1
  %vm518 = vcmp.gt.s32.totalorder %v517, 0
  %v519 = vsel %vm518, %v517, 0
  %v520 = vshrl.u32 %v519, 5
  %v521 = vand.u32 %v519, 31
  %v522 = vsub.s32 32, %v521
  %v523 = vshrl.u32 683565275, %v522
  %v524 = vshll.u32 683565275, %v521
  %v525 = vshrl.u32 2475754826, %v522
  %v526 = vor.u32 %v524, %v525
  %v527 = vshll.u32 2475754826, %v521
  %v528 = vshrl.u32 2131351028, %v522
  %v529 = vor.u32 %v527, %v528
  %v530 = vshll.u32 2131351028, %v521
  %v531 = vshrl.u32 2102212464, %v522
  %v532 = vor.u32 %v530, %v531
  %v533 = vshll.u32 2102212464, %v521
  %v534 = vshrl.u32 920167782, %v522
  %v535 = vor.u32 %v533, %v534
  %v536 = vshll.u32 920167782, %v521
  %v537 = vshrl.u32 1326507024, %v522
  %v538 = vor.u32 %v536, %v537
  %vm539 = vcmp.lt.s32.totalorder %v520, 1
  %vm540 = vcmp.lt.s32.totalorder %v520, 2
  %vm541 = vcmp.lt.s32.totalorder %v520, 3
  %vm542 = vcmp.lt.s32.totalorder %v520, 4
  %v543 = vsel %vm539, %v523, %v526
  %v544 = vsel %vm542, %v532, 2102212464
  %v545 = vsel %vm541, %v529, %v544
  %v546 = vsel %vm540, %v543, %v545
  %v547 = vsel %vm539, %v526, %v529
  %v548 = vsel %vm542, %v535, 920167782
  %v549 = vsel %vm541, %v532, %v548
  %v550 = vsel %vm540, %v547, %v549
  %v551 = vsel %vm539, %v529, %v532
  %v552 = vsel %vm542, %v538, 1326507024
  %v553 = vsel %vm541, %v535, %v552
  %v554 = vsel %vm540, %v551, %v553
  %v555 = vshll.u32 %v515, 8
  %v556 = vmul.u32.u64.compose %v555, %v554
  %v557 = vextract.low.u32 %v556
  %v558 = vextract.high.u32 %v556
  %v559 = vmul.u32.u64.compose %v555, %v550
  %v560 = vextract.low.u32 %v559
  %v561 = vextract.high.u32 %v559
  %v562 = vmul.u32 %v555, %v546
  %v563 = vadd.s32 %v558, %v560
  %vm564 = vc.u32 %v558, %v560
  %v565 = vadd.s32 %v561, 1
  %v566 = vsel %vm564, %v565, %v561
  %v567 = vadd.s32 %v562, %v566
  %v568 = vadd.s32 %v567, 536870912
  %v569 = vshrl.u32 %v568, 30
  %v570 = vshll.u32 %v569, 30
  %v571 = vsub.s32 %v567, %v570
  %vm572 = vcmp.lt.s32.totalorder %v571, 0
  %v573 = vsub.s32 0, %v571
  %v574 = vsel %vm572, %v573, %v571
  %v575 = vclz %v574
  %v576 = vsub.s32 %v575, 2
  %vm577 = vcmp.gt.s32.totalorder 0, %v576
  %v578 = vsel %vm577, 0, %v576
  %v579 = vsub.s32 32, %v578
  %v580 = vshll.u32 %v571, %v578
  %v581 = vshrl.u32 %v563, %v579
  %v582 = vor.u32 %v580, %v581
  %v583 = vsub.s32 4294967266, %v578
  %v584 = vadd.s32 %v583, 127
  %v585 = vshll.u32 %v584, 23
  %v586 = vor.u32 4788187, %v585
  %v587 = vand.u32 2147483647, %v586
  %v589 = vcvt.s32.f32 %v582
  %v590 = vmul.f32 %v589, %v587
  %v591 = vxor.u32 %v590, 2147483648
  %v592 = vsel %vm509, %v591, %v590
  %v593 = vsub.s32 4, %v569
  %v594 = vsel %vm509, %v593, %v569
  %v595 = vsel %vm508, %v166, %v592
  %v596 = vsel %vm508, 0, %v594
  %v597 = vcosq.f32.pop %v595
  %v598 = vsinq.f32.pop %v595
  %vm599 = vweird.f32 %v166
  %v600 = vadd.s32 %v596, 3
  %v601 = vand.u32 %v600, 3
  %vm602 = vcmp.lt.s32.totalorder %v601, 2
  %vm603 = vcmp.eq.s32.totalorder %v601, 0
  %v604 = vxor.u32 %v598, 2147483648
  %v605 = vsel %vm603, %v597, %v604
  %vm606 = vcmp.eq.s32.totalorder %v601, 2
  %v607 = vxor.u32 %v597, 2147483648
  %v608 = vsel %vm606, %v607, %v598
  %v609 = vsel %vm602, %v605, %v608
  %v610 = vsel %vm599, nan, %v609
  %v611 = vand.u32 2147483647, %v167
  %vm612 = vcmp.le.f32.partialorder %v611, 0.7853982
  %vm613 = vcmp.lt.s32.totalorder %v167, 0
  %v614 = vand.u32 %v167, 2139095040
  %v615 = vshrl.u32 %v614, 23
  %v616 = vsub.s32 %v615, 127
  %v617 = vand.u32 2147483647, %v167
  %v618 = vand.u32 %v617, 8388607
  %v619 = vor.u32 %v618, 8388608
  %v620 = vsub.s32 0, %v619
  %v621 = vadd.s32 %v616, 1
  %vm622 = vcmp.gt.s32.totalorder %v621, 0
  %v623 = vsel %vm622, %v621, 0
  %v624 = vshrl.u32 %v623, 5
  %v625 = vand.u32 %v623, 31
  %v626 = vsub.s32 32, %v625
  %v627 = vshrl.u32 683565275, %v626
  %v628 = vshll.u32 683565275, %v625
  %v629 = vshrl.u32 2475754826, %v626
  %v630 = vor.u32 %v628, %v629
  %v631 = vshll.u32 2475754826, %v625
  %v632 = vshrl.u32 2131351028, %v626
  %v633 = vor.u32 %v631, %v632
  %v634 = vshll.u32 2131351028, %v625
  %v635 = vshrl.u32 2102212464, %v626
  %v636 = vor.u32 %v634, %v635
  %v637 = vshll.u32 2102212464, %v625
  %v638 = vshrl.u32 920167782, %v626
  %v639 = vor.u32 %v637, %v638
  %v640 = vshll.u32 920167782, %v625
  %v641 = vshrl.u32 1326507024, %v626
  %v642 = vor.u32 %v640, %v641
  %vm643 = vcmp.lt.s32.totalorder %v624, 1
  %vm644 = vcmp.lt.s32.totalorder %v624, 2
  %vm645 = vcmp.lt.s32.totalorder %v624, 3
  %vm646 = vcmp.lt.s32.totalorder %v624, 4
  %v647 = vsel %vm643, %v627, %v630
  %v648 = vsel %vm646, %v636, 2102212464
  %v649 = vsel %vm645, %v633, %v648
  %v650 = vsel %vm644, %v647, %v649
  %v651 = vsel %vm643, %v630, %v633
  %v652 = vsel %vm646, %v639, 920167782
  %v653 = vsel %vm645, %v636, %v652
  %v654 = vsel %vm644, %v651, %v653
  %v655 = vsel %vm643, %v633, %v636
  %v656 = vsel %vm646, %v642, 1326507024
  %v657 = vsel %vm645, %v639, %v656
  %v658 = vsel %vm644, %v655, %v657
  %v659 = vshll.u32 %v619, 8
  %v660 = vmul.u32.u64.compose %v659, %v658
  %v661 = vextract.low.u32 %v660
  %v662 = vextract.high.u32 %v660
  %v663 = vmul.u32.u64.compose %v659, %v654
  %v664 = vextract.low.u32 %v663
  %v665 = vextract.high.u32 %v663
  %v666 = vmul.u32 %v659, %v650
  %v667 = vadd.s32 %v662, %v664
  %vm668 = vc.u32 %v662, %v664
  %v669 = vadd.s32 %v665, 1
  %v670 = vsel %vm668, %v669, %v665
  %v671 = vadd.s32 %v666, %v670
  %v672 = vadd.s32 %v671, 536870912
  %v673 = vshrl.u32 %v672, 30
  %v674 = vshll.u32 %v673, 30
  %v675 = vsub.s32 %v671, %v674
  %vm676 = vcmp.lt.s32.totalorder %v675, 0
  %v677 = vsub.s32 0, %v675
  %v678 = vsel %vm676, %v677, %v675
  %v679 = vclz %v678
  %v680 = vsub.s32 %v679, 2
  %vm681 = vcmp.gt.s32.totalorder 0, %v680
  %v682 = vsel %vm681, 0, %v680
  %v683 = vsub.s32 32, %v682
  %v684 = vshll.u32 %v675, %v682
  %v685 = vshrl.u32 %v667, %v683
  %v686 = vor.u32 %v684, %v685
  %v687 = vsub.s32 4294967266, %v682
  %v688 = vadd.s32 %v687, 127
  %v689 = vshll.u32 %v688, 23
  %v690 = vor.u32 4788187, %v689
  %v691 = vand.u32 2147483647, %v690
  %v693 = vcvt.s32.f32 %v686
  %v694 = vmul.f32 %v693, %v691
  %v695 = vxor.u32 %v694, 2147483648
  %v696 = vsel %vm613, %v695, %v694
  %v697 = vsub.s32 4, %v673
  %v698 = vsel %vm613, %v697, %v673
  %v699 = vsel %vm612, %v167, %v696
  %v700 = vsel %vm612, 0, %v698
  %v701 = vcosq.f32.pop %v699
  %v702 = vsinq.f32.pop %v699
  %vm703 = vweird.f32 %v167
  %v704 = vadd.s32 %v700, 3
  %v705 = vand.u32 %v704, 3
  %vm706 = vcmp.lt.s32.totalorder %v705, 2
  %vm707 = vcmp.eq.s32.totalorder %v705, 0
  %v708 = vxor.u32 %v702, 2147483648
  %v709 = vsel %vm707, %v701, %v708
  %vm710 = vcmp.eq.s32.totalorder %v705, 2
  %v711 = vxor.u32 %v701, 2147483648
  %v712 = vsel %vm710, %v711, %v702
  %v713 = vsel %vm706, %v709, %v712
  %v714 = vsel %vm703, nan, %v713
  %v715 = vand.u32 2147483647, %v168
  %vm716 = vcmp.le.f32.partialorder %v715, 0.7853982
  %vm717 = vcmp.lt.s32.totalorder %v168, 0
  %v718 = vand.u32 %v168, 2139095040
  %v719 = vshrl.u32 %v718, 23
  %v720 = vsub.s32 %v719, 127
  %v721 = vand.u32 2147483647, %v168
  %v722 = vand.u32 %v721, 8388607
  %v723 = vor.u32 %v722, 8388608
  %v724 = vsub.s32 0, %v723
  %v725 = vadd.s32 %v720, 1
  %vm726 = vcmp.gt.s32.totalorder %v725, 0
  %v727 = vsel %vm726, %v725, 0
  %v728 = vshrl.u32 %v727, 5
  %v729 = vand.u32 %v727, 31
  %v730 = vsub.s32 32, %v729
  %v731 = vshrl.u32 683565275, %v730
  %v732 = vshll.u32 683565275, %v729
  %v733 = vshrl.u32 2475754826, %v730
  %v734 = vor.u32 %v732, %v733
  %v735 = vshll.u32 2475754826, %v729
  %v736 = vshrl.u32 2131351028, %v730
  %v737 = vor.u32 %v735, %v736
  %v738 = vshll.u32 2131351028, %v729
  %v739 = vshrl.u32 2102212464, %v730
  %v740 = vor.u32 %v738, %v739
  %v741 = vshll.u32 2102212464, %v729
  %v742 = vshrl.u32 920167782, %v730
  %v743 = vor.u32 %v741, %v742
  %v744 = vshll.u32 920167782, %v729
  %v745 = vshrl.u32 1326507024, %v730
  %v746 = vor.u32 %v744, %v745
  %vm747 = vcmp.lt.s32.totalorder %v728, 1
  %vm748 = vcmp.lt.s32.totalorder %v728, 2
  %vm749 = vcmp.lt.s32.totalorder %v728, 3
  %vm750 = vcmp.lt.s32.totalorder %v728, 4
  %v751 = vsel %vm747, %v731, %v734
  %v752 = vsel %vm750, %v740, 2102212464
  %v753 = vsel %vm749, %v737, %v752
  %v754 = vsel %vm748, %v751, %v753
  %v755 = vsel %vm747, %v734, %v737
  %v756 = vsel %vm750, %v743, 920167782
  %v757 = vsel %vm749, %v740, %v756
  %v758 = vsel %vm748, %v755, %v757
  %v759 = vsel %vm747, %v737, %v740
  %v760 = vsel %vm750, %v746, 1326507024
  %v761 = vsel %vm749, %v743, %v760
  %v762 = vsel %vm748, %v759, %v761
  %v763 = vshll.u32 %v723, 8
  %v764 = vmul.u32.u64.compose %v763, %v762
  %v765 = vextract.low.u32 %v764
  %v766 = vextract.high.u32 %v764
  %v767 = vmul.u32.u64.compose %v763, %v758
  %v768 = vextract.low.u32 %v767
  %v769 = vextract.high.u32 %v767
  %v770 = vmul.u32 %v763, %v754
  %v771 = vadd.s32 %v766, %v768
  %vm772 = vc.u32 %v766, %v768
  %v773 = vadd.s32 %v769, 1
  %v774 = vsel %vm772, %v773, %v769
  %v775 = vadd.s32 %v770, %v774
  %v776 = vadd.s32 %v775, 536870912
  %v777 = vshrl.u32 %v776, 30
  %v778 = vshll.u32 %v777, 30
  %v779 = vsub.s32 %v775, %v778
  %vm780 = vcmp.lt.s32.totalorder %v779, 0
  %v781 = vsub.s32 0, %v779
  %v782 = vsel %vm780, %v781, %v779
  %v783 = vclz %v782
  %v784 = vsub.s32 %v783, 2
  %vm785 = vcmp.gt.s32.totalorder 0, %v784
  %v786 = vsel %vm785, 0, %v784
  %v787 = vsub.s32 32, %v786
  %v788 = vshll.u32 %v779, %v786
  %v789 = vshrl.u32 %v771, %v787
  %v790 = vor.u32 %v788, %v789
  %v791 = vsub.s32 4294967266, %v786
  %v792 = vadd.s32 %v791, 127
  %v793 = vshll.u32 %v792, 23
  %v794 = vor.u32 4788187, %v793
  %v795 = vand.u32 2147483647, %v794
  %v797 = vcvt.s32.f32 %v790
  %v798 = vmul.f32 %v797, %v795
  %v799 = vxor.u32 %v798, 2147483648
  %v800 = vsel %vm717, %v799, %v798
  %v801 = vsub.s32 4, %v777
  %v802 = vsel %vm717, %v801, %v777
  %v803 = vsel %vm716, %v168, %v800
  %v804 = vsel %vm716, 0, %v802
  %v805 = vcosq.f32.pop %v803
  %v806 = vsinq.f32.pop %v803
  %vm807 = vweird.f32 %v168
  %v808 = vadd.s32 %v804, 3
  %v809 = vand.u32 %v808, 3
  %vm810 = vcmp.lt.s32.totalorder %v809, 2
  %vm811 = vcmp.eq.s32.totalorder %v809, 0
  %v812 = vxor.u32 %v806, 2147483648
  %v813 = vsel %vm811, %v805, %v812
  %vm814 = vcmp.eq.s32.totalorder %v809, 2
  %v815 = vxor.u32 %v805, 2147483648
  %v816 = vsel %vm814, %v815, %v806
  %v817 = vsel %vm810, %v813, %v816
  %v818 = vsel %vm807, nan, %v817
  %v819 = vand.u32 2147483647, %v169
  %vm820 = vcmp.le.f32.partialorder %v819, 0.7853982
  %vm821 = vcmp.lt.s32.totalorder %v169, 0
  %v822 = vand.u32 %v169, 2139095040
  %v823 = vshrl.u32 %v822, 23
  %v824 = vsub.s32 %v823, 127
  %v825 = vand.u32 2147483647, %v169
  %v826 = vand.u32 %v825, 8388607
  %v827 = vor.u32 %v826, 8388608
  %v828 = vsub.s32 0, %v827
  %v829 = vadd.s32 %v824, 1
  %vm830 = vcmp.gt.s32.totalorder %v829, 0
  %v831 = vsel %vm830, %v829, 0
  %v832 = vshrl.u32 %v831, 5
  %v833 = vand.u32 %v831, 31
  %v834 = vsub.s32 32, %v833
  %v835 = vshrl.u32 683565275, %v834
  %v836 = vshll.u32 683565275, %v833
  %v837 = vshrl.u32 2475754826, %v834
  %v838 = vor.u32 %v836, %v837
  %v839 = vshll.u32 2475754826, %v833
  %v840 = vshrl.u32 2131351028, %v834
  %v841 = vor.u32 %v839, %v840
  %v842 = vshll.u32 2131351028, %v833
  %v843 = vshrl.u32 2102212464, %v834
  %v844 = vor.u32 %v842, %v843
  %v845 = vshll.u32 2102212464, %v833
  %v846 = vshrl.u32 920167782, %v834
  %v847 = vor.u32 %v845, %v846
  %v848 = vshll.u32 920167782, %v833
  %v849 = vshrl.u32 1326507024, %v834
  %v850 = vor.u32 %v848, %v849
  %vm851 = vcmp.lt.s32.totalorder %v832, 1
  %vm852 = vcmp.lt.s32.totalorder %v832, 2
  %vm853 = vcmp.lt.s32.totalorder %v832, 3
  %vm854 = vcmp.lt.s32.totalorder %v832, 4
  %v855 = vsel %vm851, %v835, %v838
  %v856 = vsel %vm854, %v844, 2102212464
  %v857 = vsel %vm853, %v841, %v856
  %v858 = vsel %vm852, %v855, %v857
  %v859 = vsel %vm851, %v838, %v841
  %v860 = vsel %vm854, %v847, 920167782
  %v861 = vsel %vm853, %v844, %v860
  %v862 = vsel %vm852, %v859, %v861
  %v863 = vsel %vm851, %v841, %v844
  %v864 = vsel %vm854, %v850, 1326507024
  %v865 = vsel %vm853, %v847, %v864
  %v866 = vsel %vm852, %v863, %v865
  %v867 = vshll.u32 %v827, 8
  %v868 = vmul.u32.u64.compose %v867, %v866
  %v869 = vextract.low.u32 %v868
  %v870 = vextract.high.u32 %v868
  %v871 = vmul.u32.u64.compose %v867, %v862
  %v872 = vextract.low.u32 %v871
  %v873 = vextract.high.u32 %v871
  %v874 = vmul.u32 %v867, %v858
  %v875 = vadd.s32 %v870, %v872
  %vm876 = vc.u32 %v870, %v872
  %v877 = vadd.s32 %v873, 1
  %v878 = vsel %vm876, %v877, %v873
  %v879 = vadd.s32 %v874, %v878
  %v880 = vadd.s32 %v879, 536870912
  %v881 = vshrl.u32 %v880, 30
  %v882 = vshll.u32 %v881, 30
  %v883 = vsub.s32 %v879, %v882
  %vm884 = vcmp.lt.s32.totalorder %v883, 0
  %v885 = vsub.s32 0, %v883
  %v886 = vsel %vm884, %v885, %v883
  %v887 = vclz %v886
  %v888 = vsub.s32 %v887, 2
  %vm889 = vcmp.gt.s32.totalorder 0, %v888
  %v890 = vsel %vm889, 0, %v888
  %v891 = vsub.s32 32, %v890
  %v892 = vshll.u32 %v883, %v890
  %v893 = vshrl.u32 %v875, %v891
  %v894 = vor.u32 %v892, %v893
  %v895 = vsub.s32 4294967266, %v890
  %v896 = vadd.s32 %v895, 127
  %v897 = vshll.u32 %v896, 23
  %v898 = vor.u32 4788187, %v897
  %v899 = vand.u32 2147483647, %v898
  %v901 = vcvt.s32.f32 %v894
  %v902 = vmul.f32 %v901, %v899
  %v903 = vxor.u32 %v902, 2147483648
  %v904 = vsel %vm821, %v903, %v902
  %v905 = vsub.s32 4, %v881
  %v906 = vsel %vm821, %v905, %v881
  %v907 = vsel %vm820, %v169, %v904
  %v908 = vsel %vm820, 0, %v906
  %v909 = vcosq.f32.pop %v907
  %v910 = vsinq.f32.pop %v907
  %vm911 = vweird.f32 %v169
  %v912 = vadd.s32 %v908, 3
  %v913 = vand.u32 %v912, 3
  %vm914 = vcmp.lt.s32.totalorder %v913, 2
  %vm915 = vcmp.eq.s32.totalorder %v913, 0
  %v916 = vxor.u32 %v910, 2147483648
  %v917 = vsel %vm915, %v909, %v916
  %vm918 = vcmp.eq.s32.totalorder %v913, 2
  %v919 = vxor.u32 %v909, 2147483648
  %v920 = vsel %vm918, %v919, %v910
  %v921 = vsel %vm914, %v917, %v920
  %v922 = vsel %vm911, nan, %v921
  %v923 = vand.u32 2147483647, %v170
  %vm924 = vcmp.le.f32.partialorder %v923, 0.7853982
  %vm925 = vcmp.lt.s32.totalorder %v170, 0
  %v926 = vand.u32 %v170, 2139095040
  %v927 = vshrl.u32 %v926, 23
  %v928 = vsub.s32 %v927, 127
  %v929 = vand.u32 2147483647, %v170
  %v930 = vand.u32 %v929, 8388607
  %v931 = vor.u32 %v930, 8388608
  %v932 = vsub.s32 0, %v931
  %v933 = vadd.s32 %v928, 1
  %vm934 = vcmp.gt.s32.totalorder %v933, 0
  %v935 = vsel %vm934, %v933, 0
  %v936 = vshrl.u32 %v935, 5
  %v937 = vand.u32 %v935, 31
  %v938 = vsub.s32 32, %v937
  %v939 = vshrl.u32 683565275, %v938
  %v940 = vshll.u32 683565275, %v937
  %v941 = vshrl.u32 2475754826, %v938
  %v942 = vor.u32 %v940, %v941
  %v943 = vshll.u32 2475754826, %v937
  %v944 = vshrl.u32 2131351028, %v938
  %v945 = vor.u32 %v943, %v944
  %v946 = vshll.u32 2131351028, %v937
  %v947 = vshrl.u32 2102212464, %v938
  %v948 = vor.u32 %v946, %v947
  %v949 = vshll.u32 2102212464, %v937
  %v950 = vshrl.u32 920167782, %v938
  %v951 = vor.u32 %v949, %v950
  %v952 = vshll.u32 920167782, %v937
  %v953 = vshrl.u32 1326507024, %v938
  %v954 = vor.u32 %v952, %v953
  %vm955 = vcmp.lt.s32.totalorder %v936, 1
  %vm956 = vcmp.lt.s32.totalorder %v936, 2
  %vm957 = vcmp.lt.s32.totalorder %v936, 3
  %vm958 = vcmp.lt.s32.totalorder %v936, 4
  %v959 = vsel %vm955, %v939, %v942
  %v960 = vsel %vm958, %v948, 2102212464
  %v961 = vsel %vm957, %v945, %v960
  %v962 = vsel %vm956, %v959, %v961
  %v963 = vsel %vm955, %v942, %v945
  %v964 = vsel %vm958, %v951, 920167782
  %v965 = vsel %vm957, %v948, %v964
  %v966 = vsel %vm956, %v963, %v965
  %v967 = vsel %vm955, %v945, %v948
  %v968 = vsel %vm958, %v954, 1326507024
  %v969 = vsel %vm957, %v951, %v968
  %v970 = vsel %vm956, %v967, %v969
  %v971 = vshll.u32 %v931, 8
  %v972 = vmul.u32.u64.compose %v971, %v970
  %v973 = vextract.low.u32 %v972
  %v974 = vextract.high.u32 %v972
  %v975 = vmul.u32.u64.compose %v971, %v966
  %v976 = vextract.low.u32 %v975
  %v977 = vextract.high.u32 %v975
  %v978 = vmul.u32 %v971, %v962
  %v979 = vadd.s32 %v974, %v976
  %vm980 = vc.u32 %v974, %v976
  %v981 = vadd.s32 %v977, 1
  %v982 = vsel %vm980, %v981, %v977
  %v983 = vadd.s32 %v978, %v982
  %v984 = vadd.s32 %v983, 536870912
  %v985 = vshrl.u32 %v984, 30
  %v986 = vshll.u32 %v985, 30
  %v987 = vsub.s32 %v983, %v986
  %vm988 = vcmp.lt.s32.totalorder %v987, 0
  %v989 = vsub.s32 0, %v987
  %v990 = vsel %vm988, %v989, %v987
  %v991 = vclz %v990
  %v992 = vsub.s32 %v991, 2
  %vm993 = vcmp.gt.s32.totalorder 0, %v992
  %v994 = vsel %vm993, 0, %v992
  %v995 = vsub.s32 32, %v994
  %v996 = vshll.u32 %v987, %v994
  %v997 = vshrl.u32 %v979, %v995
  %v998 = vor.u32 %v996, %v997
  %v999 = vsub.s32 4294967266, %v994
  %v1000 = vadd.s32 %v999, 127
  %v1001 = vshll.u32 %v1000, 23
  %v1002 = vor.u32 4788187, %v1001
  %v1003 = vand.u32 2147483647, %v1002
  %v1005 = vcvt.s32.f32 %v998
  %v1006 = vmul.f32 %v1005, %v1003
  %v1007 = vxor.u32 %v1006, 2147483648
  %v1008 = vsel %vm925, %v1007, %v1006
  %v1009 = vsub.s32 4, %v985
  %v1010 = vsel %vm925, %v1009, %v985
  %v1011 = vsel %vm924, %v170, %v1008
  %v1012 = vsel %vm924, 0, %v1010
  %v1013 = vcosq.f32.pop %v1011
  %v1014 = vsinq.f32.pop %v1011
  %vm1015 = vweird.f32 %v170
  %v1016 = vadd.s32 %v1012, 3
  %v1017 = vand.u32 %v1016, 3
  %vm1018 = vcmp.lt.s32.totalorder %v1017, 2
  %vm1019 = vcmp.eq.s32.totalorder %v1017, 0
  %v1020 = vxor.u32 %v1014, 2147483648
  %v1021 = vsel %vm1019, %v1013, %v1020
  %vm1022 = vcmp.eq.s32.totalorder %v1017, 2
  %v1023 = vxor.u32 %v1013, 2147483648
  %v1024 = vsel %vm1022, %v1023, %v1014
  %v1025 = vsel %vm1018, %v1021, %v1024
  %v1026 = vsel %vm1015, nan, %v1025
  %v1027 = vand.u32 2147483647, %v171
  %vm1028 = vcmp.le.f32.partialorder %v1027, 0.7853982
  %vm1029 = vcmp.lt.s32.totalorder %v171, 0
  %v1030 = vand.u32 %v171, 2139095040
  %v1031 = vshrl.u32 %v1030, 23
  %v1032 = vsub.s32 %v1031, 127
  %v1033 = vand.u32 2147483647, %v171
  %v1034 = vand.u32 %v1033, 8388607
  %v1035 = vor.u32 %v1034, 8388608
  %v1036 = vsub.s32 0, %v1035
  %v1037 = vadd.s32 %v1032, 1
  %vm1038 = vcmp.gt.s32.totalorder %v1037, 0
  %v1039 = vsel %vm1038, %v1037, 0
  %v1040 = vshrl.u32 %v1039, 5
  %v1041 = vand.u32 %v1039, 31
  %v1042 = vsub.s32 32, %v1041
  %v1043 = vshrl.u32 683565275, %v1042
  %v1044 = vshll.u32 683565275, %v1041
  %v1045 = vshrl.u32 2475754826, %v1042
  %v1046 = vor.u32 %v1044, %v1045
  %v1047 = vshll.u32 2475754826, %v1041
  %v1048 = vshrl.u32 2131351028, %v1042
  %v1049 = vor.u32 %v1047, %v1048
  %v1050 = vshll.u32 2131351028, %v1041
  %v1051 = vshrl.u32 2102212464, %v1042
  %v1052 = vor.u32 %v1050, %v1051
  %v1053 = vshll.u32 2102212464, %v1041
  %v1054 = vshrl.u32 920167782, %v1042
  %v1055 = vor.u32 %v1053, %v1054
  %v1056 = vshll.u32 920167782, %v1041
  %v1057 = vshrl.u32 1326507024, %v1042
  %v1058 = vor.u32 %v1056, %v1057
  %vm1059 = vcmp.lt.s32.totalorder %v1040, 1
  %vm1060 = vcmp.lt.s32.totalorder %v1040, 2
  %vm1061 = vcmp.lt.s32.totalorder %v1040, 3
  %vm1062 = vcmp.lt.s32.totalorder %v1040, 4
  %v1063 = vsel %vm1059, %v1043, %v1046
  %v1064 = vsel %vm1062, %v1052, 2102212464
  %v1065 = vsel %vm1061, %v1049, %v1064
  %v1066 = vsel %vm1060, %v1063, %v1065
  %v1067 = vsel %vm1059, %v1046, %v1049
  %v1068 = vsel %vm1062, %v1055, 920167782
  %v1069 = vsel %vm1061, %v1052, %v1068
  %v1070 = vsel %vm1060, %v1067, %v1069
  %v1071 = vsel %vm1059, %v1049, %v1052
  %v1072 = vsel %vm1062, %v1058, 1326507024
  %v1073 = vsel %vm1061, %v1055, %v1072
  %v1074 = vsel %vm1060, %v1071, %v1073
  %v1075 = vshll.u32 %v1035, 8
  %v1076 = vmul.u32.u64.compose %v1075, %v1074
  %v1077 = vextract.low.u32 %v1076
  %v1078 = vextract.high.u32 %v1076
  %v1079 = vmul.u32.u64.compose %v1075, %v1070
  %v1080 = vextract.low.u32 %v1079
  %v1081 = vextract.high.u32 %v1079
  %v1082 = vmul.u32 %v1075, %v1066
  %v1083 = vadd.s32 %v1078, %v1080
  %vm1084 = vc.u32 %v1078, %v1080
  %v1085 = vadd.s32 %v1081, 1
  %v1086 = vsel %vm1084, %v1085, %v1081
  %v1087 = vadd.s32 %v1082, %v1086
  %v1088 = vadd.s32 %v1087, 536870912
  %v1089 = vshrl.u32 %v1088, 30
  %v1090 = vshll.u32 %v1089, 30
  %v1091 = vsub.s32 %v1087, %v1090
  %vm1092 = vcmp.lt.s32.totalorder %v1091, 0
  %v1093 = vsub.s32 0, %v1091
  %v1094 = vsel %vm1092, %v1093, %v1091
  %v1095 = vclz %v1094
  %v1096 = vsub.s32 %v1095, 2
  %vm1097 = vcmp.gt.s32.totalorder 0, %v1096
  %v1098 = vsel %vm1097, 0, %v1096
  %v1099 = vsub.s32 32, %v1098
  %v1100 = vshll.u32 %v1091, %v1098
  %v1101 = vshrl.u32 %v1083, %v1099
  %v1102 = vor.u32 %v1100, %v1101
  %v1103 = vsub.s32 4294967266, %v1098
  %v1104 = vadd.s32 %v1103, 127
  %v1105 = vshll.u32 %v1104, 23
  %v1106 = vor.u32 4788187, %v1105
  %v1107 = vand.u32 2147483647, %v1106
  %v1109 = vcvt.s32.f32 %v1102
  %v1110 = vmul.f32 %v1109, %v1107
  %v1111 = vxor.u32 %v1110, 2147483648
  %v1112 = vsel %vm1029, %v1111, %v1110
  %v1113 = vsub.s32 4, %v1089
  %v1114 = vsel %vm1029, %v1113, %v1089
  %v1115 = vsel %vm1028, %v171, %v1112
  %v1116 = vsel %vm1028, 0, %v1114
  %v1117 = vcosq.f32.pop %v1115
  %v1118 = vsinq.f32.pop %v1115
  %vm1119 = vweird.f32 %v171
  %v1120 = vadd.s32 %v1116, 3
  %v1121 = vand.u32 %v1120, 3
  %vm1122 = vcmp.lt.s32.totalorder %v1121, 2
  %vm1123 = vcmp.eq.s32.totalorder %v1121, 0
  %v1124 = vxor.u32 %v1118, 2147483648
  %v1125 = vsel %vm1123, %v1117, %v1124
  %vm1126 = vcmp.eq.s32.totalorder %v1121, 2
  %v1127 = vxor.u32 %v1117, 2147483648
  %v1128 = vsel %vm1126, %v1127, %v1118
  %v1129 = vsel %vm1122, %v1125, %v1128
  %v1130 = vsel %vm1119, nan, %v1129
  %v1131 = vand.u32 2147483647, %v172
  %vm1132 = vcmp.le.f32.partialorder %v1131, 0.7853982
  %vm1133 = vcmp.lt.s32.totalorder %v172, 0
  %v1134 = vand.u32 %v172, 2139095040
  %v1135 = vshrl.u32 %v1134, 23
  %v1136 = vsub.s32 %v1135, 127
  %v1137 = vand.u32 2147483647, %v172
  %v1138 = vand.u32 %v1137, 8388607
  %v1139 = vor.u32 %v1138, 8388608
  %v1140 = vsub.s32 0, %v1139
  %v1141 = vadd.s32 %v1136, 1
  %vm1142 = vcmp.gt.s32.totalorder %v1141, 0
  %v1143 = vsel %vm1142, %v1141, 0
  %v1144 = vshrl.u32 %v1143, 5
  %v1145 = vand.u32 %v1143, 31
  %v1146 = vsub.s32 32, %v1145
  %v1147 = vshrl.u32 683565275, %v1146
  %v1148 = vshll.u32 683565275, %v1145
  %v1149 = vshrl.u32 2475754826, %v1146
  %v1150 = vor.u32 %v1148, %v1149
  %v1151 = vshll.u32 2475754826, %v1145
  %v1152 = vshrl.u32 2131351028, %v1146
  %v1153 = vor.u32 %v1151, %v1152
  %v1154 = vshll.u32 2131351028, %v1145
  %v1155 = vshrl.u32 2102212464, %v1146
  %v1156 = vor.u32 %v1154, %v1155
  %v1157 = vshll.u32 2102212464, %v1145
  %v1158 = vshrl.u32 920167782, %v1146
  %v1159 = vor.u32 %v1157, %v1158
  %v1160 = vshll.u32 920167782, %v1145
  %v1161 = vshrl.u32 1326507024, %v1146
  %v1162 = vor.u32 %v1160, %v1161
  %vm1163 = vcmp.lt.s32.totalorder %v1144, 1
  %vm1164 = vcmp.lt.s32.totalorder %v1144, 2
  %vm1165 = vcmp.lt.s32.totalorder %v1144, 3
  %vm1166 = vcmp.lt.s32.totalorder %v1144, 4
  %v1167 = vsel %vm1163, %v1147, %v1150
  %v1168 = vsel %vm1166, %v1156, 2102212464
  %v1169 = vsel %vm1165, %v1153, %v1168
  %v1170 = vsel %vm1164, %v1167, %v1169
  %v1171 = vsel %vm1163, %v1150, %v1153
  %v1172 = vsel %vm1166, %v1159, 920167782
  %v1173 = vsel %vm1165, %v1156, %v1172
  %v1174 = vsel %vm1164, %v1171, %v1173
  %v1175 = vsel %vm1163, %v1153, %v1156
  %v1176 = vsel %vm1166, %v1162, 1326507024
  %v1177 = vsel %vm1165, %v1159, %v1176
  %v1178 = vsel %vm1164, %v1175, %v1177
  %v1179 = vshll.u32 %v1139, 8
  %v1180 = vmul.u32.u64.compose %v1179, %v1178
  %v1181 = vextract.low.u32 %v1180
  %v1182 = vextract.high.u32 %v1180
  %v1183 = vmul.u32.u64.compose %v1179, %v1174
  %v1184 = vextract.low.u32 %v1183
  %v1185 = vextract.high.u32 %v1183
  %v1186 = vmul.u32 %v1179, %v1170
  %v1187 = vadd.s32 %v1182, %v1184
  %vm1188 = vc.u32 %v1182, %v1184
  %v1189 = vadd.s32 %v1185, 1
  %v1190 = vsel %vm1188, %v1189, %v1185
  %v1191 = vadd.s32 %v1186, %v1190
  %v1192 = vadd.s32 %v1191, 536870912
  %v1193 = vshrl.u32 %v1192, 30
  %v1194 = vshll.u32 %v1193, 30
  %v1195 = vsub.s32 %v1191, %v1194
  %vm1196 = vcmp.lt.s32.totalorder %v1195, 0
  %v1197 = vsub.s32 0, %v1195
  %v1198 = vsel %vm1196, %v1197, %v1195
  %v1199 = vclz %v1198
  %v1200 = vsub.s32 %v1199, 2
  %vm1201 = vcmp.gt.s32.totalorder 0, %v1200
  %v1202 = vsel %vm1201, 0, %v1200
  %v1203 = vsub.s32 32, %v1202
  %v1204 = vshll.u32 %v1195, %v1202
  %v1205 = vshrl.u32 %v1187, %v1203
  %v1206 = vor.u32 %v1204, %v1205
  %v1207 = vsub.s32 4294967266, %v1202
  %v1208 = vadd.s32 %v1207, 127
  %v1209 = vshll.u32 %v1208, 23
  %v1210 = vor.u32 4788187, %v1209
  %v1211 = vand.u32 2147483647, %v1210
  %v1213 = vcvt.s32.f32 %v1206
  %v1214 = vmul.f32 %v1213, %v1211
  %v1215 = vxor.u32 %v1214, 2147483648
  %v1216 = vsel %vm1133, %v1215, %v1214
  %v1217 = vsub.s32 4, %v1193
  %v1218 = vsel %vm1133, %v1217, %v1193
  %v1219 = vsel %vm1132, %v172, %v1216
  %v1220 = vsel %vm1132, 0, %v1218
  %v1221 = vcosq.f32.pop %v1219
  %v1222 = vsinq.f32.pop %v1219
  %vm1223 = vweird.f32 %v172
  %v1224 = vadd.s32 %v1220, 3
  %v1225 = vand.u32 %v1224, 3
  %vm1226 = vcmp.lt.s32.totalorder %v1225, 2
  %vm1227 = vcmp.eq.s32.totalorder %v1225, 0
  %v1228 = vxor.u32 %v1222, 2147483648
  %v1229 = vsel %vm1227, %v1221, %v1228
  %vm1230 = vcmp.eq.s32.totalorder %v1225, 2
  %v1231 = vxor.u32 %v1221, 2147483648
  %v1232 = vsel %vm1230, %v1231, %v1222
  %v1233 = vsel %vm1226, %v1229, %v1232
  %v1234 = vsel %vm1223, nan, %v1233
  %v1235 = vand.u32 2147483647, %v173
  %vm1236 = vcmp.le.f32.partialorder %v1235, 0.7853982
  %vm1237 = vcmp.lt.s32.totalorder %v173, 0
  %v1238 = vand.u32 %v173, 2139095040
  %v1239 = vshrl.u32 %v1238, 23
  %v1240 = vsub.s32 %v1239, 127
  %v1241 = vand.u32 2147483647, %v173
  %v1242 = vand.u32 %v1241, 8388607
  %v1243 = vor.u32 %v1242, 8388608
  %v1244 = vsub.s32 0, %v1243
  %v1245 = vadd.s32 %v1240, 1
  %vm1246 = vcmp.gt.s32.totalorder %v1245, 0
  %v1247 = vsel %vm1246, %v1245, 0
  %v1248 = vshrl.u32 %v1247, 5
  %v1249 = vand.u32 %v1247, 31
  %v1250 = vsub.s32 32, %v1249
  %v1251 = vshrl.u32 683565275, %v1250
  %v1252 = vshll.u32 683565275, %v1249
  %v1253 = vshrl.u32 2475754826, %v1250
  %v1254 = vor.u32 %v1252, %v1253
  %v1255 = vshll.u32 2475754826, %v1249
  %v1256 = vshrl.u32 2131351028, %v1250
  %v1257 = vor.u32 %v1255, %v1256
  %v1258 = vshll.u32 2131351028, %v1249
  %v1259 = vshrl.u32 2102212464, %v1250
  %v1260 = vor.u32 %v1258, %v1259
  %v1261 = vshll.u32 2102212464, %v1249
  %v1262 = vshrl.u32 920167782, %v1250
  %v1263 = vor.u32 %v1261, %v1262
  %v1264 = vshll.u32 920167782, %v1249
  %v1265 = vshrl.u32 1326507024, %v1250
  %v1266 = vor.u32 %v1264, %v1265
  %vm1267 = vcmp.lt.s32.totalorder %v1248, 1
  %vm1268 = vcmp.lt.s32.totalorder %v1248, 2
  %vm1269 = vcmp.lt.s32.totalorder %v1248, 3
  %vm1270 = vcmp.lt.s32.totalorder %v1248, 4
  %v1271 = vsel %vm1267, %v1251, %v1254
  %v1272 = vsel %vm1270, %v1260, 2102212464
  %v1273 = vsel %vm1269, %v1257, %v1272
  %v1274 = vsel %vm1268, %v1271, %v1273
  %v1275 = vsel %vm1267, %v1254, %v1257
  %v1276 = vsel %vm1270, %v1263, 920167782
  %v1277 = vsel %vm1269, %v1260, %v1276
  %v1278 = vsel %vm1268, %v1275, %v1277
  %v1279 = vsel %vm1267, %v1257, %v1260
  %v1280 = vsel %vm1270, %v1266, 1326507024
  %v1281 = vsel %vm1269, %v1263, %v1280
  %v1282 = vsel %vm1268, %v1279, %v1281
  %v1283 = vshll.u32 %v1243, 8
  %v1284 = vmul.u32.u64.compose %v1283, %v1282
  %v1285 = vextract.low.u32 %v1284
  %v1286 = vextract.high.u32 %v1284
  %v1287 = vmul.u32.u64.compose %v1283, %v1278
  %v1288 = vextract.low.u32 %v1287
  %v1289 = vextract.high.u32 %v1287
  %v1290 = vmul.u32 %v1283, %v1274
  %v1291 = vadd.s32 %v1286, %v1288
  %vm1292 = vc.u32 %v1286, %v1288
  %v1293 = vadd.s32 %v1289, 1
  %v1294 = vsel %vm1292, %v1293, %v1289
  %v1295 = vadd.s32 %v1290, %v1294
  %v1296 = vadd.s32 %v1295, 536870912
  %v1297 = vshrl.u32 %v1296, 30
  %v1298 = vshll.u32 %v1297, 30
  %v1299 = vsub.s32 %v1295, %v1298
  %vm1300 = vcmp.lt.s32.totalorder %v1299, 0
  %v1301 = vsub.s32 0, %v1299
  %v1302 = vsel %vm1300, %v1301, %v1299
  %v1303 = vclz %v1302
  %v1304 = vsub.s32 %v1303, 2
  %vm1305 = vcmp.gt.s32.totalorder 0, %v1304
  %v1306 = vsel %vm1305, 0, %v1304
  %v1307 = vsub.s32 32, %v1306
  %v1308 = vshll.u32 %v1299, %v1306
  %v1309 = vshrl.u32 %v1291, %v1307
  %v1310 = vor.u32 %v1308, %v1309
  %v1311 = vsub.s32 4294967266, %v1306
  %v1312 = vadd.s32 %v1311, 127
  %v1313 = vshll.u32 %v1312, 23
  %v1314 = vor.u32 4788187, %v1313
  %v1315 = vand.u32 2147483647, %v1314
  %v1317 = vcvt.s32.f32 %v1310
  %v1318 = vmul.f32 %v1317, %v1315
  %v1319 = vxor.u32 %v1318, 2147483648
  %v1320 = vsel %vm1237, %v1319, %v1318
  %v1321 = vsub.s32 4, %v1297
  %v1322 = vsel %vm1237, %v1321, %v1297
  %v1323 = vsel %vm1236, %v173, %v1320
  %v1324 = vsel %vm1236, 0, %v1322
  %v1325 = vcosq.f32.pop %v1323
  %v1326 = vsinq.f32.pop %v1323
  %vm1327 = vweird.f32 %v173
  %v1328 = vadd.s32 %v1324, 3
  %v1329 = vand.u32 %v1328, 3
  %vm1330 = vcmp.lt.s32.totalorder %v1329, 2
  %vm1331 = vcmp.eq.s32.totalorder %v1329, 0
  %v1332 = vxor.u32 %v1326, 2147483648
  %v1333 = vsel %vm1331, %v1325, %v1332
  %vm1334 = vcmp.eq.s32.totalorder %v1329, 2
  %v1335 = vxor.u32 %v1325, 2147483648
  %v1336 = vsel %vm1334, %v1335, %v1326
  %v1337 = vsel %vm1330, %v1333, %v1336
  %v1338 = vsel %vm1327, nan, %v1337
  %v1339 = vand.u32 2147483647, %v174
  %vm1340 = vcmp.le.f32.partialorder %v1339, 0.7853982
  %vm1341 = vcmp.lt.s32.totalorder %v174, 0
  %v1342 = vand.u32 %v174, 2139095040
  %v1343 = vshrl.u32 %v1342, 23
  %v1344 = vsub.s32 %v1343, 127
  %v1345 = vand.u32 2147483647, %v174
  %v1346 = vand.u32 %v1345, 8388607
  %v1347 = vor.u32 %v1346, 8388608
  %v1348 = vsub.s32 0, %v1347
  %v1349 = vadd.s32 %v1344, 1
  %vm1350 = vcmp.gt.s32.totalorder %v1349, 0
  %v1351 = vsel %vm1350, %v1349, 0
  %v1352 = vshrl.u32 %v1351, 5
  %v1353 = vand.u32 %v1351, 31
  %v1354 = vsub.s32 32, %v1353
  %v1355 = vshrl.u32 683565275, %v1354
  %v1356 = vshll.u32 683565275, %v1353
  %v1357 = vshrl.u32 2475754826, %v1354
  %v1358 = vor.u32 %v1356, %v1357
  %v1359 = vshll.u32 2475754826, %v1353
  %v1360 = vshrl.u32 2131351028, %v1354
  %v1361 = vor.u32 %v1359, %v1360
  %v1362 = vshll.u32 2131351028, %v1353
  %v1363 = vshrl.u32 2102212464, %v1354
  %v1364 = vor.u32 %v1362, %v1363
  %v1365 = vshll.u32 2102212464, %v1353
  %v1366 = vshrl.u32 920167782, %v1354
  %v1367 = vor.u32 %v1365, %v1366
  %v1368 = vshll.u32 920167782, %v1353
  %v1369 = vshrl.u32 1326507024, %v1354
  %v1370 = vor.u32 %v1368, %v1369
  %vm1371 = vcmp.lt.s32.totalorder %v1352, 1
  %vm1372 = vcmp.lt.s32.totalorder %v1352, 2
  %vm1373 = vcmp.lt.s32.totalorder %v1352, 3
  %vm1374 = vcmp.lt.s32.totalorder %v1352, 4
  %v1375 = vsel %vm1371, %v1355, %v1358
  %v1376 = vsel %vm1374, %v1364, 2102212464
  %v1377 = vsel %vm1373, %v1361, %v1376
  %v1378 = vsel %vm1372, %v1375, %v1377
  %v1379 = vsel %vm1371, %v1358, %v1361
  %v1380 = vsel %vm1374, %v1367, 920167782
  %v1381 = vsel %vm1373, %v1364, %v1380
  %v1382 = vsel %vm1372, %v1379, %v1381
  %v1383 = vsel %vm1371, %v1361, %v1364
  %v1384 = vsel %vm1374, %v1370, 1326507024
  %v1385 = vsel %vm1373, %v1367, %v1384
  %v1386 = vsel %vm1372, %v1383, %v1385
  %v1387 = vshll.u32 %v1347, 8
  %v1388 = vmul.u32.u64.compose %v1387, %v1386
  %v1389 = vextract.low.u32 %v1388
  %v1390 = vextract.high.u32 %v1388
  %v1391 = vmul.u32.u64.compose %v1387, %v1382
  %v1392 = vextract.low.u32 %v1391
  %v1393 = vextract.high.u32 %v1391
  %v1394 = vmul.u32 %v1387, %v1378
  %v1395 = vadd.s32 %v1390, %v1392
  %vm1396 = vc.u32 %v1390, %v1392
  %v1397 = vadd.s32 %v1393, 1
  %v1398 = vsel %vm1396, %v1397, %v1393
  %v1399 = vadd.s32 %v1394, %v1398
  %v1400 = vadd.s32 %v1399, 536870912
  %v1401 = vshrl.u32 %v1400, 30
  %v1402 = vshll.u32 %v1401, 30
  %v1403 = vsub.s32 %v1399, %v1402
  %vm1404 = vcmp.lt.s32.totalorder %v1403, 0
  %v1405 = vsub.s32 0, %v1403
  %v1406 = vsel %vm1404, %v1405, %v1403
  %v1407 = vclz %v1406
  %v1408 = vsub.s32 %v1407, 2
  %vm1409 = vcmp.gt.s32.totalorder 0, %v1408
  %v1410 = vsel %vm1409, 0, %v1408
  %v1411 = vsub.s32 32, %v1410
  %v1412 = vshll.u32 %v1403, %v1410
  %v1413 = vshrl.u32 %v1395, %v1411
  %v1414 = vor.u32 %v1412, %v1413
  %v1415 = vsub.s32 4294967266, %v1410
  %v1416 = vadd.s32 %v1415, 127
  %v1417 = vshll.u32 %v1416, 23
  %v1418 = vor.u32 4788187, %v1417
  %v1419 = vand.u32 2147483647, %v1418
  %v1421 = vcvt.s32.f32 %v1414
  %v1422 = vmul.f32 %v1421, %v1419
  %v1423 = vxor.u32 %v1422, 2147483648
  %v1424 = vsel %vm1341, %v1423, %v1422
  %v1425 = vsub.s32 4, %v1401
  %v1426 = vsel %vm1341, %v1425, %v1401
  %v1427 = vsel %vm1340, %v174, %v1424
  %v1428 = vsel %vm1340, 0, %v1426
  %v1429 = vcosq.f32.pop %v1427
  %v1430 = vsinq.f32.pop %v1427
  %vm1431 = vweird.f32 %v174
  %v1432 = vadd.s32 %v1428, 3
  %v1433 = vand.u32 %v1432, 3
  %vm1434 = vcmp.lt.s32.totalorder %v1433, 2
  %vm1435 = vcmp.eq.s32.totalorder %v1433, 0
  %v1436 = vxor.u32 %v1430, 2147483648
  %v1437 = vsel %vm1435, %v1429, %v1436
  %vm1438 = vcmp.eq.s32.totalorder %v1433, 2
  %v1439 = vxor.u32 %v1429, 2147483648
  %v1440 = vsel %vm1438, %v1439, %v1430
  %v1441 = vsel %vm1434, %v1437, %v1440
  %v1442 = vsel %vm1431, nan, %v1441
  %v1443 = vand.u32 2147483647, %v175
  %vm1444 = vcmp.le.f32.partialorder %v1443, 0.7853982
  %vm1445 = vcmp.lt.s32.totalorder %v175, 0
  %v1446 = vand.u32 %v175, 2139095040
  %v1447 = vshrl.u32 %v1446, 23
  %v1448 = vsub.s32 %v1447, 127
  %v1449 = vand.u32 2147483647, %v175
  %v1450 = vand.u32 %v1449, 8388607
  %v1451 = vor.u32 %v1450, 8388608
  %v1452 = vsub.s32 0, %v1451
  %v1453 = vadd.s32 %v1448, 1
  %vm1454 = vcmp.gt.s32.totalorder %v1453, 0
  %v1455 = vsel %vm1454, %v1453, 0
  %v1456 = vshrl.u32 %v1455, 5
  %v1457 = vand.u32 %v1455, 31
  %v1458 = vsub.s32 32, %v1457
  %v1459 = vshrl.u32 683565275, %v1458
  %v1460 = vshll.u32 683565275, %v1457
  %v1461 = vshrl.u32 2475754826, %v1458
  %v1462 = vor.u32 %v1460, %v1461
  %v1463 = vshll.u32 2475754826, %v1457
  %v1464 = vshrl.u32 2131351028, %v1458
  %v1465 = vor.u32 %v1463, %v1464
  %v1466 = vshll.u32 2131351028, %v1457
  %v1467 = vshrl.u32 2102212464, %v1458
  %v1468 = vor.u32 %v1466, %v1467
  %v1469 = vshll.u32 2102212464, %v1457
  %v1470 = vshrl.u32 920167782, %v1458
  %v1471 = vor.u32 %v1469, %v1470
  %v1472 = vshll.u32 920167782, %v1457
  %v1473 = vshrl.u32 1326507024, %v1458
  %v1474 = vor.u32 %v1472, %v1473
  %vm1475 = vcmp.lt.s32.totalorder %v1456, 1
  %vm1476 = vcmp.lt.s32.totalorder %v1456, 2
  %vm1477 = vcmp.lt.s32.totalorder %v1456, 3
  %vm1478 = vcmp.lt.s32.totalorder %v1456, 4
  %v1479 = vsel %vm1475, %v1459, %v1462
  %v1480 = vsel %vm1478, %v1468, 2102212464
  %v1481 = vsel %vm1477, %v1465, %v1480
  %v1482 = vsel %vm1476, %v1479, %v1481
  %v1483 = vsel %vm1475, %v1462, %v1465
  %v1484 = vsel %vm1478, %v1471, 920167782
  %v1485 = vsel %vm1477, %v1468, %v1484
  %v1486 = vsel %vm1476, %v1483, %v1485
  %v1487 = vsel %vm1475, %v1465, %v1468
  %v1488 = vsel %vm1478, %v1474, 1326507024
  %v1489 = vsel %vm1477, %v1471, %v1488
  %v1490 = vsel %vm1476, %v1487, %v1489
  %v1491 = vshll.u32 %v1451, 8
  %v1492 = vmul.u32.u64.compose %v1491, %v1490
  %v1493 = vextract.low.u32 %v1492
  %v1494 = vextract.high.u32 %v1492
  %v1495 = vmul.u32.u64.compose %v1491, %v1486
  %v1496 = vextract.low.u32 %v1495
  %v1497 = vextract.high.u32 %v1495
  %v1498 = vmul.u32 %v1491, %v1482
  %v1499 = vadd.s32 %v1494, %v1496
  %vm1500 = vc.u32 %v1494, %v1496
  %v1501 = vadd.s32 %v1497, 1
  %v1502 = vsel %vm1500, %v1501, %v1497
  %v1503 = vadd.s32 %v1498, %v1502
  %v1504 = vadd.s32 %v1503, 536870912
  %v1505 = vshrl.u32 %v1504, 30
  %v1506 = vshll.u32 %v1505, 30
  %v1507 = vsub.s32 %v1503, %v1506
  %vm1508 = vcmp.lt.s32.totalorder %v1507, 0
  %v1509 = vsub.s32 0, %v1507
  %v1510 = vsel %vm1508, %v1509, %v1507
  %v1511 = vclz %v1510
  %v1512 = vsub.s32 %v1511, 2
  %vm1513 = vcmp.gt.s32.totalorder 0, %v1512
  %v1514 = vsel %vm1513, 0, %v1512
  %v1515 = vsub.s32 32, %v1514
  %v1516 = vshll.u32 %v1507, %v1514
  %v1517 = vshrl.u32 %v1499, %v1515
  %v1518 = vor.u32 %v1516, %v1517
  %v1519 = vsub.s32 4294967266, %v1514
  %v1520 = vadd.s32 %v1519, 127
  %v1521 = vshll.u32 %v1520, 23
  %v1522 = vor.u32 4788187, %v1521
  %v1523 = vand.u32 2147483647, %v1522
  %v1525 = vcvt.s32.f32 %v1518
  %v1526 = vmul.f32 %v1525, %v1523
  %v1527 = vxor.u32 %v1526, 2147483648
  %v1528 = vsel %vm1445, %v1527, %v1526
  %v1529 = vsub.s32 4, %v1505
  %v1530 = vsel %vm1445, %v1529, %v1505
  %v1531 = vsel %vm1444, %v175, %v1528
  %v1532 = vsel %vm1444, 0, %v1530
  %v1533 = vcosq.f32.pop %v1531
  %v1534 = vsinq.f32.pop %v1531
  %vm1535 = vweird.f32 %v175
  %v1536 = vadd.s32 %v1532, 3
  %v1537 = vand.u32 %v1536, 3
  %vm1538 = vcmp.lt.s32.totalorder %v1537, 2
  %vm1539 = vcmp.eq.s32.totalorder %v1537, 0
  %v1540 = vxor.u32 %v1534, 2147483648
  %v1541 = vsel %vm1539, %v1533, %v1540
  %vm1542 = vcmp.eq.s32.totalorder %v1537, 2
  %v1543 = vxor.u32 %v1533, 2147483648
  %v1544 = vsel %vm1542, %v1543, %v1534
  %v1545 = vsel %vm1538, %v1541, %v1544
  %v1546 = vsel %vm1535, nan, %v1545
  %v1547 = vand.u32 2147483647, %v176
  %vm1548 = vcmp.le.f32.partialorder %v1547, 0.7853982
  %vm1549 = vcmp.lt.s32.totalorder %v176, 0
  %v1550 = vand.u32 %v176, 2139095040
  %v1551 = vshrl.u32 %v1550, 23
  %v1552 = vsub.s32 %v1551, 127
  %v1553 = vand.u32 2147483647, %v176
  %v1554 = vand.u32 %v1553, 8388607
  %v1555 = vor.u32 %v1554, 8388608
  %v1556 = vsub.s32 0, %v1555
  %v1557 = vadd.s32 %v1552, 1
  %vm1558 = vcmp.gt.s32.totalorder %v1557, 0
  %v1559 = vsel %vm1558, %v1557, 0
  %v1560 = vshrl.u32 %v1559, 5
  %v1561 = vand.u32 %v1559, 31
  %v1562 = vsub.s32 32, %v1561
  %v1563 = vshrl.u32 683565275, %v1562
  %v1564 = vshll.u32 683565275, %v1561
  %v1565 = vshrl.u32 2475754826, %v1562
  %v1566 = vor.u32 %v1564, %v1565
  %v1567 = vshll.u32 2475754826, %v1561
  %v1568 = vshrl.u32 2131351028, %v1562
  %v1569 = vor.u32 %v1567, %v1568
  %v1570 = vshll.u32 2131351028, %v1561
  %v1571 = vshrl.u32 2102212464, %v1562
  %v1572 = vor.u32 %v1570, %v1571
  %v1573 = vshll.u32 2102212464, %v1561
  %v1574 = vshrl.u32 920167782, %v1562
  %v1575 = vor.u32 %v1573, %v1574
  %v1576 = vshll.u32 920167782, %v1561
  %v1577 = vshrl.u32 1326507024, %v1562
  %v1578 = vor.u32 %v1576, %v1577
  %vm1579 = vcmp.lt.s32.totalorder %v1560, 1
  %vm1580 = vcmp.lt.s32.totalorder %v1560, 2
  %vm1581 = vcmp.lt.s32.totalorder %v1560, 3
  %vm1582 = vcmp.lt.s32.totalorder %v1560, 4
  %v1583 = vsel %vm1579, %v1563, %v1566
  %v1584 = vsel %vm1582, %v1572, 2102212464
  %v1585 = vsel %vm1581, %v1569, %v1584
  %v1586 = vsel %vm1580, %v1583, %v1585
  %v1587 = vsel %vm1579, %v1566, %v1569
  %v1588 = vsel %vm1582, %v1575, 920167782
  %v1589 = vsel %vm1581, %v1572, %v1588
  %v1590 = vsel %vm1580, %v1587, %v1589
  %v1591 = vsel %vm1579, %v1569, %v1572
  %v1592 = vsel %vm1582, %v1578, 1326507024
  %v1593 = vsel %vm1581, %v1575, %v1592
  %v1594 = vsel %vm1580, %v1591, %v1593
  %v1595 = vshll.u32 %v1555, 8
  %v1596 = vmul.u32.u64.compose %v1595, %v1594
  %v1597 = vextract.low.u32 %v1596
  %v1598 = vextract.high.u32 %v1596
  %v1599 = vmul.u32.u64.compose %v1595, %v1590
  %v1600 = vextract.low.u32 %v1599
  %v1601 = vextract.high.u32 %v1599
  %v1602 = vmul.u32 %v1595, %v1586
  %v1603 = vadd.s32 %v1598, %v1600
  %vm1604 = vc.u32 %v1598, %v1600
  %v1605 = vadd.s32 %v1601, 1
  %v1606 = vsel %vm1604, %v1605, %v1601
  %v1607 = vadd.s32 %v1602, %v1606
  %v1608 = vadd.s32 %v1607, 536870912
  %v1609 = vshrl.u32 %v1608, 30
  %v1610 = vshll.u32 %v1609, 30
  %v1611 = vsub.s32 %v1607, %v1610
  %vm1612 = vcmp.lt.s32.totalorder %v1611, 0
  %v1613 = vsub.s32 0, %v1611
  %v1614 = vsel %vm1612, %v1613, %v1611
  %v1615 = vclz %v1614
  %v1616 = vsub.s32 %v1615, 2
  %vm1617 = vcmp.gt.s32.totalorder 0, %v1616
  %v1618 = vsel %vm1617, 0, %v1616
  %v1619 = vsub.s32 32, %v1618
  %v1620 = vshll.u32 %v1611, %v1618
  %v1621 = vshrl.u32 %v1603, %v1619
  %v1622 = vor.u32 %v1620, %v1621
  %v1623 = vsub.s32 4294967266, %v1618
  %v1624 = vadd.s32 %v1623, 127
  %v1625 = vshll.u32 %v1624, 23
  %v1626 = vor.u32 4788187, %v1625
  %v1627 = vand.u32 2147483647, %v1626
  %v1629 = vcvt.s32.f32 %v1622
  %v1630 = vmul.f32 %v1629, %v1627
  %v1631 = vxor.u32 %v1630, 2147483648
  %v1632 = vsel %vm1549, %v1631, %v1630
  %v1633 = vsub.s32 4, %v1609
  %v1634 = vsel %vm1549, %v1633, %v1609
  %v1635 = vsel %vm1548, %v176, %v1632
  %v1636 = vsel %vm1548, 0, %v1634
  %v1637 = vcosq.f32.pop %v1635
  %v1638 = vsinq.f32.pop %v1635
  %vm1639 = vweird.f32 %v176
  %v1640 = vadd.s32 %v1636, 3
  %v1641 = vand.u32 %v1640, 3
  %vm1642 = vcmp.lt.s32.totalorder %v1641, 2
  %vm1643 = vcmp.eq.s32.totalorder %v1641, 0
  %v1644 = vxor.u32 %v1638, 2147483648
  %v1645 = vsel %vm1643, %v1637, %v1644
  %vm1646 = vcmp.eq.s32.totalorder %v1641, 2
  %v1647 = vxor.u32 %v1637, 2147483648
  %v1648 = vsel %vm1646, %v1647, %v1638
  %v1649 = vsel %vm1642, %v1645, %v1648
  %v1650 = vsel %vm1639, nan, %v1649
  %v1651 = vand.u32 2147483647, %v177
  %vm1652 = vcmp.le.f32.partialorder %v1651, 0.7853982
  %vm1653 = vcmp.lt.s32.totalorder %v177, 0
  %v1654 = vand.u32 %v177, 2139095040
  %v1655 = vshrl.u32 %v1654, 23
  %v1656 = vsub.s32 %v1655, 127
  %v1657 = vand.u32 2147483647, %v177
  %v1658 = vand.u32 %v1657, 8388607
  %v1659 = vor.u32 %v1658, 8388608
  %v1660 = vsub.s32 0, %v1659
  %v1661 = vadd.s32 %v1656, 1
  %vm1662 = vcmp.gt.s32.totalorder %v1661, 0
  %v1663 = vsel %vm1662, %v1661, 0
  %v1664 = vshrl.u32 %v1663, 5
  %v1665 = vand.u32 %v1663, 31
  %v1666 = vsub.s32 32, %v1665
  %v1667 = vshrl.u32 683565275, %v1666
  %v1668 = vshll.u32 683565275, %v1665
  %v1669 = vshrl.u32 2475754826, %v1666
  %v1670 = vor.u32 %v1668, %v1669
  %v1671 = vshll.u32 2475754826, %v1665
  %v1672 = vshrl.u32 2131351028, %v1666
  %v1673 = vor.u32 %v1671, %v1672
  %v1674 = vshll.u32 2131351028, %v1665
  %v1675 = vshrl.u32 2102212464, %v1666
  %v1676 = vor.u32 %v1674, %v1675
  %v1677 = vshll.u32 2102212464, %v1665
  %v1678 = vshrl.u32 920167782, %v1666
  %v1679 = vor.u32 %v1677, %v1678
  %v1680 = vshll.u32 920167782, %v1665
  %v1681 = vshrl.u32 1326507024, %v1666
  %v1682 = vor.u32 %v1680, %v1681
  %vm1683 = vcmp.lt.s32.totalorder %v1664, 1
  %vm1684 = vcmp.lt.s32.totalorder %v1664, 2
  %vm1685 = vcmp.lt.s32.totalorder %v1664, 3
  %vm1686 = vcmp.lt.s32.totalorder %v1664, 4
  %v1687 = vsel %vm1683, %v1667, %v1670
  %v1688 = vsel %vm1686, %v1676, 2102212464
  %v1689 = vsel %vm1685, %v1673, %v1688
  %v1690 = vsel %vm1684, %v1687, %v1689
  %v1691 = vsel %vm1683, %v1670, %v1673
  %v1692 = vsel %vm1686, %v1679, 920167782
  %v1693 = vsel %vm1685, %v1676, %v1692
  %v1694 = vsel %vm1684, %v1691, %v1693
  %v1695 = vsel %vm1683, %v1673, %v1676
  %v1696 = vsel %vm1686, %v1682, 1326507024
  %v1697 = vsel %vm1685, %v1679, %v1696
  %v1698 = vsel %vm1684, %v1695, %v1697
  %v1699 = vshll.u32 %v1659, 8
  %v1700 = vmul.u32.u64.compose %v1699, %v1698
  %v1701 = vextract.low.u32 %v1700
  %v1702 = vextract.high.u32 %v1700
  %v1703 = vmul.u32.u64.compose %v1699, %v1694
  %v1704 = vextract.low.u32 %v1703
  %v1705 = vextract.high.u32 %v1703
  %v1706 = vmul.u32 %v1699, %v1690
  %v1707 = vadd.s32 %v1702, %v1704
  %vm1708 = vc.u32 %v1702, %v1704
  %v1709 = vadd.s32 %v1705, 1
  %v1710 = vsel %vm1708, %v1709, %v1705
  %v1711 = vadd.s32 %v1706, %v1710
  %v1712 = vadd.s32 %v1711, 536870912
  %v1713 = vshrl.u32 %v1712, 30
  %v1714 = vshll.u32 %v1713, 30
  %v1715 = vsub.s32 %v1711, %v1714
  %vm1716 = vcmp.lt.s32.totalorder %v1715, 0
  %v1717 = vsub.s32 0, %v1715
  %v1718 = vsel %vm1716, %v1717, %v1715
  %v1719 = vclz %v1718
  %v1720 = vsub.s32 %v1719, 2
  %vm1721 = vcmp.gt.s32.totalorder 0, %v1720
  %v1722 = vsel %vm1721, 0, %v1720
  %v1723 = vsub.s32 32, %v1722
  %v1724 = vshll.u32 %v1715, %v1722
  %v1725 = vshrl.u32 %v1707, %v1723
  %v1726 = vor.u32 %v1724, %v1725
  %v1727 = vsub.s32 4294967266, %v1722
  %v1728 = vadd.s32 %v1727, 127
  %v1729 = vshll.u32 %v1728, 23
  %v1730 = vor.u32 4788187, %v1729
  %v1731 = vand.u32 2147483647, %v1730
  %v1733 = vcvt.s32.f32 %v1726
  %v1734 = vmul.f32 %v1733, %v1731
  %v1735 = vxor.u32 %v1734, 2147483648
  %v1736 = vsel %vm1653, %v1735, %v1734
  %v1737 = vsub.s32 4, %v1713
  %v1738 = vsel %vm1653, %v1737, %v1713
  %v1739 = vsel %vm1652, %v177, %v1736
  %v1740 = vsel %vm1652, 0, %v1738
  %v1741 = vcosq.f32.pop %v1739
  %v1742 = vsinq.f32.pop %v1739
  %vm1743 = vweird.f32 %v177
  %v1744 = vadd.s32 %v1740, 3
  %v1745 = vand.u32 %v1744, 3
  %vm1746 = vcmp.lt.s32.totalorder %v1745, 2
  %vm1747 = vcmp.eq.s32.totalorder %v1745, 0
  %v1748 = vxor.u32 %v1742, 2147483648
  %v1749 = vsel %vm1747, %v1741, %v1748
  %vm1750 = vcmp.eq.s32.totalorder %v1745, 2
  %v1751 = vxor.u32 %v1741, 2147483648
  %v1752 = vsel %vm1750, %v1751, %v1742
  %v1753 = vsel %vm1746, %v1749, %v1752
  %v1754 = vsel %vm1743, nan, %v1753
  %v1755 = vand.u32 2147483647, %v178
  %vm1756 = vcmp.le.f32.partialorder %v1755, 0.7853982
  %vm1757 = vcmp.lt.s32.totalorder %v178, 0
  %v1758 = vand.u32 %v178, 2139095040
  %v1759 = vshrl.u32 %v1758, 23
  %v1760 = vsub.s32 %v1759, 127
  %v1761 = vand.u32 2147483647, %v178
  %v1762 = vand.u32 %v1761, 8388607
  %v1763 = vor.u32 %v1762, 8388608
  %v1764 = vsub.s32 0, %v1763
  %v1765 = vadd.s32 %v1760, 1
  %vm1766 = vcmp.gt.s32.totalorder %v1765, 0
  %v1767 = vsel %vm1766, %v1765, 0
  %v1768 = vshrl.u32 %v1767, 5
  %v1769 = vand.u32 %v1767, 31
  %v1770 = vsub.s32 32, %v1769
  %v1771 = vshrl.u32 683565275, %v1770
  %v1772 = vshll.u32 683565275, %v1769
  %v1773 = vshrl.u32 2475754826, %v1770
  %v1774 = vor.u32 %v1772, %v1773
  %v1775 = vshll.u32 2475754826, %v1769
  %v1776 = vshrl.u32 2131351028, %v1770
  %v1777 = vor.u32 %v1775, %v1776
  %v1778 = vshll.u32 2131351028, %v1769
  %v1779 = vshrl.u32 2102212464, %v1770
  %v1780 = vor.u32 %v1778, %v1779
  %v1781 = vshll.u32 2102212464, %v1769
  %v1782 = vshrl.u32 920167782, %v1770
  %v1783 = vor.u32 %v1781, %v1782
  %v1784 = vshll.u32 920167782, %v1769
  %v1785 = vshrl.u32 1326507024, %v1770
  %v1786 = vor.u32 %v1784, %v1785
  %vm1787 = vcmp.lt.s32.totalorder %v1768, 1
  %vm1788 = vcmp.lt.s32.totalorder %v1768, 2
  %vm1789 = vcmp.lt.s32.totalorder %v1768, 3
  %vm1790 = vcmp.lt.s32.totalorder %v1768, 4
  %v1791 = vsel %vm1787, %v1771, %v1774
  %v1792 = vsel %vm1790, %v1780, 2102212464
  %v1793 = vsel %vm1789, %v1777, %v1792
  %v1794 = vsel %vm1788, %v1791, %v1793
  %v1795 = vsel %vm1787, %v1774, %v1777
  %v1796 = vsel %vm1790, %v1783, 920167782
  %v1797 = vsel %vm1789, %v1780, %v1796
  %v1798 = vsel %vm1788, %v1795, %v1797
  %v1799 = vsel %vm1787, %v1777, %v1780
  %v1800 = vsel %vm1790, %v1786, 1326507024
  %v1801 = vsel %vm1789, %v1783, %v1800
  %v1802 = vsel %vm1788, %v1799, %v1801
  %v1803 = vshll.u32 %v1763, 8
  %v1804 = vmul.u32.u64.compose %v1803, %v1802
  %v1805 = vextract.low.u32 %v1804
  %v1806 = vextract.high.u32 %v1804
  %v1807 = vmul.u32.u64.compose %v1803, %v1798
  %v1808 = vextract.low.u32 %v1807
  %v1809 = vextract.high.u32 %v1807
  %v1810 = vmul.u32 %v1803, %v1794
  %v1811 = vadd.s32 %v1806, %v1808
  %vm1812 = vc.u32 %v1806, %v1808
  %v1813 = vadd.s32 %v1809, 1
  %v1814 = vsel %vm1812, %v1813, %v1809
  %v1815 = vadd.s32 %v1810, %v1814
  %v1816 = vadd.s32 %v1815, 536870912
  %v1817 = vshrl.u32 %v1816, 30
  %v1818 = vshll.u32 %v1817, 30
  %v1819 = vsub.s32 %v1815, %v1818
  %vm1820 = vcmp.lt.s32.totalorder %v1819, 0
  %v1821 = vsub.s32 0, %v1819
  %v1822 = vsel %vm1820, %v1821, %v1819
  %v1823 = vclz %v1822
  %v1824 = vsub.s32 %v1823, 2
  %vm1825 = vcmp.gt.s32.totalorder 0, %v1824
  %v1826 = vsel %vm1825, 0, %v1824
  %v1827 = vsub.s32 32, %v1826
  %v1828 = vshll.u32 %v1819, %v1826
  %v1829 = vshrl.u32 %v1811, %v1827
  %v1830 = vor.u32 %v1828, %v1829
  %v1831 = vsub.s32 4294967266, %v1826
  %v1832 = vadd.s32 %v1831, 127
  %v1833 = vshll.u32 %v1832, 23
  %v1834 = vor.u32 4788187, %v1833
  %v1835 = vand.u32 2147483647, %v1834
  %v1837 = vcvt.s32.f32 %v1830
  %v1838 = vmul.f32 %v1837, %v1835
  %v1839 = vxor.u32 %v1838, 2147483648
  %v1840 = vsel %vm1757, %v1839, %v1838
  %v1841 = vsub.s32 4, %v1817
  %v1842 = vsel %vm1757, %v1841, %v1817
  %v1843 = vsel %vm1756, %v178, %v1840
  %v1844 = vsel %vm1756, 0, %v1842
  %v1845 = vcosq.f32.pop %v1843
  %v1846 = vsinq.f32.pop %v1843
  %vm1847 = vweird.f32 %v178
  %v1848 = vadd.s32 %v1844, 3
  %v1849 = vand.u32 %v1848, 3
  %vm1850 = vcmp.lt.s32.totalorder %v1849, 2
  %vm1851 = vcmp.eq.s32.totalorder %v1849, 0
  %v1852 = vxor.u32 %v1846, 2147483648
  %v1853 = vsel %vm1851, %v1845, %v1852
  %vm1854 = vcmp.eq.s32.totalorder %v1849, 2
  %v1855 = vxor.u32 %v1845, 2147483648
  %v1856 = vsel %vm1854, %v1855, %v1846
  %v1857 = vsel %vm1850, %v1853, %v1856
  %v1858 = vsel %vm1847, nan, %v1857
  %v1859 = vand.u32 2147483647, %v163
  %vm1860 = vcmp.le.f32.partialorder %v1859, 0.7853982
  %vm1861 = vcmp.lt.s32.totalorder %v163, 0
  %v1862 = vand.u32 %v163, 2139095040
  %v1863 = vshrl.u32 %v1862, 23
  %v1864 = vsub.s32 %v1863, 127
  %v1865 = vand.u32 2147483647, %v163
  %v1866 = vand.u32 %v1865, 8388607
  %v1867 = vor.u32 %v1866, 8388608
  %v1868 = vsub.s32 0, %v1867
  %v1869 = vadd.s32 %v1864, 1
  %vm1870 = vcmp.gt.s32.totalorder %v1869, 0
  %v1871 = vsel %vm1870, %v1869, 0
  %v1872 = vshrl.u32 %v1871, 5
  %v1873 = vand.u32 %v1871, 31
  %v1874 = vsub.s32 32, %v1873
  %v1875 = vshrl.u32 683565275, %v1874
  %v1876 = vshll.u32 683565275, %v1873
  %v1877 = vshrl.u32 2475754826, %v1874
  %v1878 = vor.u32 %v1876, %v1877
  %v1879 = vshll.u32 2475754826, %v1873
  %v1880 = vshrl.u32 2131351028, %v1874
  %v1881 = vor.u32 %v1879, %v1880
  %v1882 = vshll.u32 2131351028, %v1873
  %v1883 = vshrl.u32 2102212464, %v1874
  %v1884 = vor.u32 %v1882, %v1883
  %v1885 = vshll.u32 2102212464, %v1873
  %v1886 = vshrl.u32 920167782, %v1874
  %v1887 = vor.u32 %v1885, %v1886
  %v1888 = vshll.u32 920167782, %v1873
  %v1889 = vshrl.u32 1326507024, %v1874
  %v1890 = vor.u32 %v1888, %v1889
  %vm1891 = vcmp.lt.s32.totalorder %v1872, 1
  %vm1892 = vcmp.lt.s32.totalorder %v1872, 2
  %vm1893 = vcmp.lt.s32.totalorder %v1872, 3
  %vm1894 = vcmp.lt.s32.totalorder %v1872, 4
  %v1895 = vsel %vm1891, %v1875, %v1878
  %v1896 = vsel %vm1894, %v1884, 2102212464
  %v1897 = vsel %vm1893, %v1881, %v1896
  %v1898 = vsel %vm1892, %v1895, %v1897
  %v1899 = vsel %vm1891, %v1878, %v1881
  %v1900 = vsel %vm1894, %v1887, 920167782
  %v1901 = vsel %vm1893, %v1884, %v1900
  %v1902 = vsel %vm1892, %v1899, %v1901
  %v1903 = vsel %vm1891, %v1881, %v1884
  %v1904 = vsel %vm1894, %v1890, 1326507024
  %v1905 = vsel %vm1893, %v1887, %v1904
  %v1906 = vsel %vm1892, %v1903, %v1905
  %v1907 = vshll.u32 %v1867, 8
  %v1908 = vmul.u32.u64.compose %v1907, %v1906
  %v1909 = vextract.low.u32 %v1908
  %v1910 = vextract.high.u32 %v1908
  %v1911 = vmul.u32.u64.compose %v1907, %v1902
  %v1912 = vextract.low.u32 %v1911
  %v1913 = vextract.high.u32 %v1911
  %v1914 = vmul.u32 %v1907, %v1898
  %v1915 = vadd.s32 %v1910, %v1912
  %vm1916 = vc.u32 %v1910, %v1912
  %v1917 = vadd.s32 %v1913, 1
  %v1918 = vsel %vm1916, %v1917, %v1913
  %v1919 = vadd.s32 %v1914, %v1918
  %v1920 = vadd.s32 %v1919, 536870912
  %v1921 = vshrl.u32 %v1920, 30
  %v1922 = vshll.u32 %v1921, 30
  %v1923 = vsub.s32 %v1919, %v1922
  %vm1924 = vcmp.lt.s32.totalorder %v1923, 0
  %v1925 = vsub.s32 0, %v1923
  %v1926 = vsel %vm1924, %v1925, %v1923
  %v1927 = vclz %v1926
  %v1928 = vsub.s32 %v1927, 2
  %vm1929 = vcmp.gt.s32.totalorder 0, %v1928
  %v1930 = vsel %vm1929, 0, %v1928
  %v1931 = vsub.s32 32, %v1930
  %v1932 = vshll.u32 %v1923, %v1930
  %v1933 = vshrl.u32 %v1915, %v1931
  %v1934 = vor.u32 %v1932, %v1933
  %v1935 = vsub.s32 4294967266, %v1930
  %v1936 = vadd.s32 %v1935, 127
  %v1937 = vshll.u32 %v1936, 23
  %v1938 = vor.u32 4788187, %v1937
  %v1939 = vand.u32 2147483647, %v1938
  %v1941 = vcvt.s32.f32 %v1934
  %v1942 = vmul.f32 %v1941, %v1939
  %v1943 = vxor.u32 %v1942, 2147483648
  %v1944 = vsel %vm1861, %v1943, %v1942
  %v1945 = vsub.s32 4, %v1921
  %v1946 = vsel %vm1861, %v1945, %v1921
  %v1947 = vsel %vm1860, %v163, %v1944
  %v1948 = vsel %vm1860, 0, %v1946
  %v1949 = vcosq.f32.pop %v1947
  %v1950 = vsinq.f32.pop %v1947
  %vm1951 = vweird.f32 %v163
  %v1952 = vand.u32 %v1948, 3
  %vm1953 = vcmp.lt.s32.totalorder %v1952, 2
  %vm1954 = vcmp.eq.s32.totalorder %v1952, 0
  %v1955 = vxor.u32 %v1950, 2147483648
  %v1956 = vsel %vm1954, %v1949, %v1955
  %vm1957 = vcmp.eq.s32.totalorder %v1952, 2
  %v1958 = vxor.u32 %v1949, 2147483648
  %v1959 = vsel %vm1957, %v1958, %v1950
  %v1960 = vsel %vm1953, %v1956, %v1959
  %v1961 = vsel %vm1951, nan, %v1960
  %v1962 = vand.u32 2147483647, %v164
  %vm1963 = vcmp.le.f32.partialorder %v1962, 0.7853982
  %vm1964 = vcmp.lt.s32.totalorder %v164, 0
  %v1965 = vand.u32 %v164, 2139095040
  %v1966 = vshrl.u32 %v1965, 23
  %v1967 = vsub.s32 %v1966, 127
  %v1968 = vand.u32 2147483647, %v164
  %v1969 = vand.u32 %v1968, 8388607
  %v1970 = vor.u32 %v1969, 8388608
  %v1971 = vsub.s32 0, %v1970
  %v1972 = vadd.s32 %v1967, 1
  %vm1973 = vcmp.gt.s32.totalorder %v1972, 0
  %v1974 = vsel %vm1973, %v1972, 0
  %v1975 = vshrl.u32 %v1974, 5
  %v1976 = vand.u32 %v1974, 31
  %v1977 = vsub.s32 32, %v1976
  %v1978 = vshrl.u32 683565275, %v1977
  %v1979 = vshll.u32 683565275, %v1976
  %v1980 = vshrl.u32 2475754826, %v1977
  %v1981 = vor.u32 %v1979, %v1980
  %v1982 = vshll.u32 2475754826, %v1976
  %v1983 = vshrl.u32 2131351028, %v1977
  %v1984 = vor.u32 %v1982, %v1983
  %v1985 = vshll.u32 2131351028, %v1976
  %v1986 = vshrl.u32 2102212464, %v1977
  %v1987 = vor.u32 %v1985, %v1986
  %v1988 = vshll.u32 2102212464, %v1976
  %v1989 = vshrl.u32 920167782, %v1977
  %v1990 = vor.u32 %v1988, %v1989
  %v1991 = vshll.u32 920167782, %v1976
  %v1992 = vshrl.u32 1326507024, %v1977
  %v1993 = vor.u32 %v1991, %v1992
  %vm1994 = vcmp.lt.s32.totalorder %v1975, 1
  %vm1995 = vcmp.lt.s32.totalorder %v1975, 2
  %vm1996 = vcmp.lt.s32.totalorder %v1975, 3
  %vm1997 = vcmp.lt.s32.totalorder %v1975, 4
  %v1998 = vsel %vm1994, %v1978, %v1981
  %v1999 = vsel %vm1997, %v1987, 2102212464
  %v2000 = vsel %vm1996, %v1984, %v1999
  %v2001 = vsel %vm1995, %v1998, %v2000
  %v2002 = vsel %vm1994, %v1981, %v1984
  %v2003 = vsel %vm1997, %v1990, 920167782
  %v2004 = vsel %vm1996, %v1987, %v2003
  %v2005 = vsel %vm1995, %v2002, %v2004
  %v2006 = vsel %vm1994, %v1984, %v1987
  %v2007 = vsel %vm1997, %v1993, 1326507024
  %v2008 = vsel %vm1996, %v1990, %v2007
  %v2009 = vsel %vm1995, %v2006, %v2008
  %v2010 = vshll.u32 %v1970, 8
  %v2011 = vmul.u32.u64.compose %v2010, %v2009
  %v2012 = vextract.low.u32 %v2011
  %v2013 = vextract.high.u32 %v2011
  %v2014 = vmul.u32.u64.compose %v2010, %v2005
  %v2015 = vextract.low.u32 %v2014
  %v2016 = vextract.high.u32 %v2014
  %v2017 = vmul.u32 %v2010, %v2001
  %v2018 = vadd.s32 %v2013, %v2015
  %vm2019 = vc.u32 %v2013, %v2015
  %v2020 = vadd.s32 %v2016, 1
  %v2021 = vsel %vm2019, %v2020, %v2016
  %v2022 = vadd.s32 %v2017, %v2021
  %v2023 = vadd.s32 %v2022, 536870912
  %v2024 = vshrl.u32 %v2023, 30
  %v2025 = vshll.u32 %v2024, 30
  %v2026 = vsub.s32 %v2022, %v2025
  %vm2027 = vcmp.lt.s32.totalorder %v2026, 0
  %v2028 = vsub.s32 0, %v2026
  %v2029 = vsel %vm2027, %v2028, %v2026
  %v2030 = vclz %v2029
  %v2031 = vsub.s32 %v2030, 2
  %vm2032 = vcmp.gt.s32.totalorder 0, %v2031
  %v2033 = vsel %vm2032, 0, %v2031
  %v2034 = vsub.s32 32, %v2033
  %v2035 = vshll.u32 %v2026, %v2033
  %v2036 = vshrl.u32 %v2018, %v2034
  %v2037 = vor.u32 %v2035, %v2036
  %v2038 = vsub.s32 4294967266, %v2033
  %v2039 = vadd.s32 %v2038, 127
  %v2040 = vshll.u32 %v2039, 23
  %v2041 = vor.u32 4788187, %v2040
  %v2042 = vand.u32 2147483647, %v2041
  %v2044 = vcvt.s32.f32 %v2037
  %v2045 = vmul.f32 %v2044, %v2042
  %v2046 = vxor.u32 %v2045, 2147483648
  %v2047 = vsel %vm1964, %v2046, %v2045
  %v2048 = vsub.s32 4, %v2024
  %v2049 = vsel %vm1964, %v2048, %v2024
  %v2050 = vsel %vm1963, %v164, %v2047
  %v2051 = vsel %vm1963, 0, %v2049
  %v2052 = vcosq.f32.pop %v2050
  %v2053 = vsinq.f32.pop %v2050
  %vm2054 = vweird.f32 %v164
  %v2055 = vand.u32 %v2051, 3
  %vm2056 = vcmp.lt.s32.totalorder %v2055, 2
  %vm2057 = vcmp.eq.s32.totalorder %v2055, 0
  %v2058 = vxor.u32 %v2053, 2147483648
  %v2059 = vsel %vm2057, %v2052, %v2058
  %vm2060 = vcmp.eq.s32.totalorder %v2055, 2
  %v2061 = vxor.u32 %v2052, 2147483648
  %v2062 = vsel %vm2060, %v2061, %v2053
  %v2063 = vsel %vm2056, %v2059, %v2062
  %v2064 = vsel %vm2054, nan, %v2063
  %v2065 = vand.u32 2147483647, %v165
  %vm2066 = vcmp.le.f32.partialorder %v2065, 0.7853982
  %vm2067 = vcmp.lt.s32.totalorder %v165, 0
  %v2068 = vand.u32 %v165, 2139095040
  %v2069 = vshrl.u32 %v2068, 23
  %v2070 = vsub.s32 %v2069, 127
  %v2071 = vand.u32 2147483647, %v165
  %v2072 = vand.u32 %v2071, 8388607
  %v2073 = vor.u32 %v2072, 8388608
  %v2074 = vsub.s32 0, %v2073
  %v2075 = vadd.s32 %v2070, 1
  %vm2076 = vcmp.gt.s32.totalorder %v2075, 0
  %v2077 = vsel %vm2076, %v2075, 0
  %v2078 = vshrl.u32 %v2077, 5
  %v2079 = vand.u32 %v2077, 31
  %v2080 = vsub.s32 32, %v2079
  %v2081 = vshrl.u32 683565275, %v2080
  %v2082 = vshll.u32 683565275, %v2079
  %v2083 = vshrl.u32 2475754826, %v2080
  %v2084 = vor.u32 %v2082, %v2083
  %v2085 = vshll.u32 2475754826, %v2079
  %v2086 = vshrl.u32 2131351028, %v2080
  %v2087 = vor.u32 %v2085, %v2086
  %v2088 = vshll.u32 2131351028, %v2079
  %v2089 = vshrl.u32 2102212464, %v2080
  %v2090 = vor.u32 %v2088, %v2089
  %v2091 = vshll.u32 2102212464, %v2079
  %v2092 = vshrl.u32 920167782, %v2080
  %v2093 = vor.u32 %v2091, %v2092
  %v2094 = vshll.u32 920167782, %v2079
  %v2095 = vshrl.u32 1326507024, %v2080
  %v2096 = vor.u32 %v2094, %v2095
  %vm2097 = vcmp.lt.s32.totalorder %v2078, 1
  %vm2098 = vcmp.lt.s32.totalorder %v2078, 2
  %vm2099 = vcmp.lt.s32.totalorder %v2078, 3
  %vm2100 = vcmp.lt.s32.totalorder %v2078, 4
  %v2101 = vsel %vm2097, %v2081, %v2084
  %v2102 = vsel %vm2100, %v2090, 2102212464
  %v2103 = vsel %vm2099, %v2087, %v2102
  %v2104 = vsel %vm2098, %v2101, %v2103
  %v2105 = vsel %vm2097, %v2084, %v2087
  %v2106 = vsel %vm2100, %v2093, 920167782
  %v2107 = vsel %vm2099, %v2090, %v2106
  %v2108 = vsel %vm2098, %v2105, %v2107
  %v2109 = vsel %vm2097, %v2087, %v2090
  %v2110 = vsel %vm2100, %v2096, 1326507024
  %v2111 = vsel %vm2099, %v2093, %v2110
  %v2112 = vsel %vm2098, %v2109, %v2111
  %v2113 = vshll.u32 %v2073, 8
  %v2114 = vmul.u32.u64.compose %v2113, %v2112
  %v2115 = vextract.low.u32 %v2114
  %v2116 = vextract.high.u32 %v2114
  %v2117 = vmul.u32.u64.compose %v2113, %v2108
  %v2118 = vextract.low.u32 %v2117
  %v2119 = vextract.high.u32 %v2117
  %v2120 = vmul.u32 %v2113, %v2104
  %v2121 = vadd.s32 %v2116, %v2118
  %vm2122 = vc.u32 %v2116, %v2118
  %v2123 = vadd.s32 %v2119, 1
  %v2124 = vsel %vm2122, %v2123, %v2119
  %v2125 = vadd.s32 %v2120, %v2124
  %v2126 = vadd.s32 %v2125, 536870912
  %v2127 = vshrl.u32 %v2126, 30
  %v2128 = vshll.u32 %v2127, 30
  %v2129 = vsub.s32 %v2125, %v2128
  %vm2130 = vcmp.lt.s32.totalorder %v2129, 0
  %v2131 = vsub.s32 0, %v2129
  %v2132 = vsel %vm2130, %v2131, %v2129
  %v2133 = vclz %v2132
  %v2134 = vsub.s32 %v2133, 2
  %vm2135 = vcmp.gt.s32.totalorder 0, %v2134
  %v2136 = vsel %vm2135, 0, %v2134
  %v2137 = vsub.s32 32, %v2136
  %v2138 = vshll.u32 %v2129, %v2136
  %v2139 = vshrl.u32 %v2121, %v2137
  %v2140 = vor.u32 %v2138, %v2139
  %v2141 = vsub.s32 4294967266, %v2136
  %v2142 = vadd.s32 %v2141, 127
  %v2143 = vshll.u32 %v2142, 23
  %v2144 = vor.u32 4788187, %v2143
  %v2145 = vand.u32 2147483647, %v2144
  %v2147 = vcvt.s32.f32 %v2140
  %v2148 = vmul.f32 %v2147, %v2145
  %v2149 = vxor.u32 %v2148, 2147483648
  %v2150 = vsel %vm2067, %v2149, %v2148
  %v2151 = vsub.s32 4, %v2127
  %v2152 = vsel %vm2067, %v2151, %v2127
  %v2153 = vsel %vm2066, %v165, %v2150
  %v2154 = vsel %vm2066, 0, %v2152
  %v2155 = vcosq.f32.pop %v2153
  %v2156 = vsinq.f32.pop %v2153
  %vm2157 = vweird.f32 %v165
  %v2158 = vand.u32 %v2154, 3
  %vm2159 = vcmp.lt.s32.totalorder %v2158, 2
  %vm2160 = vcmp.eq.s32.totalorder %v2158, 0
  %v2161 = vxor.u32 %v2156, 2147483648
  %v2162 = vsel %vm2160, %v2155, %v2161
  %vm2163 = vcmp.eq.s32.totalorder %v2158, 2
  %v2164 = vxor.u32 %v2155, 2147483648
  %v2165 = vsel %vm2163, %v2164, %v2156
  %v2166 = vsel %vm2159, %v2162, %v2165
  %v2167 = vsel %vm2157, nan, %v2166
  %v2168 = vand.u32 2147483647, %v166
  %vm2169 = vcmp.le.f32.partialorder %v2168, 0.7853982
  %vm2170 = vcmp.lt.s32.totalorder %v166, 0
  %v2171 = vand.u32 %v166, 2139095040
  %v2172 = vshrl.u32 %v2171, 23
  %v2173 = vsub.s32 %v2172, 127
  %v2174 = vand.u32 2147483647, %v166
  %v2175 = vand.u32 %v2174, 8388607
  %v2176 = vor.u32 %v2175, 8388608
  %v2177 = vsub.s32 0, %v2176
  %v2178 = vadd.s32 %v2173, 1
  %vm2179 = vcmp.gt.s32.totalorder %v2178, 0
  %v2180 = vsel %vm2179, %v2178, 0
  %v2181 = vshrl.u32 %v2180, 5
  %v2182 = vand.u32 %v2180, 31
  %v2183 = vsub.s32 32, %v2182
  %v2184 = vshrl.u32 683565275, %v2183
  %v2185 = vshll.u32 683565275, %v2182
  %v2186 = vshrl.u32 2475754826, %v2183
  %v2187 = vor.u32 %v2185, %v2186
  %v2188 = vshll.u32 2475754826, %v2182
  %v2189 = vshrl.u32 2131351028, %v2183
  %v2190 = vor.u32 %v2188, %v2189
  %v2191 = vshll.u32 2131351028, %v2182
  %v2192 = vshrl.u32 2102212464, %v2183
  %v2193 = vor.u32 %v2191, %v2192
  %v2194 = vshll.u32 2102212464, %v2182
  %v2195 = vshrl.u32 920167782, %v2183
  %v2196 = vor.u32 %v2194, %v2195
  %v2197 = vshll.u32 920167782, %v2182
  %v2198 = vshrl.u32 1326507024, %v2183
  %v2199 = vor.u32 %v2197, %v2198
  %vm2200 = vcmp.lt.s32.totalorder %v2181, 1
  %vm2201 = vcmp.lt.s32.totalorder %v2181, 2
  %vm2202 = vcmp.lt.s32.totalorder %v2181, 3
  %vm2203 = vcmp.lt.s32.totalorder %v2181, 4
  %v2204 = vsel %vm2200, %v2184, %v2187
  %v2205 = vsel %vm2203, %v2193, 2102212464
  %v2206 = vsel %vm2202, %v2190, %v2205
  %v2207 = vsel %vm2201, %v2204, %v2206
  %v2208 = vsel %vm2200, %v2187, %v2190
  %v2209 = vsel %vm2203, %v2196, 920167782
  %v2210 = vsel %vm2202, %v2193, %v2209
  %v2211 = vsel %vm2201, %v2208, %v2210
  %v2212 = vsel %vm2200, %v2190, %v2193
  %v2213 = vsel %vm2203, %v2199, 1326507024
  %v2214 = vsel %vm2202, %v2196, %v2213
  %v2215 = vsel %vm2201, %v2212, %v2214
  %v2216 = vshll.u32 %v2176, 8
  %v2217 = vmul.u32.u64.compose %v2216, %v2215
  %v2218 = vextract.low.u32 %v2217
  %v2219 = vextract.high.u32 %v2217
  %v2220 = vmul.u32.u64.compose %v2216, %v2211
  %v2221 = vextract.low.u32 %v2220
  %v2222 = vextract.high.u32 %v2220
  %v2223 = vmul.u32 %v2216, %v2207
  %v2224 = vadd.s32 %v2219, %v2221
  %vm2225 = vc.u32 %v2219, %v2221
  %v2226 = vadd.s32 %v2222, 1
  %v2227 = vsel %vm2225, %v2226, %v2222
  %v2228 = vadd.s32 %v2223, %v2227
  %v2229 = vadd.s32 %v2228, 536870912
  %v2230 = vshrl.u32 %v2229, 30
  %v2231 = vshll.u32 %v2230, 30
  %v2232 = vsub.s32 %v2228, %v2231
  %vm2233 = vcmp.lt.s32.totalorder %v2232, 0
  %v2234 = vsub.s32 0, %v2232
  %v2235 = vsel %vm2233, %v2234, %v2232
  %v2236 = vclz %v2235
  %v2237 = vsub.s32 %v2236, 2
  %vm2238 = vcmp.gt.s32.totalorder 0, %v2237
  %v2239 = vsel %vm2238, 0, %v2237
  %v2240 = vsub.s32 32, %v2239
  %v2241 = vshll.u32 %v2232, %v2239
  %v2242 = vshrl.u32 %v2224, %v2240
  %v2243 = vor.u32 %v2241, %v2242
  %v2244 = vsub.s32 4294967266, %v2239
  %v2245 = vadd.s32 %v2244, 127
  %v2246 = vshll.u32 %v2245, 23
  %v2247 = vor.u32 4788187, %v2246
  %v2248 = vand.u32 2147483647, %v2247
  %v2250 = vcvt.s32.f32 %v2243
  %v2251 = vmul.f32 %v2250, %v2248
  %v2252 = vxor.u32 %v2251, 2147483648
  %v2253 = vsel %vm2170, %v2252, %v2251
  %v2254 = vsub.s32 4, %v2230
  %v2255 = vsel %vm2170, %v2254, %v2230
  %v2256 = vsel %vm2169, %v166, %v2253
  %v2257 = vsel %vm2169, 0, %v2255
  %v2258 = vcosq.f32.pop %v2256
  %v2259 = vsinq.f32.pop %v2256
  %vm2260 = vweird.f32 %v166
  %v2261 = vand.u32 %v2257, 3
  %vm2262 = vcmp.lt.s32.totalorder %v2261, 2
  %vm2263 = vcmp.eq.s32.totalorder %v2261, 0
  %v2264 = vxor.u32 %v2259, 2147483648
  %v2265 = vsel %vm2263, %v2258, %v2264
  %vm2266 = vcmp.eq.s32.totalorder %v2261, 2
  %v2267 = vxor.u32 %v2258, 2147483648
  %v2268 = vsel %vm2266, %v2267, %v2259
  %v2269 = vsel %vm2262, %v2265, %v2268
  %v2270 = vsel %vm2260, nan, %v2269
  %v2271 = vand.u32 2147483647, %v167
  %vm2272 = vcmp.le.f32.partialorder %v2271, 0.7853982
  %vm2273 = vcmp.lt.s32.totalorder %v167, 0
  %v2274 = vand.u32 %v167, 2139095040
  %v2275 = vshrl.u32 %v2274, 23
  %v2276 = vsub.s32 %v2275, 127
  %v2277 = vand.u32 2147483647, %v167
  %v2278 = vand.u32 %v2277, 8388607
  %v2279 = vor.u32 %v2278, 8388608
  %v2280 = vsub.s32 0, %v2279
  %v2281 = vadd.s32 %v2276, 1
  %vm2282 = vcmp.gt.s32.totalorder %v2281, 0
  %v2283 = vsel %vm2282, %v2281, 0
  %v2284 = vshrl.u32 %v2283, 5
  %v2285 = vand.u32 %v2283, 31
  %v2286 = vsub.s32 32, %v2285
  %v2287 = vshrl.u32 683565275, %v2286
  %v2288 = vshll.u32 683565275, %v2285
  %v2289 = vshrl.u32 2475754826, %v2286
  %v2290 = vor.u32 %v2288, %v2289
  %v2291 = vshll.u32 2475754826, %v2285
  %v2292 = vshrl.u32 2131351028, %v2286
  %v2293 = vor.u32 %v2291, %v2292
  %v2294 = vshll.u32 2131351028, %v2285
  %v2295 = vshrl.u32 2102212464, %v2286
  %v2296 = vor.u32 %v2294, %v2295
  %v2297 = vshll.u32 2102212464, %v2285
  %v2298 = vshrl.u32 920167782, %v2286
  %v2299 = vor.u32 %v2297, %v2298
  %v2300 = vshll.u32 920167782, %v2285
  %v2301 = vshrl.u32 1326507024, %v2286
  %v2302 = vor.u32 %v2300, %v2301
  %vm2303 = vcmp.lt.s32.totalorder %v2284, 1
  %vm2304 = vcmp.lt.s32.totalorder %v2284, 2
  %vm2305 = vcmp.lt.s32.totalorder %v2284, 3
  %vm2306 = vcmp.lt.s32.totalorder %v2284, 4
  %v2307 = vsel %vm2303, %v2287, %v2290
  %v2308 = vsel %vm2306, %v2296, 2102212464
  %v2309 = vsel %vm2305, %v2293, %v2308
  %v2310 = vsel %vm2304, %v2307, %v2309
  %v2311 = vsel %vm2303, %v2290, %v2293
  %v2312 = vsel %vm2306, %v2299, 920167782
  %v2313 = vsel %vm2305, %v2296, %v2312
  %v2314 = vsel %vm2304, %v2311, %v2313
  %v2315 = vsel %vm2303, %v2293, %v2296
  %v2316 = vsel %vm2306, %v2302, 1326507024
  %v2317 = vsel %vm2305, %v2299, %v2316
  %v2318 = vsel %vm2304, %v2315, %v2317
  %v2319 = vshll.u32 %v2279, 8
  %v2320 = vmul.u32.u64.compose %v2319, %v2318
  %v2321 = vextract.low.u32 %v2320
  %v2322 = vextract.high.u32 %v2320
  %v2323 = vmul.u32.u64.compose %v2319, %v2314
  %v2324 = vextract.low.u32 %v2323
  %v2325 = vextract.high.u32 %v2323
  %v2326 = vmul.u32 %v2319, %v2310
  %v2327 = vadd.s32 %v2322, %v2324
  %vm2328 = vc.u32 %v2322, %v2324
  %v2329 = vadd.s32 %v2325, 1
  %v2330 = vsel %vm2328, %v2329, %v2325
  %v2331 = vadd.s32 %v2326, %v2330
  %v2332 = vadd.s32 %v2331, 536870912
  %v2333 = vshrl.u32 %v2332, 30
  %v2334 = vshll.u32 %v2333, 30
  %v2335 = vsub.s32 %v2331, %v2334
  %vm2336 = vcmp.lt.s32.totalorder %v2335, 0
  %v2337 = vsub.s32 0, %v2335
  %v2338 = vsel %vm2336, %v2337, %v2335
  %v2339 = vclz %v2338
  %v2340 = vsub.s32 %v2339, 2
  %vm2341 = vcmp.gt.s32.totalorder 0, %v2340
  %v2342 = vsel %vm2341, 0, %v2340
  %v2343 = vsub.s32 32, %v2342
  %v2344 = vshll.u32 %v2335, %v2342
  %v2345 = vshrl.u32 %v2327, %v2343
  %v2346 = vor.u32 %v2344, %v2345
  %v2347 = vsub.s32 4294967266, %v2342
  %v2348 = vadd.s32 %v2347, 127
  %v2349 = vshll.u32 %v2348, 23
  %v2350 = vor.u32 4788187, %v2349
  %v2351 = vand.u32 2147483647, %v2350
  %v2353 = vcvt.s32.f32 %v2346
  %v2354 = vmul.f32 %v2353, %v2351
  %v2355 = vxor.u32 %v2354, 2147483648
  %v2356 = vsel %vm2273, %v2355, %v2354
  %v2357 = vsub.s32 4, %v2333
  %v2358 = vsel %vm2273, %v2357, %v2333
  %v2359 = vsel %vm2272, %v167, %v2356
  %v2360 = vsel %vm2272, 0, %v2358
  %v2361 = vcosq.f32.pop %v2359
  %v2362 = vsinq.f32.pop %v2359
  %vm2363 = vweird.f32 %v167
  %v2364 = vand.u32 %v2360, 3
  %vm2365 = vcmp.lt.s32.totalorder %v2364, 2
  %vm2366 = vcmp.eq.s32.totalorder %v2364, 0
  %v2367 = vxor.u32 %v2362, 2147483648
  %v2368 = vsel %vm2366, %v2361, %v2367
  %vm2369 = vcmp.eq.s32.totalorder %v2364, 2
  %v2370 = vxor.u32 %v2361, 2147483648
  %v2371 = vsel %vm2369, %v2370, %v2362
  %v2372 = vsel %vm2365, %v2368, %v2371
  %v2373 = vsel %vm2363, nan, %v2372
  %v2374 = vand.u32 2147483647, %v168
  %vm2375 = vcmp.le.f32.partialorder %v2374, 0.7853982
  %vm2376 = vcmp.lt.s32.totalorder %v168, 0
  %v2377 = vand.u32 %v168, 2139095040
  %v2378 = vshrl.u32 %v2377, 23
  %v2379 = vsub.s32 %v2378, 127
  %v2380 = vand.u32 2147483647, %v168
  %v2381 = vand.u32 %v2380, 8388607
  %v2382 = vor.u32 %v2381, 8388608
  %v2383 = vsub.s32 0, %v2382
  %v2384 = vadd.s32 %v2379, 1
  %vm2385 = vcmp.gt.s32.totalorder %v2384, 0
  %v2386 = vsel %vm2385, %v2384, 0
  %v2387 = vshrl.u32 %v2386, 5
  %v2388 = vand.u32 %v2386, 31
  %v2389 = vsub.s32 32, %v2388
  %v2390 = vshrl.u32 683565275, %v2389
  %v2391 = vshll.u32 683565275, %v2388
  %v2392 = vshrl.u32 2475754826, %v2389
  %v2393 = vor.u32 %v2391, %v2392
  %v2394 = vshll.u32 2475754826, %v2388
  %v2395 = vshrl.u32 2131351028, %v2389
  %v2396 = vor.u32 %v2394, %v2395
  %v2397 = vshll.u32 2131351028, %v2388
  %v2398 = vshrl.u32 2102212464, %v2389
  %v2399 = vor.u32 %v2397, %v2398
  %v2400 = vshll.u32 2102212464, %v2388
  %v2401 = vshrl.u32 920167782, %v2389
  %v2402 = vor.u32 %v2400, %v2401
  %v2403 = vshll.u32 920167782, %v2388
  %v2404 = vshrl.u32 1326507024, %v2389
  %v2405 = vor.u32 %v2403, %v2404
  %vm2406 = vcmp.lt.s32.totalorder %v2387, 1
  %vm2407 = vcmp.lt.s32.totalorder %v2387, 2
  %vm2408 = vcmp.lt.s32.totalorder %v2387, 3
  %vm2409 = vcmp.lt.s32.totalorder %v2387, 4
  %v2410 = vsel %vm2406, %v2390, %v2393
  %v2411 = vsel %vm2409, %v2399, 2102212464
  %v2412 = vsel %vm2408, %v2396, %v2411
  %v2413 = vsel %vm2407, %v2410, %v2412
  %v2414 = vsel %vm2406, %v2393, %v2396
  %v2415 = vsel %vm2409, %v2402, 920167782
  %v2416 = vsel %vm2408, %v2399, %v2415
  %v2417 = vsel %vm2407, %v2414, %v2416
  %v2418 = vsel %vm2406, %v2396, %v2399
  %v2419 = vsel %vm2409, %v2405, 1326507024
  %v2420 = vsel %vm2408, %v2402, %v2419
  %v2421 = vsel %vm2407, %v2418, %v2420
  %v2422 = vshll.u32 %v2382, 8
  %v2423 = vmul.u32.u64.compose %v2422, %v2421
  %v2424 = vextract.low.u32 %v2423
  %v2425 = vextract.high.u32 %v2423
  %v2426 = vmul.u32.u64.compose %v2422, %v2417
  %v2427 = vextract.low.u32 %v2426
  %v2428 = vextract.high.u32 %v2426
  %v2429 = vmul.u32 %v2422, %v2413
  %v2430 = vadd.s32 %v2425, %v2427
  %vm2431 = vc.u32 %v2425, %v2427
  %v2432 = vadd.s32 %v2428, 1
  %v2433 = vsel %vm2431, %v2432, %v2428
  %v2434 = vadd.s32 %v2429, %v2433
  %v2435 = vadd.s32 %v2434, 536870912
  %v2436 = vshrl.u32 %v2435, 30
  %v2437 = vshll.u32 %v2436, 30
  %v2438 = vsub.s32 %v2434, %v2437
  %vm2439 = vcmp.lt.s32.totalorder %v2438, 0
  %v2440 = vsub.s32 0, %v2438
  %v2441 = vsel %vm2439, %v2440, %v2438
  %v2442 = vclz %v2441
  %v2443 = vsub.s32 %v2442, 2
  %vm2444 = vcmp.gt.s32.totalorder 0, %v2443
  %v2445 = vsel %vm2444, 0, %v2443
  %v2446 = vsub.s32 32, %v2445
  %v2447 = vshll.u32 %v2438, %v2445
  %v2448 = vshrl.u32 %v2430, %v2446
  %v2449 = vor.u32 %v2447, %v2448
  %v2450 = vsub.s32 4294967266, %v2445
  %v2451 = vadd.s32 %v2450, 127
  %v2452 = vshll.u32 %v2451, 23
  %v2453 = vor.u32 4788187, %v2452
  %v2454 = vand.u32 2147483647, %v2453
  %v2456 = vcvt.s32.f32 %v2449
  %v2457 = vmul.f32 %v2456, %v2454
  %v2458 = vxor.u32 %v2457, 2147483648
  %v2459 = vsel %vm2376, %v2458, %v2457
  %v2460 = vsub.s32 4, %v2436
  %v2461 = vsel %vm2376, %v2460, %v2436
  %v2462 = vsel %vm2375, %v168, %v2459
  %v2463 = vsel %vm2375, 0, %v2461
  %v2464 = vcosq.f32.pop %v2462
  %v2465 = vsinq.f32.pop %v2462
  %vm2466 = vweird.f32 %v168
  %v2467 = vand.u32 %v2463, 3
  %vm2468 = vcmp.lt.s32.totalorder %v2467, 2
  %vm2469 = vcmp.eq.s32.totalorder %v2467, 0
  %v2470 = vxor.u32 %v2465, 2147483648
  %v2471 = vsel %vm2469, %v2464, %v2470
  %vm2472 = vcmp.eq.s32.totalorder %v2467, 2
  %v2473 = vxor.u32 %v2464, 2147483648
  %v2474 = vsel %vm2472, %v2473, %v2465
  %v2475 = vsel %vm2468, %v2471, %v2474
  %v2476 = vsel %vm2466, nan, %v2475
  %v2477 = vand.u32 2147483647, %v169
  %vm2478 = vcmp.le.f32.partialorder %v2477, 0.7853982
  %vm2479 = vcmp.lt.s32.totalorder %v169, 0
  %v2480 = vand.u32 %v169, 2139095040
  %v2481 = vshrl.u32 %v2480, 23
  %v2482 = vsub.s32 %v2481, 127
  %v2483 = vand.u32 2147483647, %v169
  %v2484 = vand.u32 %v2483, 8388607
  %v2485 = vor.u32 %v2484, 8388608
  %v2486 = vsub.s32 0, %v2485
  %v2487 = vadd.s32 %v2482, 1
  %vm2488 = vcmp.gt.s32.totalorder %v2487, 0
  %v2489 = vsel %vm2488, %v2487, 0
  %v2490 = vshrl.u32 %v2489, 5
  %v2491 = vand.u32 %v2489, 31
  %v2492 = vsub.s32 32, %v2491
  %v2493 = vshrl.u32 683565275, %v2492
  %v2494 = vshll.u32 683565275, %v2491
  %v2495 = vshrl.u32 2475754826, %v2492
  %v2496 = vor.u32 %v2494, %v2495
  %v2497 = vshll.u32 2475754826, %v2491
  %v2498 = vshrl.u32 2131351028, %v2492
  %v2499 = vor.u32 %v2497, %v2498
  %v2500 = vshll.u32 2131351028, %v2491
  %v2501 = vshrl.u32 2102212464, %v2492
  %v2502 = vor.u32 %v2500, %v2501
  %v2503 = vshll.u32 2102212464, %v2491
  %v2504 = vshrl.u32 920167782, %v2492
  %v2505 = vor.u32 %v2503, %v2504
  %v2506 = vshll.u32 920167782, %v2491
  %v2507 = vshrl.u32 1326507024, %v2492
  %v2508 = vor.u32 %v2506, %v2507
  %vm2509 = vcmp.lt.s32.totalorder %v2490, 1
  %vm2510 = vcmp.lt.s32.totalorder %v2490, 2
  %vm2511 = vcmp.lt.s32.totalorder %v2490, 3
  %vm2512 = vcmp.lt.s32.totalorder %v2490, 4
  %v2513 = vsel %vm2509, %v2493, %v2496
  %v2514 = vsel %vm2512, %v2502, 2102212464
  %v2515 = vsel %vm2511, %v2499, %v2514
  %v2516 = vsel %vm2510, %v2513, %v2515
  %v2517 = vsel %vm2509, %v2496, %v2499
  %v2518 = vsel %vm2512, %v2505, 920167782
  %v2519 = vsel %vm2511, %v2502, %v2518
  %v2520 = vsel %vm2510, %v2517, %v2519
  %v2521 = vsel %vm2509, %v2499, %v2502
  %v2522 = vsel %vm2512, %v2508, 1326507024
  %v2523 = vsel %vm2511, %v2505, %v2522
  %v2524 = vsel %vm2510, %v2521, %v2523
  %v2525 = vshll.u32 %v2485, 8
  %v2526 = vmul.u32.u64.compose %v2525, %v2524
  %v2527 = vextract.low.u32 %v2526
  %v2528 = vextract.high.u32 %v2526
  %v2529 = vmul.u32.u64.compose %v2525, %v2520
  %v2530 = vextract.low.u32 %v2529
  %v2531 = vextract.high.u32 %v2529
  %v2532 = vmul.u32 %v2525, %v2516
  %v2533 = vadd.s32 %v2528, %v2530
  %vm2534 = vc.u32 %v2528, %v2530
  %v2535 = vadd.s32 %v2531, 1
  %v2536 = vsel %vm2534, %v2535, %v2531
  %v2537 = vadd.s32 %v2532, %v2536
  %v2538 = vadd.s32 %v2537, 536870912
  %v2539 = vshrl.u32 %v2538, 30
  %v2540 = vshll.u32 %v2539, 30
  %v2541 = vsub.s32 %v2537, %v2540
  %vm2542 = vcmp.lt.s32.totalorder %v2541, 0
  %v2543 = vsub.s32 0, %v2541
  %v2544 = vsel %vm2542, %v2543, %v2541
  %v2545 = vclz %v2544
  %v2546 = vsub.s32 %v2545, 2
  %vm2547 = vcmp.gt.s32.totalorder 0, %v2546
  %v2548 = vsel %vm2547, 0, %v2546
  %v2549 = vsub.s32 32, %v2548
  %v2550 = vshll.u32 %v2541, %v2548
  %v2551 = vshrl.u32 %v2533, %v2549
  %v2552 = vor.u32 %v2550, %v2551
  %v2553 = vsub.s32 4294967266, %v2548
  %v2554 = vadd.s32 %v2553, 127
  %v2555 = vshll.u32 %v2554, 23
  %v2556 = vor.u32 4788187, %v2555
  %v2557 = vand.u32 2147483647, %v2556
  %v2559 = vcvt.s32.f32 %v2552
  %v2560 = vmul.f32 %v2559, %v2557
  %v2561 = vxor.u32 %v2560, 2147483648
  %v2562 = vsel %vm2479, %v2561, %v2560
  %v2563 = vsub.s32 4, %v2539
  %v2564 = vsel %vm2479, %v2563, %v2539
  %v2565 = vsel %vm2478, %v169, %v2562
  %v2566 = vsel %vm2478, 0, %v2564
  %v2567 = vcosq.f32.pop %v2565
  %v2568 = vsinq.f32.pop %v2565
  %vm2569 = vweird.f32 %v169
  %v2570 = vand.u32 %v2566, 3
  %vm2571 = vcmp.lt.s32.totalorder %v2570, 2
  %vm2572 = vcmp.eq.s32.totalorder %v2570, 0
  %v2573 = vxor.u32 %v2568, 2147483648
  %v2574 = vsel %vm2572, %v2567, %v2573
  %vm2575 = vcmp.eq.s32.totalorder %v2570, 2
  %v2576 = vxor.u32 %v2567, 2147483648
  %v2577 = vsel %vm2575, %v2576, %v2568
  %v2578 = vsel %vm2571, %v2574, %v2577
  %v2579 = vsel %vm2569, nan, %v2578
  %v2580 = vand.u32 2147483647, %v170
  %vm2581 = vcmp.le.f32.partialorder %v2580, 0.7853982
  %vm2582 = vcmp.lt.s32.totalorder %v170, 0
  %v2583 = vand.u32 %v170, 2139095040
  %v2584 = vshrl.u32 %v2583, 23
  %v2585 = vsub.s32 %v2584, 127
  %v2586 = vand.u32 2147483647, %v170
  %v2587 = vand.u32 %v2586, 8388607
  %v2588 = vor.u32 %v2587, 8388608
  %v2589 = vsub.s32 0, %v2588
  %v2590 = vadd.s32 %v2585, 1
  %vm2591 = vcmp.gt.s32.totalorder %v2590, 0
  %v2592 = vsel %vm2591, %v2590, 0
  %v2593 = vshrl.u32 %v2592, 5
  %v2594 = vand.u32 %v2592, 31
  %v2595 = vsub.s32 32, %v2594
  %v2596 = vshrl.u32 683565275, %v2595
  %v2597 = vshll.u32 683565275, %v2594
  %v2598 = vshrl.u32 2475754826, %v2595
  %v2599 = vor.u32 %v2597, %v2598
  %v2600 = vshll.u32 2475754826, %v2594
  %v2601 = vshrl.u32 2131351028, %v2595
  %v2602 = vor.u32 %v2600, %v2601
  %v2603 = vshll.u32 2131351028, %v2594
  %v2604 = vshrl.u32 2102212464, %v2595
  %v2605 = vor.u32 %v2603, %v2604
  %v2606 = vshll.u32 2102212464, %v2594
  %v2607 = vshrl.u32 920167782, %v2595
  %v2608 = vor.u32 %v2606, %v2607
  %v2609 = vshll.u32 920167782, %v2594
  %v2610 = vshrl.u32 1326507024, %v2595
  %v2611 = vor.u32 %v2609, %v2610
  %vm2612 = vcmp.lt.s32.totalorder %v2593, 1
  %vm2613 = vcmp.lt.s32.totalorder %v2593, 2
  %vm2614 = vcmp.lt.s32.totalorder %v2593, 3
  %vm2615 = vcmp.lt.s32.totalorder %v2593, 4
  %v2616 = vsel %vm2612, %v2596, %v2599
  %v2617 = vsel %vm2615, %v2605, 2102212464
  %v2618 = vsel %vm2614, %v2602, %v2617
  %v2619 = vsel %vm2613, %v2616, %v2618
  %v2620 = vsel %vm2612, %v2599, %v2602
  %v2621 = vsel %vm2615, %v2608, 920167782
  %v2622 = vsel %vm2614, %v2605, %v2621
  %v2623 = vsel %vm2613, %v2620, %v2622
  %v2624 = vsel %vm2612, %v2602, %v2605
  %v2625 = vsel %vm2615, %v2611, 1326507024
  %v2626 = vsel %vm2614, %v2608, %v2625
  %v2627 = vsel %vm2613, %v2624, %v2626
  %v2628 = vshll.u32 %v2588, 8
  %v2629 = vmul.u32.u64.compose %v2628, %v2627
  %v2630 = vextract.low.u32 %v2629
  %v2631 = vextract.high.u32 %v2629
  %v2632 = vmul.u32.u64.compose %v2628, %v2623
  %v2633 = vextract.low.u32 %v2632
  %v2634 = vextract.high.u32 %v2632
  %v2635 = vmul.u32 %v2628, %v2619
  %v2636 = vadd.s32 %v2631, %v2633
  %vm2637 = vc.u32 %v2631, %v2633
  %v2638 = vadd.s32 %v2634, 1
  %v2639 = vsel %vm2637, %v2638, %v2634
  %v2640 = vadd.s32 %v2635, %v2639
  %v2641 = vadd.s32 %v2640, 536870912
  %v2642 = vshrl.u32 %v2641, 30
  %v2643 = vshll.u32 %v2642, 30
  %v2644 = vsub.s32 %v2640, %v2643
  %vm2645 = vcmp.lt.s32.totalorder %v2644, 0
  %v2646 = vsub.s32 0, %v2644
  %v2647 = vsel %vm2645, %v2646, %v2644
  %v2648 = vclz %v2647
  %v2649 = vsub.s32 %v2648, 2
  %vm2650 = vcmp.gt.s32.totalorder 0, %v2649
  %v2651 = vsel %vm2650, 0, %v2649
  %v2652 = vsub.s32 32, %v2651
  %v2653 = vshll.u32 %v2644, %v2651
  %v2654 = vshrl.u32 %v2636, %v2652
  %v2655 = vor.u32 %v2653, %v2654
  %v2656 = vsub.s32 4294967266, %v2651
  %v2657 = vadd.s32 %v2656, 127
  %v2658 = vshll.u32 %v2657, 23
  %v2659 = vor.u32 4788187, %v2658
  %v2660 = vand.u32 2147483647, %v2659
  %v2662 = vcvt.s32.f32 %v2655
  %v2663 = vmul.f32 %v2662, %v2660
  %v2664 = vxor.u32 %v2663, 2147483648
  %v2665 = vsel %vm2582, %v2664, %v2663
  %v2666 = vsub.s32 4, %v2642
  %v2667 = vsel %vm2582, %v2666, %v2642
  %v2668 = vsel %vm2581, %v170, %v2665
  %v2669 = vsel %vm2581, 0, %v2667
  %v2670 = vcosq.f32.pop %v2668
  %v2671 = vsinq.f32.pop %v2668
  %vm2672 = vweird.f32 %v170
  %v2673 = vand.u32 %v2669, 3
  %vm2674 = vcmp.lt.s32.totalorder %v2673, 2
  %vm2675 = vcmp.eq.s32.totalorder %v2673, 0
  %v2676 = vxor.u32 %v2671, 2147483648
  %v2677 = vsel %vm2675, %v2670, %v2676
  %vm2678 = vcmp.eq.s32.totalorder %v2673, 2
  %v2679 = vxor.u32 %v2670, 2147483648
  %v2680 = vsel %vm2678, %v2679, %v2671
  %v2681 = vsel %vm2674, %v2677, %v2680
  %v2682 = vsel %vm2672, nan, %v2681
  %v2683 = vand.u32 2147483647, %v171
  %vm2684 = vcmp.le.f32.partialorder %v2683, 0.7853982
  %vm2685 = vcmp.lt.s32.totalorder %v171, 0
  %v2686 = vand.u32 %v171, 2139095040
  %v2687 = vshrl.u32 %v2686, 23
  %v2688 = vsub.s32 %v2687, 127
  %v2689 = vand.u32 2147483647, %v171
  %v2690 = vand.u32 %v2689, 8388607
  %v2691 = vor.u32 %v2690, 8388608
  %v2692 = vsub.s32 0, %v2691
  %v2693 = vadd.s32 %v2688, 1
  %vm2694 = vcmp.gt.s32.totalorder %v2693, 0
  %v2695 = vsel %vm2694, %v2693, 0
  %v2696 = vshrl.u32 %v2695, 5
  %v2697 = vand.u32 %v2695, 31
  %v2698 = vsub.s32 32, %v2697
  %v2699 = vshrl.u32 683565275, %v2698
  %v2700 = vshll.u32 683565275, %v2697
  %v2701 = vshrl.u32 2475754826, %v2698
  %v2702 = vor.u32 %v2700, %v2701
  %v2703 = vshll.u32 2475754826, %v2697
  %v2704 = vshrl.u32 2131351028, %v2698
  %v2705 = vor.u32 %v2703, %v2704
  %v2706 = vshll.u32 2131351028, %v2697
  %v2707 = vshrl.u32 2102212464, %v2698
  %v2708 = vor.u32 %v2706, %v2707
  %v2709 = vshll.u32 2102212464, %v2697
  %v2710 = vshrl.u32 920167782, %v2698
  %v2711 = vor.u32 %v2709, %v2710
  %v2712 = vshll.u32 920167782, %v2697
  %v2713 = vshrl.u32 1326507024, %v2698
  %v2714 = vor.u32 %v2712, %v2713
  %vm2715 = vcmp.lt.s32.totalorder %v2696, 1
  %vm2716 = vcmp.lt.s32.totalorder %v2696, 2
  %vm2717 = vcmp.lt.s32.totalorder %v2696, 3
  %vm2718 = vcmp.lt.s32.totalorder %v2696, 4
  %v2719 = vsel %vm2715, %v2699, %v2702
  %v2720 = vsel %vm2718, %v2708, 2102212464
  %v2721 = vsel %vm2717, %v2705, %v2720
  %v2722 = vsel %vm2716, %v2719, %v2721
  %v2723 = vsel %vm2715, %v2702, %v2705
  %v2724 = vsel %vm2718, %v2711, 920167782
  %v2725 = vsel %vm2717, %v2708, %v2724
  %v2726 = vsel %vm2716, %v2723, %v2725
  %v2727 = vsel %vm2715, %v2705, %v2708
  %v2728 = vsel %vm2718, %v2714, 1326507024
  %v2729 = vsel %vm2717, %v2711, %v2728
  %v2730 = vsel %vm2716, %v2727, %v2729
  %v2731 = vshll.u32 %v2691, 8
  %v2732 = vmul.u32.u64.compose %v2731, %v2730
  %v2733 = vextract.low.u32 %v2732
  %v2734 = vextract.high.u32 %v2732
  %v2735 = vmul.u32.u64.compose %v2731, %v2726
  %v2736 = vextract.low.u32 %v2735
  %v2737 = vextract.high.u32 %v2735
  %v2738 = vmul.u32 %v2731, %v2722
  %v2739 = vadd.s32 %v2734, %v2736
  %vm2740 = vc.u32 %v2734, %v2736
  %v2741 = vadd.s32 %v2737, 1
  %v2742 = vsel %vm2740, %v2741, %v2737
  %v2743 = vadd.s32 %v2738, %v2742
  %v2744 = vadd.s32 %v2743, 536870912
  %v2745 = vshrl.u32 %v2744, 30
  %v2746 = vshll.u32 %v2745, 30
  %v2747 = vsub.s32 %v2743, %v2746
  %vm2748 = vcmp.lt.s32.totalorder %v2747, 0
  %v2749 = vsub.s32 0, %v2747
  %v2750 = vsel %vm2748, %v2749, %v2747
  %v2751 = vclz %v2750
  %v2752 = vsub.s32 %v2751, 2
  %vm2753 = vcmp.gt.s32.totalorder 0, %v2752
  %v2754 = vsel %vm2753, 0, %v2752
  %v2755 = vsub.s32 32, %v2754
  %v2756 = vshll.u32 %v2747, %v2754
  %v2757 = vshrl.u32 %v2739, %v2755
  %v2758 = vor.u32 %v2756, %v2757
  %v2759 = vsub.s32 4294967266, %v2754
  %v2760 = vadd.s32 %v2759, 127
  %v2761 = vshll.u32 %v2760, 23
  %v2762 = vor.u32 4788187, %v2761
  %v2763 = vand.u32 2147483647, %v2762
  %v2765 = vcvt.s32.f32 %v2758
  %v2766 = vmul.f32 %v2765, %v2763
  %v2767 = vxor.u32 %v2766, 2147483648
  %v2768 = vsel %vm2685, %v2767, %v2766
  %v2769 = vsub.s32 4, %v2745
  %v2770 = vsel %vm2685, %v2769, %v2745
  %v2771 = vsel %vm2684, %v171, %v2768
  %v2772 = vsel %vm2684, 0, %v2770
  %v2773 = vcosq.f32.pop %v2771
  %v2774 = vsinq.f32.pop %v2771
  %vm2775 = vweird.f32 %v171
  %v2776 = vand.u32 %v2772, 3
  %vm2777 = vcmp.lt.s32.totalorder %v2776, 2
  %vm2778 = vcmp.eq.s32.totalorder %v2776, 0
  %v2779 = vxor.u32 %v2774, 2147483648
  %v2780 = vsel %vm2778, %v2773, %v2779
  %vm2781 = vcmp.eq.s32.totalorder %v2776, 2
  %v2782 = vxor.u32 %v2773, 2147483648
  %v2783 = vsel %vm2781, %v2782, %v2774
  %v2784 = vsel %vm2777, %v2780, %v2783
  %v2785 = vsel %vm2775, nan, %v2784
  %v2786 = vand.u32 2147483647, %v172
  %vm2787 = vcmp.le.f32.partialorder %v2786, 0.7853982
  %vm2788 = vcmp.lt.s32.totalorder %v172, 0
  %v2789 = vand.u32 %v172, 2139095040
  %v2790 = vshrl.u32 %v2789, 23
  %v2791 = vsub.s32 %v2790, 127
  %v2792 = vand.u32 2147483647, %v172
  %v2793 = vand.u32 %v2792, 8388607
  %v2794 = vor.u32 %v2793, 8388608
  %v2795 = vsub.s32 0, %v2794
  %v2796 = vadd.s32 %v2791, 1
  %vm2797 = vcmp.gt.s32.totalorder %v2796, 0
  %v2798 = vsel %vm2797, %v2796, 0
  %v2799 = vshrl.u32 %v2798, 5
  %v2800 = vand.u32 %v2798, 31
  %v2801 = vsub.s32 32, %v2800
  %v2802 = vshrl.u32 683565275, %v2801
  %v2803 = vshll.u32 683565275, %v2800
  %v2804 = vshrl.u32 2475754826, %v2801
  %v2805 = vor.u32 %v2803, %v2804
  %v2806 = vshll.u32 2475754826, %v2800
  %v2807 = vshrl.u32 2131351028, %v2801
  %v2808 = vor.u32 %v2806, %v2807
  %v2809 = vshll.u32 2131351028, %v2800
  %v2810 = vshrl.u32 2102212464, %v2801
  %v2811 = vor.u32 %v2809, %v2810
  %v2812 = vshll.u32 2102212464, %v2800
  %v2813 = vshrl.u32 920167782, %v2801
  %v2814 = vor.u32 %v2812, %v2813
  %v2815 = vshll.u32 920167782, %v2800
  %v2816 = vshrl.u32 1326507024, %v2801
  %v2817 = vor.u32 %v2815, %v2816
  %vm2818 = vcmp.lt.s32.totalorder %v2799, 1
  %vm2819 = vcmp.lt.s32.totalorder %v2799, 2
  %vm2820 = vcmp.lt.s32.totalorder %v2799, 3
  %vm2821 = vcmp.lt.s32.totalorder %v2799, 4
  %v2822 = vsel %vm2818, %v2802, %v2805
  %v2823 = vsel %vm2821, %v2811, 2102212464
  %v2824 = vsel %vm2820, %v2808, %v2823
  %v2825 = vsel %vm2819, %v2822, %v2824
  %v2826 = vsel %vm2818, %v2805, %v2808
  %v2827 = vsel %vm2821, %v2814, 920167782
  %v2828 = vsel %vm2820, %v2811, %v2827
  %v2829 = vsel %vm2819, %v2826, %v2828
  %v2830 = vsel %vm2818, %v2808, %v2811
  %v2831 = vsel %vm2821, %v2817, 1326507024
  %v2832 = vsel %vm2820, %v2814, %v2831
  %v2833 = vsel %vm2819, %v2830, %v2832
  %v2834 = vshll.u32 %v2794, 8
  %v2835 = vmul.u32.u64.compose %v2834, %v2833
  %v2836 = vextract.low.u32 %v2835
  %v2837 = vextract.high.u32 %v2835
  %v2838 = vmul.u32.u64.compose %v2834, %v2829
  %v2839 = vextract.low.u32 %v2838
  %v2840 = vextract.high.u32 %v2838
  %v2841 = vmul.u32 %v2834, %v2825
  %v2842 = vadd.s32 %v2837, %v2839
  %vm2843 = vc.u32 %v2837, %v2839
  %v2844 = vadd.s32 %v2840, 1
  %v2845 = vsel %vm2843, %v2844, %v2840
  %v2846 = vadd.s32 %v2841, %v2845
  %v2847 = vadd.s32 %v2846, 536870912
  %v2848 = vshrl.u32 %v2847, 30
  %v2849 = vshll.u32 %v2848, 30
  %v2850 = vsub.s32 %v2846, %v2849
  %vm2851 = vcmp.lt.s32.totalorder %v2850, 0
  %v2852 = vsub.s32 0, %v2850
  %v2853 = vsel %vm2851, %v2852, %v2850
  %v2854 = vclz %v2853
  %v2855 = vsub.s32 %v2854, 2
  %vm2856 = vcmp.gt.s32.totalorder 0, %v2855
  %v2857 = vsel %vm2856, 0, %v2855
  %v2858 = vsub.s32 32, %v2857
  %v2859 = vshll.u32 %v2850, %v2857
  %v2860 = vshrl.u32 %v2842, %v2858
  %v2861 = vor.u32 %v2859, %v2860
  %v2862 = vsub.s32 4294967266, %v2857
  %v2863 = vadd.s32 %v2862, 127
  %v2864 = vshll.u32 %v2863, 23
  %v2865 = vor.u32 4788187, %v2864
  %v2866 = vand.u32 2147483647, %v2865
  %v2868 = vcvt.s32.f32 %v2861
  %v2869 = vmul.f32 %v2868, %v2866
  %v2870 = vxor.u32 %v2869, 2147483648
  %v2871 = vsel %vm2788, %v2870, %v2869
  %v2872 = vsub.s32 4, %v2848
  %v2873 = vsel %vm2788, %v2872, %v2848
  %v2874 = vsel %vm2787, %v172, %v2871
  %v2875 = vsel %vm2787, 0, %v2873
  %v2876 = vcosq.f32.pop %v2874
  %v2877 = vsinq.f32.pop %v2874
  %vm2878 = vweird.f32 %v172
  %v2879 = vand.u32 %v2875, 3
  %vm2880 = vcmp.lt.s32.totalorder %v2879, 2
  %vm2881 = vcmp.eq.s32.totalorder %v2879, 0
  %v2882 = vxor.u32 %v2877, 2147483648
  %v2883 = vsel %vm2881, %v2876, %v2882
  %vm2884 = vcmp.eq.s32.totalorder %v2879, 2
  %v2885 = vxor.u32 %v2876, 2147483648
  %v2886 = vsel %vm2884, %v2885, %v2877
  %v2887 = vsel %vm2880, %v2883, %v2886
  %v2888 = vsel %vm2878, nan, %v2887
  %v2889 = vand.u32 2147483647, %v173
  %vm2890 = vcmp.le.f32.partialorder %v2889, 0.7853982
  %vm2891 = vcmp.lt.s32.totalorder %v173, 0
  %v2892 = vand.u32 %v173, 2139095040
  %v2893 = vshrl.u32 %v2892, 23
  %v2894 = vsub.s32 %v2893, 127
  %v2895 = vand.u32 2147483647, %v173
  %v2896 = vand.u32 %v2895, 8388607
  %v2897 = vor.u32 %v2896, 8388608
  %v2898 = vsub.s32 0, %v2897
  %v2899 = vadd.s32 %v2894, 1
  %vm2900 = vcmp.gt.s32.totalorder %v2899, 0
  %v2901 = vsel %vm2900, %v2899, 0
  %v2902 = vshrl.u32 %v2901, 5
  %v2903 = vand.u32 %v2901, 31
  %v2904 = vsub.s32 32, %v2903
  %v2905 = vshrl.u32 683565275, %v2904
  %v2906 = vshll.u32 683565275, %v2903
  %v2907 = vshrl.u32 2475754826, %v2904
  %v2908 = vor.u32 %v2906, %v2907
  %v2909 = vshll.u32 2475754826, %v2903
  %v2910 = vshrl.u32 2131351028, %v2904
  %v2911 = vor.u32 %v2909, %v2910
  %v2912 = vshll.u32 2131351028, %v2903
  %v2913 = vshrl.u32 2102212464, %v2904
  %v2914 = vor.u32 %v2912, %v2913
  %v2915 = vshll.u32 2102212464, %v2903
  %v2916 = vshrl.u32 920167782, %v2904
  %v2917 = vor.u32 %v2915, %v2916
  %v2918 = vshll.u32 920167782, %v2903
  %v2919 = vshrl.u32 1326507024, %v2904
  %v2920 = vor.u32 %v2918, %v2919
  %vm2921 = vcmp.lt.s32.totalorder %v2902, 1
  %vm2922 = vcmp.lt.s32.totalorder %v2902, 2
  %vm2923 = vcmp.lt.s32.totalorder %v2902, 3
  %vm2924 = vcmp.lt.s32.totalorder %v2902, 4
  %v2925 = vsel %vm2921, %v2905, %v2908
  %v2926 = vsel %vm2924, %v2914, 2102212464
  %v2927 = vsel %vm2923, %v2911, %v2926
  %v2928 = vsel %vm2922, %v2925, %v2927
  %v2929 = vsel %vm2921, %v2908, %v2911
  %v2930 = vsel %vm2924, %v2917, 920167782
  %v2931 = vsel %vm2923, %v2914, %v2930
  %v2932 = vsel %vm2922, %v2929, %v2931
  %v2933 = vsel %vm2921, %v2911, %v2914
  %v2934 = vsel %vm2924, %v2920, 1326507024
  %v2935 = vsel %vm2923, %v2917, %v2934
  %v2936 = vsel %vm2922, %v2933, %v2935
  %v2937 = vshll.u32 %v2897, 8
  %v2938 = vmul.u32.u64.compose %v2937, %v2936
  %v2939 = vextract.low.u32 %v2938
  %v2940 = vextract.high.u32 %v2938
  %v2941 = vmul.u32.u64.compose %v2937, %v2932
  %v2942 = vextract.low.u32 %v2941
  %v2943 = vextract.high.u32 %v2941
  %v2944 = vmul.u32 %v2937, %v2928
  %v2945 = vadd.s32 %v2940, %v2942
  %vm2946 = vc.u32 %v2940, %v2942
  %v2947 = vadd.s32 %v2943, 1
  %v2948 = vsel %vm2946, %v2947, %v2943
  %v2949 = vadd.s32 %v2944, %v2948
  %v2950 = vadd.s32 %v2949, 536870912
  %v2951 = vshrl.u32 %v2950, 30
  %v2952 = vshll.u32 %v2951, 30
  %v2953 = vsub.s32 %v2949, %v2952
  %vm2954 = vcmp.lt.s32.totalorder %v2953, 0
  %v2955 = vsub.s32 0, %v2953
  %v2956 = vsel %vm2954, %v2955, %v2953
  %v2957 = vclz %v2956
  %v2958 = vsub.s32 %v2957, 2
  %vm2959 = vcmp.gt.s32.totalorder 0, %v2958
  %v2960 = vsel %vm2959, 0, %v2958
  %v2961 = vsub.s32 32, %v2960
  %v2962 = vshll.u32 %v2953, %v2960
  %v2963 = vshrl.u32 %v2945, %v2961
  %v2964 = vor.u32 %v2962, %v2963
  %v2965 = vsub.s32 4294967266, %v2960
  %v2966 = vadd.s32 %v2965, 127
  %v2967 = vshll.u32 %v2966, 23
  %v2968 = vor.u32 4788187, %v2967
  %v2969 = vand.u32 2147483647, %v2968
  %v2971 = vcvt.s32.f32 %v2964
  %v2972 = vmul.f32 %v2971, %v2969
  %v2973 = vxor.u32 %v2972, 2147483648
  %v2974 = vsel %vm2891, %v2973, %v2972
  %v2975 = vsub.s32 4, %v2951
  %v2976 = vsel %vm2891, %v2975, %v2951
  %v2977 = vsel %vm2890, %v173, %v2974
  %v2978 = vsel %vm2890, 0, %v2976
  %v2979 = vcosq.f32.pop %v2977
  %v2980 = vsinq.f32.pop %v2977
  %vm2981 = vweird.f32 %v173
  %v2982 = vand.u32 %v2978, 3
  %vm2983 = vcmp.lt.s32.totalorder %v2982, 2
  %vm2984 = vcmp.eq.s32.totalorder %v2982, 0
  %v2985 = vxor.u32 %v2980, 2147483648
  %v2986 = vsel %vm2984, %v2979, %v2985
  %vm2987 = vcmp.eq.s32.totalorder %v2982, 2
  %v2988 = vxor.u32 %v2979, 2147483648
  %v2989 = vsel %vm2987, %v2988, %v2980
  %v2990 = vsel %vm2983, %v2986, %v2989
  %v2991 = vsel %vm2981, nan, %v2990
  %v2992 = vand.u32 2147483647, %v174
  %vm2993 = vcmp.le.f32.partialorder %v2992, 0.7853982
  %vm2994 = vcmp.lt.s32.totalorder %v174, 0
  %v2995 = vand.u32 %v174, 2139095040
  %v2996 = vshrl.u32 %v2995, 23
  %v2997 = vsub.s32 %v2996, 127
  %v2998 = vand.u32 2147483647, %v174
  %v2999 = vand.u32 %v2998, 8388607
  %v3000 = vor.u32 %v2999, 8388608
  %v3001 = vsub.s32 0, %v3000
  %v3002 = vadd.s32 %v2997, 1
  %vm3003 = vcmp.gt.s32.totalorder %v3002, 0
  %v3004 = vsel %vm3003, %v3002, 0
  %v3005 = vshrl.u32 %v3004, 5
  %v3006 = vand.u32 %v3004, 31
  %v3007 = vsub.s32 32, %v3006
  %v3008 = vshrl.u32 683565275, %v3007
  %v3009 = vshll.u32 683565275, %v3006
  %v3010 = vshrl.u32 2475754826, %v3007
  %v3011 = vor.u32 %v3009, %v3010
  %v3012 = vshll.u32 2475754826, %v3006
  %v3013 = vshrl.u32 2131351028, %v3007
  %v3014 = vor.u32 %v3012, %v3013
  %v3015 = vshll.u32 2131351028, %v3006
  %v3016 = vshrl.u32 2102212464, %v3007
  %v3017 = vor.u32 %v3015, %v3016
  %v3018 = vshll.u32 2102212464, %v3006
  %v3019 = vshrl.u32 920167782, %v3007
  %v3020 = vor.u32 %v3018, %v3019
  %v3021 = vshll.u32 920167782, %v3006
  %v3022 = vshrl.u32 1326507024, %v3007
  %v3023 = vor.u32 %v3021, %v3022
  %vm3024 = vcmp.lt.s32.totalorder %v3005, 1
  %vm3025 = vcmp.lt.s32.totalorder %v3005, 2
  %vm3026 = vcmp.lt.s32.totalorder %v3005, 3
  %vm3027 = vcmp.lt.s32.totalorder %v3005, 4
  %v3028 = vsel %vm3024, %v3008, %v3011
  %v3029 = vsel %vm3027, %v3017, 2102212464
  %v3030 = vsel %vm3026, %v3014, %v3029
  %v3031 = vsel %vm3025, %v3028, %v3030
  %v3032 = vsel %vm3024, %v3011, %v3014
  %v3033 = vsel %vm3027, %v3020, 920167782
  %v3034 = vsel %vm3026, %v3017, %v3033
  %v3035 = vsel %vm3025, %v3032, %v3034
  %v3036 = vsel %vm3024, %v3014, %v3017
  %v3037 = vsel %vm3027, %v3023, 1326507024
  %v3038 = vsel %vm3026, %v3020, %v3037
  %v3039 = vsel %vm3025, %v3036, %v3038
  %v3040 = vshll.u32 %v3000, 8
  %v3041 = vmul.u32.u64.compose %v3040, %v3039
  %v3042 = vextract.low.u32 %v3041
  %v3043 = vextract.high.u32 %v3041
  %v3044 = vmul.u32.u64.compose %v3040, %v3035
  %v3045 = vextract.low.u32 %v3044
  %v3046 = vextract.high.u32 %v3044
  %v3047 = vmul.u32 %v3040, %v3031
  %v3048 = vadd.s32 %v3043, %v3045
  %vm3049 = vc.u32 %v3043, %v3045
  %v3050 = vadd.s32 %v3046, 1
  %v3051 = vsel %vm3049, %v3050, %v3046
  %v3052 = vadd.s32 %v3047, %v3051
  %v3053 = vadd.s32 %v3052, 536870912
  %v3054 = vshrl.u32 %v3053, 30
  %v3055 = vshll.u32 %v3054, 30
  %v3056 = vsub.s32 %v3052, %v3055
  %vm3057 = vcmp.lt.s32.totalorder %v3056, 0
  %v3058 = vsub.s32 0, %v3056
  %v3059 = vsel %vm3057, %v3058, %v3056
  %v3060 = vclz %v3059
  %v3061 = vsub.s32 %v3060, 2
  %vm3062 = vcmp.gt.s32.totalorder 0, %v3061
  %v3063 = vsel %vm3062, 0, %v3061
  %v3064 = vsub.s32 32, %v3063
  %v3065 = vshll.u32 %v3056, %v3063
  %v3066 = vshrl.u32 %v3048, %v3064
  %v3067 = vor.u32 %v3065, %v3066
  %v3068 = vsub.s32 4294967266, %v3063
  %v3069 = vadd.s32 %v3068, 127
  %v3070 = vshll.u32 %v3069, 23
  %v3071 = vor.u32 4788187, %v3070
  %v3072 = vand.u32 2147483647, %v3071
  %v3074 = vcvt.s32.f32 %v3067
  %v3075 = vmul.f32 %v3074, %v3072
  %v3076 = vxor.u32 %v3075, 2147483648
  %v3077 = vsel %vm2994, %v3076, %v3075
  %v3078 = vsub.s32 4, %v3054
  %v3079 = vsel %vm2994, %v3078, %v3054
  %v3080 = vsel %vm2993, %v174, %v3077
  %v3081 = vsel %vm2993, 0, %v3079
  %v3082 = vcosq.f32.pop %v3080
  %v3083 = vsinq.f32.pop %v3080
  %vm3084 = vweird.f32 %v174
  %v3085 = vand.u32 %v3081, 3
  %vm3086 = vcmp.lt.s32.totalorder %v3085, 2
  %vm3087 = vcmp.eq.s32.totalorder %v3085, 0
  %v3088 = vxor.u32 %v3083, 2147483648
  %v3089 = vsel %vm3087, %v3082, %v3088
  %vm3090 = vcmp.eq.s32.totalorder %v3085, 2
  %v3091 = vxor.u32 %v3082, 2147483648
  %v3092 = vsel %vm3090, %v3091, %v3083
  %v3093 = vsel %vm3086, %v3089, %v3092
  %v3094 = vsel %vm3084, nan, %v3093
  %v3095 = vand.u32 2147483647, %v175
  %vm3096 = vcmp.le.f32.partialorder %v3095, 0.7853982
  %vm3097 = vcmp.lt.s32.totalorder %v175, 0
  %v3098 = vand.u32 %v175, 2139095040
  %v3099 = vshrl.u32 %v3098, 23
  %v3100 = vsub.s32 %v3099, 127
  %v3101 = vand.u32 2147483647, %v175
  %v3102 = vand.u32 %v3101, 8388607
  %v3103 = vor.u32 %v3102, 8388608
  %v3104 = vsub.s32 0, %v3103
  %v3105 = vadd.s32 %v3100, 1
  %vm3106 = vcmp.gt.s32.totalorder %v3105, 0
  %v3107 = vsel %vm3106, %v3105, 0
  %v3108 = vshrl.u32 %v3107, 5
  %v3109 = vand.u32 %v3107, 31
  %v3110 = vsub.s32 32, %v3109
  %v3111 = vshrl.u32 683565275, %v3110
  %v3112 = vshll.u32 683565275, %v3109
  %v3113 = vshrl.u32 2475754826, %v3110
  %v3114 = vor.u32 %v3112, %v3113
  %v3115 = vshll.u32 2475754826, %v3109
  %v3116 = vshrl.u32 2131351028, %v3110
  %v3117 = vor.u32 %v3115, %v3116
  %v3118 = vshll.u32 2131351028, %v3109
  %v3119 = vshrl.u32 2102212464, %v3110
  %v3120 = vor.u32 %v3118, %v3119
  %v3121 = vshll.u32 2102212464, %v3109
  %v3122 = vshrl.u32 920167782, %v3110
  %v3123 = vor.u32 %v3121, %v3122
  %v3124 = vshll.u32 920167782, %v3109
  %v3125 = vshrl.u32 1326507024, %v3110
  %v3126 = vor.u32 %v3124, %v3125
  %vm3127 = vcmp.lt.s32.totalorder %v3108, 1
  %vm3128 = vcmp.lt.s32.totalorder %v3108, 2
  %vm3129 = vcmp.lt.s32.totalorder %v3108, 3
  %vm3130 = vcmp.lt.s32.totalorder %v3108, 4
  %v3131 = vsel %vm3127, %v3111, %v3114
  %v3132 = vsel %vm3130, %v3120, 2102212464
  %v3133 = vsel %vm3129, %v3117, %v3132
  %v3134 = vsel %vm3128, %v3131, %v3133
  %v3135 = vsel %vm3127, %v3114, %v3117
  %v3136 = vsel %vm3130, %v3123, 920167782
  %v3137 = vsel %vm3129, %v3120, %v3136
  %v3138 = vsel %vm3128, %v3135, %v3137
  %v3139 = vsel %vm3127, %v3117, %v3120
  %v3140 = vsel %vm3130, %v3126, 1326507024
  %v3141 = vsel %vm3129, %v3123, %v3140
  %v3142 = vsel %vm3128, %v3139, %v3141
  %v3143 = vshll.u32 %v3103, 8
  %v3144 = vmul.u32.u64.compose %v3143, %v3142
  %v3145 = vextract.low.u32 %v3144
  %v3146 = vextract.high.u32 %v3144
  %v3147 = vmul.u32.u64.compose %v3143, %v3138
  %v3148 = vextract.low.u32 %v3147
  %v3149 = vextract.high.u32 %v3147
  %v3150 = vmul.u32 %v3143, %v3134
  %v3151 = vadd.s32 %v3146, %v3148
  %vm3152 = vc.u32 %v3146, %v3148
  %v3153 = vadd.s32 %v3149, 1
  %v3154 = vsel %vm3152, %v3153, %v3149
  %v3155 = vadd.s32 %v3150, %v3154
  %v3156 = vadd.s32 %v3155, 536870912
  %v3157 = vshrl.u32 %v3156, 30
  %v3158 = vshll.u32 %v3157, 30
  %v3159 = vsub.s32 %v3155, %v3158
  %vm3160 = vcmp.lt.s32.totalorder %v3159, 0
  %v3161 = vsub.s32 0, %v3159
  %v3162 = vsel %vm3160, %v3161, %v3159
  %v3163 = vclz %v3162
  %v3164 = vsub.s32 %v3163, 2
  %vm3165 = vcmp.gt.s32.totalorder 0, %v3164
  %v3166 = vsel %vm3165, 0, %v3164
  %v3167 = vsub.s32 32, %v3166
  %v3168 = vshll.u32 %v3159, %v3166
  %v3169 = vshrl.u32 %v3151, %v3167
  %v3170 = vor.u32 %v3168, %v3169
  %v3171 = vsub.s32 4294967266, %v3166
  %v3172 = vadd.s32 %v3171, 127
  %v3173 = vshll.u32 %v3172, 23
  %v3174 = vor.u32 4788187, %v3173
  %v3175 = vand.u32 2147483647, %v3174
  %v3177 = vcvt.s32.f32 %v3170
  %v3178 = vmul.f32 %v3177, %v3175
  %v3179 = vxor.u32 %v3178, 2147483648
  %v3180 = vsel %vm3097, %v3179, %v3178
  %v3181 = vsub.s32 4, %v3157
  %v3182 = vsel %vm3097, %v3181, %v3157
  %v3183 = vsel %vm3096, %v175, %v3180
  %v3184 = vsel %vm3096, 0, %v3182
  %v3185 = vcosq.f32.pop %v3183
  %v3186 = vsinq.f32.pop %v3183
  %vm3187 = vweird.f32 %v175
  %v3188 = vand.u32 %v3184, 3
  %vm3189 = vcmp.lt.s32.totalorder %v3188, 2
  %vm3190 = vcmp.eq.s32.totalorder %v3188, 0
  %v3191 = vxor.u32 %v3186, 2147483648
  %v3192 = vsel %vm3190, %v3185, %v3191
  %vm3193 = vcmp.eq.s32.totalorder %v3188, 2
  %v3194 = vxor.u32 %v3185, 2147483648
  %v3195 = vsel %vm3193, %v3194, %v3186
  %v3196 = vsel %vm3189, %v3192, %v3195
  %v3197 = vsel %vm3187, nan, %v3196
  %v3198 = vand.u32 2147483647, %v176
  %vm3199 = vcmp.le.f32.partialorder %v3198, 0.7853982
  %vm3200 = vcmp.lt.s32.totalorder %v176, 0
  %v3201 = vand.u32 %v176, 2139095040
  %v3202 = vshrl.u32 %v3201, 23
  %v3203 = vsub.s32 %v3202, 127
  %v3204 = vand.u32 2147483647, %v176
  %v3205 = vand.u32 %v3204, 8388607
  %v3206 = vor.u32 %v3205, 8388608
  %v3207 = vsub.s32 0, %v3206
  %v3208 = vadd.s32 %v3203, 1
  %vm3209 = vcmp.gt.s32.totalorder %v3208, 0
  %v3210 = vsel %vm3209, %v3208, 0
  %v3211 = vshrl.u32 %v3210, 5
  %v3212 = vand.u32 %v3210, 31
  %v3213 = vsub.s32 32, %v3212
  %v3214 = vshrl.u32 683565275, %v3213
  %v3215 = vshll.u32 683565275, %v3212
  %v3216 = vshrl.u32 2475754826, %v3213
  %v3217 = vor.u32 %v3215, %v3216
  %v3218 = vshll.u32 2475754826, %v3212
  %v3219 = vshrl.u32 2131351028, %v3213
  %v3220 = vor.u32 %v3218, %v3219
  %v3221 = vshll.u32 2131351028, %v3212
  %v3222 = vshrl.u32 2102212464, %v3213
  %v3223 = vor.u32 %v3221, %v3222
  %v3224 = vshll.u32 2102212464, %v3212
  %v3225 = vshrl.u32 920167782, %v3213
  %v3226 = vor.u32 %v3224, %v3225
  %v3227 = vshll.u32 920167782, %v3212
  %v3228 = vshrl.u32 1326507024, %v3213
  %v3229 = vor.u32 %v3227, %v3228
  %vm3230 = vcmp.lt.s32.totalorder %v3211, 1
  %vm3231 = vcmp.lt.s32.totalorder %v3211, 2
  %vm3232 = vcmp.lt.s32.totalorder %v3211, 3
  %vm3233 = vcmp.lt.s32.totalorder %v3211, 4
  %v3234 = vsel %vm3230, %v3214, %v3217
  %v3235 = vsel %vm3233, %v3223, 2102212464
  %v3236 = vsel %vm3232, %v3220, %v3235
  %v3237 = vsel %vm3231, %v3234, %v3236
  %v3238 = vsel %vm3230, %v3217, %v3220
  %v3239 = vsel %vm3233, %v3226, 920167782
  %v3240 = vsel %vm3232, %v3223, %v3239
  %v3241 = vsel %vm3231, %v3238, %v3240
  %v3242 = vsel %vm3230, %v3220, %v3223
  %v3243 = vsel %vm3233, %v3229, 1326507024
  %v3244 = vsel %vm3232, %v3226, %v3243
  %v3245 = vsel %vm3231, %v3242, %v3244
  %v3246 = vshll.u32 %v3206, 8
  %v3247 = vmul.u32.u64.compose %v3246, %v3245
  %v3248 = vextract.low.u32 %v3247
  %v3249 = vextract.high.u32 %v3247
  %v3250 = vmul.u32.u64.compose %v3246, %v3241
  %v3251 = vextract.low.u32 %v3250
  %v3252 = vextract.high.u32 %v3250
  %v3253 = vmul.u32 %v3246, %v3237
  %v3254 = vadd.s32 %v3249, %v3251
  %vm3255 = vc.u32 %v3249, %v3251
  %v3256 = vadd.s32 %v3252, 1
  %v3257 = vsel %vm3255, %v3256, %v3252
  %v3258 = vadd.s32 %v3253, %v3257
  %v3259 = vadd.s32 %v3258, 536870912
  %v3260 = vshrl.u32 %v3259, 30
  %v3261 = vshll.u32 %v3260, 30
  %v3262 = vsub.s32 %v3258, %v3261
  %vm3263 = vcmp.lt.s32.totalorder %v3262, 0
  %v3264 = vsub.s32 0, %v3262
  %v3265 = vsel %vm3263, %v3264, %v3262
  %v3266 = vclz %v3265
  %v3267 = vsub.s32 %v3266, 2
  %vm3268 = vcmp.gt.s32.totalorder 0, %v3267
  %v3269 = vsel %vm3268, 0, %v3267
  %v3270 = vsub.s32 32, %v3269
  %v3271 = vshll.u32 %v3262, %v3269
  %v3272 = vshrl.u32 %v3254, %v3270
  %v3273 = vor.u32 %v3271, %v3272
  %v3274 = vsub.s32 4294967266, %v3269
  %v3275 = vadd.s32 %v3274, 127
  %v3276 = vshll.u32 %v3275, 23
  %v3277 = vor.u32 4788187, %v3276
  %v3278 = vand.u32 2147483647, %v3277
  %v3280 = vcvt.s32.f32 %v3273
  %v3281 = vmul.f32 %v3280, %v3278
  %v3282 = vxor.u32 %v3281, 2147483648
  %v3283 = vsel %vm3200, %v3282, %v3281
  %v3284 = vsub.s32 4, %v3260
  %v3285 = vsel %vm3200, %v3284, %v3260
  %v3286 = vsel %vm3199, %v176, %v3283
  %v3287 = vsel %vm3199, 0, %v3285
  %v3288 = vcosq.f32.pop %v3286
  %v3289 = vsinq.f32.pop %v3286
  %vm3290 = vweird.f32 %v176
  %v3291 = vand.u32 %v3287, 3
  %vm3292 = vcmp.lt.s32.totalorder %v3291, 2
  %vm3293 = vcmp.eq.s32.totalorder %v3291, 0
  %v3294 = vxor.u32 %v3289, 2147483648
  %v3295 = vsel %vm3293, %v3288, %v3294
  %vm3296 = vcmp.eq.s32.totalorder %v3291, 2
  %v3297 = vxor.u32 %v3288, 2147483648
  %v3298 = vsel %vm3296, %v3297, %v3289
  %v3299 = vsel %vm3292, %v3295, %v3298
  %v3300 = vsel %vm3290, nan, %v3299
  %v3301 = vand.u32 2147483647, %v177
  %vm3302 = vcmp.le.f32.partialorder %v3301, 0.7853982
  %vm3303 = vcmp.lt.s32.totalorder %v177, 0
  %v3304 = vand.u32 %v177, 2139095040
  %v3305 = vshrl.u32 %v3304, 23
  %v3306 = vsub.s32 %v3305, 127
  %v3307 = vand.u32 2147483647, %v177
  %v3308 = vand.u32 %v3307, 8388607
  %v3309 = vor.u32 %v3308, 8388608
  %v3310 = vsub.s32 0, %v3309
  %v3311 = vadd.s32 %v3306, 1
  %vm3312 = vcmp.gt.s32.totalorder %v3311, 0
  %v3313 = vsel %vm3312, %v3311, 0
  %v3314 = vshrl.u32 %v3313, 5
  %v3315 = vand.u32 %v3313, 31
  %v3316 = vsub.s32 32, %v3315
  %v3317 = vshrl.u32 683565275, %v3316
  %v3318 = vshll.u32 683565275, %v3315
  %v3319 = vshrl.u32 2475754826, %v3316
  %v3320 = vor.u32 %v3318, %v3319
  %v3321 = vshll.u32 2475754826, %v3315
  %v3322 = vshrl.u32 2131351028, %v3316
  %v3323 = vor.u32 %v3321, %v3322
  %v3324 = vshll.u32 2131351028, %v3315
  %v3325 = vshrl.u32 2102212464, %v3316
  %v3326 = vor.u32 %v3324, %v3325
  %v3327 = vshll.u32 2102212464, %v3315
  %v3328 = vshrl.u32 920167782, %v3316
  %v3329 = vor.u32 %v3327, %v3328
  %v3330 = vshll.u32 920167782, %v3315
  %v3331 = vshrl.u32 1326507024, %v3316
  %v3332 = vor.u32 %v3330, %v3331
  %vm3333 = vcmp.lt.s32.totalorder %v3314, 1
  %vm3334 = vcmp.lt.s32.totalorder %v3314, 2
  %vm3335 = vcmp.lt.s32.totalorder %v3314, 3
  %vm3336 = vcmp.lt.s32.totalorder %v3314, 4
  %v3337 = vsel %vm3333, %v3317, %v3320
  %v3338 = vsel %vm3336, %v3326, 2102212464
  %v3339 = vsel %vm3335, %v3323, %v3338
  %v3340 = vsel %vm3334, %v3337, %v3339
  %v3341 = vsel %vm3333, %v3320, %v3323
  %v3342 = vsel %vm3336, %v3329, 920167782
  %v3343 = vsel %vm3335, %v3326, %v3342
  %v3344 = vsel %vm3334, %v3341, %v3343
  %v3345 = vsel %vm3333, %v3323, %v3326
  %v3346 = vsel %vm3336, %v3332, 1326507024
  %v3347 = vsel %vm3335, %v3329, %v3346
  %v3348 = vsel %vm3334, %v3345, %v3347
  %v3349 = vshll.u32 %v3309, 8
  %v3350 = vmul.u32.u64.compose %v3349, %v3348
  %v3351 = vextract.low.u32 %v3350
  %v3352 = vextract.high.u32 %v3350
  %v3353 = vmul.u32.u64.compose %v3349, %v3344
  %v3354 = vextract.low.u32 %v3353
  %v3355 = vextract.high.u32 %v3353
  %v3356 = vmul.u32 %v3349, %v3340
  %v3357 = vadd.s32 %v3352, %v3354
  %vm3358 = vc.u32 %v3352, %v3354
  %v3359 = vadd.s32 %v3355, 1
  %v3360 = vsel %vm3358, %v3359, %v3355
  %v3361 = vadd.s32 %v3356, %v3360
  %v3362 = vadd.s32 %v3361, 536870912
  %v3363 = vshrl.u32 %v3362, 30
  %v3364 = vshll.u32 %v3363, 30
  %v3365 = vsub.s32 %v3361, %v3364
  %vm3366 = vcmp.lt.s32.totalorder %v3365, 0
  %v3367 = vsub.s32 0, %v3365
  %v3368 = vsel %vm3366, %v3367, %v3365
  %v3369 = vclz %v3368
  %v3370 = vsub.s32 %v3369, 2
  %vm3371 = vcmp.gt.s32.totalorder 0, %v3370
  %v3372 = vsel %vm3371, 0, %v3370
  %v3373 = vsub.s32 32, %v3372
  %v3374 = vshll.u32 %v3365, %v3372
  %v3375 = vshrl.u32 %v3357, %v3373
  %v3376 = vor.u32 %v3374, %v3375
  %v3377 = vsub.s32 4294967266, %v3372
  %v3378 = vadd.s32 %v3377, 127
  %v3379 = vshll.u32 %v3378, 23
  %v3380 = vor.u32 4788187, %v3379
  %v3381 = vand.u32 2147483647, %v3380
  %v3383 = vcvt.s32.f32 %v3376
  %v3384 = vmul.f32 %v3383, %v3381
  %v3385 = vxor.u32 %v3384, 2147483648
  %v3386 = vsel %vm3303, %v3385, %v3384
  %v3387 = vsub.s32 4, %v3363
  %v3388 = vsel %vm3303, %v3387, %v3363
  %v3389 = vsel %vm3302, %v177, %v3386
  %v3390 = vsel %vm3302, 0, %v3388
  %v3391 = vcosq.f32.pop %v3389
  %v3392 = vsinq.f32.pop %v3389
  %vm3393 = vweird.f32 %v177
  %v3394 = vand.u32 %v3390, 3
  %vm3395 = vcmp.lt.s32.totalorder %v3394, 2
  %vm3396 = vcmp.eq.s32.totalorder %v3394, 0
  %v3397 = vxor.u32 %v3392, 2147483648
  %v3398 = vsel %vm3396, %v3391, %v3397
  %vm3399 = vcmp.eq.s32.totalorder %v3394, 2
  %v3400 = vxor.u32 %v3391, 2147483648
  %v3401 = vsel %vm3399, %v3400, %v3392
  %v3402 = vsel %vm3395, %v3398, %v3401
  %v3403 = vsel %vm3393, nan, %v3402
  %v3404 = vand.u32 2147483647, %v178
  %vm3405 = vcmp.le.f32.partialorder %v3404, 0.7853982
  %vm3406 = vcmp.lt.s32.totalorder %v178, 0
  %v3407 = vand.u32 %v178, 2139095040
  %v3408 = vshrl.u32 %v3407, 23
  %v3409 = vsub.s32 %v3408, 127
  %v3410 = vand.u32 2147483647, %v178
  %v3411 = vand.u32 %v3410, 8388607
  %v3412 = vor.u32 %v3411, 8388608
  %v3413 = vsub.s32 0, %v3412
  %v3414 = vadd.s32 %v3409, 1
  %vm3415 = vcmp.gt.s32.totalorder %v3414, 0
  %v3416 = vsel %vm3415, %v3414, 0
  %v3417 = vshrl.u32 %v3416, 5
  %v3418 = vand.u32 %v3416, 31
  %v3419 = vsub.s32 32, %v3418
  %v3420 = vshrl.u32 683565275, %v3419
  %v3421 = vshll.u32 683565275, %v3418
  %v3422 = vshrl.u32 2475754826, %v3419
  %v3423 = vor.u32 %v3421, %v3422
  %v3424 = vshll.u32 2475754826, %v3418
  %v3425 = vshrl.u32 2131351028, %v3419
  %v3426 = vor.u32 %v3424, %v3425
  %v3427 = vshll.u32 2131351028, %v3418
  %v3428 = vshrl.u32 2102212464, %v3419
  %v3429 = vor.u32 %v3427, %v3428
  %v3430 = vshll.u32 2102212464, %v3418
  %v3431 = vshrl.u32 920167782, %v3419
  %v3432 = vor.u32 %v3430, %v3431
  %v3433 = vshll.u32 920167782, %v3418
  %v3434 = vshrl.u32 1326507024, %v3419
  %v3435 = vor.u32 %v3433, %v3434
  %vm3436 = vcmp.lt.s32.totalorder %v3417, 1
  %vm3437 = vcmp.lt.s32.totalorder %v3417, 2
  %vm3438 = vcmp.lt.s32.totalorder %v3417, 3
  %vm3439 = vcmp.lt.s32.totalorder %v3417, 4
  %v3440 = vsel %vm3436, %v3420, %v3423
  %v3441 = vsel %vm3439, %v3429, 2102212464
  %v3442 = vsel %vm3438, %v3426, %v3441
  %v3443 = vsel %vm3437, %v3440, %v3442
  %v3444 = vsel %vm3436, %v3423, %v3426
  %v3445 = vsel %vm3439, %v3432, 920167782
  %v3446 = vsel %vm3438, %v3429, %v3445
  %v3447 = vsel %vm3437, %v3444, %v3446
  %v3448 = vsel %vm3436, %v3426, %v3429
  %v3449 = vsel %vm3439, %v3435, 1326507024
  %v3450 = vsel %vm3438, %v3432, %v3449
  %v3451 = vsel %vm3437, %v3448, %v3450
  %v3452 = vshll.u32 %v3412, 8
  %v3453 = vmul.u32.u64.compose %v3452, %v3451
  %v3454 = vextract.low.u32 %v3453
  %v3455 = vextract.high.u32 %v3453
  %v3456 = vmul.u32.u64.compose %v3452, %v3447
  %v3457 = vextract.low.u32 %v3456
  %v3458 = vextract.high.u32 %v3456
  %v3459 = vmul.u32 %v3452, %v3443
  %v3460 = vadd.s32 %v3455, %v3457
  %vm3461 = vc.u32 %v3455, %v3457
  %v3462 = vadd.s32 %v3458, 1
  %v3463 = vsel %vm3461, %v3462, %v3458
  %v3464 = vadd.s32 %v3459, %v3463
  %v3465 = vadd.s32 %v3464, 536870912
  %v3466 = vshrl.u32 %v3465, 30
  %v3467 = vshll.u32 %v3466, 30
  %v3468 = vsub.s32 %v3464, %v3467
  %vm3469 = vcmp.lt.s32.totalorder %v3468, 0
  %v3470 = vsub.s32 0, %v3468
  %v3471 = vsel %vm3469, %v3470, %v3468
  %v3472 = vclz %v3471
  %v3473 = vsub.s32 %v3472, 2
  %vm3474 = vcmp.gt.s32.totalorder 0, %v3473
  %v3475 = vsel %vm3474, 0, %v3473
  %v3476 = vsub.s32 32, %v3475
  %v3477 = vshll.u32 %v3468, %v3475
  %v3478 = vshrl.u32 %v3460, %v3476
  %v3479 = vor.u32 %v3477, %v3478
  %v3480 = vsub.s32 4294967266, %v3475
  %v3481 = vadd.s32 %v3480, 127
  %v3482 = vshll.u32 %v3481, 23
  %v3483 = vor.u32 4788187, %v3482
  %v3484 = vand.u32 2147483647, %v3483
  %v3486 = vcvt.s32.f32 %v3479
  %v3487 = vmul.f32 %v3486, %v3484
  %v3488 = vxor.u32 %v3487, 2147483648
  %v3489 = vsel %vm3406, %v3488, %v3487
  %v3490 = vsub.s32 4, %v3466
  %v3491 = vsel %vm3406, %v3490, %v3466
  %v3492 = vsel %vm3405, %v178, %v3489
  %v3493 = vsel %vm3405, 0, %v3491
  %v3494 = vcosq.f32.pop %v3492
  %v3495 = vsinq.f32.pop %v3492
  %vm3496 = vweird.f32 %v178
  %v3497 = vand.u32 %v3493, 3
  %vm3498 = vcmp.lt.s32.totalorder %v3497, 2
  %vm3499 = vcmp.eq.s32.totalorder %v3497, 0
  %v3500 = vxor.u32 %v3495, 2147483648
  %v3501 = vsel %vm3499, %v3494, %v3500
  %vm3502 = vcmp.eq.s32.totalorder %v3497, 2
  %v3503 = vxor.u32 %v3494, 2147483648
  %v3504 = vsel %vm3502, %v3503, %v3495
  %v3505 = vsel %vm3498, %v3501, %v3504
  %v3506 = vsel %vm3496, nan, %v3505
  %v3507 = vlaneseq
  %v3508 = vand.u32 %v3507, 127
  %vm3509 = vcmp.eq.s32.totalorder %v3508, 0
  %vm3510 = vcmp.eq.s32.totalorder %v3508, 1
  %3512 = vset.pattern.permute.xlu0 0
  %3513 = vperm.xlu0 %3512, %v298
  %v3514 = vpop.permute.xlu0 %3513
  %3517 = vset.pattern.permute.xlu0 0
  %3518 = vperm.xlu0 %3517, %v402
  %v3519 = vpop.permute.xlu0 %3518
  %3522 = vset.pattern.permute.xlu0 0
  %3523 = vperm.xlu0 %3522, %v506
  %v3524 = vpop.permute.xlu0 %3523
  %3527 = vset.pattern.permute.xlu0 0
  %3528 = vperm.xlu0 %3527, %v610
  %v3529 = vpop.permute.xlu0 %3528
  %3532 = vset.pattern.permute.xlu0 0
  %3533 = vperm.xlu0 %3532, %v714
  %v3534 = vpop.permute.xlu0 %3533
  %3537 = vset.pattern.permute.xlu0 0
  %3538 = vperm.xlu0 %3537, %v818
  %v3539 = vpop.permute.xlu0 %3538
  %3542 = vset.pattern.permute.xlu0 0
  %3543 = vperm.xlu0 %3542, %v922
  %v3544 = vpop.permute.xlu0 %3543
  %3547 = vset.pattern.permute.xlu0 0
  %3548 = vperm.xlu0 %3547, %v1026
  %v3549 = vpop.permute.xlu0 %3548
  %3552 = vset.pattern.permute.xlu0 0
  %3553 = vperm.xlu0 %3552, %v1130
  %v3554 = vpop.permute.xlu0 %3553
  %3557 = vset.pattern.permute.xlu0 0
  %3558 = vperm.xlu0 %3557, %v1234
  %v3559 = vpop.permute.xlu0 %3558
  %3562 = vset.pattern.permute.xlu0 0
  %3563 = vperm.xlu0 %3562, %v1338
  %v3564 = vpop.permute.xlu0 %3563
  %3567 = vset.pattern.permute.xlu0 0
  %3568 = vperm.xlu0 %3567, %v1442
  %v3569 = vpop.permute.xlu0 %3568
  %3572 = vset.pattern.permute.xlu0 0
  %3573 = vperm.xlu0 %3572, %v1546
  %v3574 = vpop.permute.xlu0 %3573
  %3577 = vset.pattern.permute.xlu0 0
  %3578 = vperm.xlu0 %3577, %v1650
  %v3579 = vpop.permute.xlu0 %3578
  %3582 = vset.pattern.permute.xlu0 0
  %3583 = vperm.xlu0 %3582, %v1754
  %v3584 = vpop.permute.xlu0 %3583
  %3587 = vset.pattern.permute.xlu0 0
  %3588 = vperm.xlu0 %3587, %v1858
  %v3589 = vpop.permute.xlu0 %3588
  %3592 = vset.pattern.permute.xlu0 0
  %3593 = vperm.xlu0 %3592, %v1961
  %v3594 = vpop.permute.xlu0 %3593
  %3597 = vset.pattern.permute.xlu0 0
  %3598 = vperm.xlu0 %3597, %v2064
  %v3599 = vpop.permute.xlu0 %3598
  %3602 = vset.pattern.permute.xlu0 0
  %3603 = vperm.xlu0 %3602, %v2167
  %v3604 = vpop.permute.xlu0 %3603
  %3607 = vset.pattern.permute.xlu0 0
  %3608 = vperm.xlu0 %3607, %v2270
  %v3609 = vpop.permute.xlu0 %3608
  %3612 = vset.pattern.permute.xlu0 0
  %3613 = vperm.xlu0 %3612, %v2373
  %v3614 = vpop.permute.xlu0 %3613
  %3617 = vset.pattern.permute.xlu0 0
  %3618 = vperm.xlu0 %3617, %v2476
  %v3619 = vpop.permute.xlu0 %3618
  %3622 = vset.pattern.permute.xlu0 0
  %3623 = vperm.xlu0 %3622, %v2579
  %v3624 = vpop.permute.xlu0 %3623
  %3627 = vset.pattern.permute.xlu0 0
  %3628 = vperm.xlu0 %3627, %v2682
  %v3629 = vpop.permute.xlu0 %3628
  %3632 = vset.pattern.permute.xlu0 0
  %3633 = vperm.xlu0 %3632, %v2785
  %v3634 = vpop.permute.xlu0 %3633
  %3637 = vset.pattern.permute.xlu0 0
  %3638 = vperm.xlu0 %3637, %v2888
  %v3639 = vpop.permute.xlu0 %3638
  %3642 = vset.pattern.permute.xlu0 0
  %3643 = vperm.xlu0 %3642, %v2991
  %v3644 = vpop.permute.xlu0 %3643
  %3647 = vset.pattern.permute.xlu0 0
  %3648 = vperm.xlu0 %3647, %v3094
  %v3649 = vpop.permute.xlu0 %3648
  %3652 = vset.pattern.permute.xlu0 0
  %3653 = vperm.xlu0 %3652, %v3197
  %v3654 = vpop.permute.xlu0 %3653
  %3657 = vset.pattern.permute.xlu0 0
  %3658 = vperm.xlu0 %3657, %v3300
  %v3659 = vpop.permute.xlu0 %3658
  %3662 = vset.pattern.permute.xlu0 0
  %3663 = vperm.xlu0 %3662, %v3403
  %v3664 = vpop.permute.xlu0 %3663
  %3667 = vset.pattern.permute.xlu0 0
  %3668 = vperm.xlu0 %3667, %v3506
  %v3669 = vpop.permute.xlu0 %3668
  %v3671 = vsel %vm3510, %v3514, %v3594
  %v3672 = vsel %vm3510, %v3519, %v3599
  %v3673 = vsel %vm3510, %v3524, %v3604
  %v3674 = vsel %vm3510, %v3529, %v3609
  %v3675 = vsel %vm3510, %v3534, %v3614
  %v3676 = vsel %vm3510, %v3539, %v3619
  %v3677 = vsel %vm3510, %v3544, %v3624
  %v3678 = vsel %vm3510, %v3549, %v3629
  %v3679 = vsel %vm3510, %v3554, %v3634
  %v3680 = vsel %vm3510, %v3559, %v3639
  %v3681 = vsel %vm3510, %v3564, %v3644
  %v3682 = vsel %vm3510, %v3569, %v3649
  %v3683 = vsel %vm3510, %v3574, %v3654
  %v3684 = vsel %vm3510, %v3579, %v3659
  %v3685 = vsel %vm3510, %v3584, %v3664
  %v3686 = vsel %vm3510, %v3589, %v3669
  %3688 = vset.pattern.permute.xlu0 0
  %3689 = vperm.xlu0 %3688, %v179
  %v3690 = vpop.permute.xlu0 %3689
  %3693 = vset.pattern.permute.xlu0 0
  %3694 = vperm.xlu0 %3693, %v180
  %v3695 = vpop.permute.xlu0 %3694
  %3698 = vset.pattern.permute.xlu0 0
  %3699 = vperm.xlu0 %3698, %v181
  %v3700 = vpop.permute.xlu0 %3699
  %3703 = vset.pattern.permute.xlu0 0
  %3704 = vperm.xlu0 %3703, %v182
  %v3705 = vpop.permute.xlu0 %3704
  %3708 = vset.pattern.permute.xlu0 0
  %3709 = vperm.xlu0 %3708, %v183
  %v3710 = vpop.permute.xlu0 %3709
  %3713 = vset.pattern.permute.xlu0 0
  %3714 = vperm.xlu0 %3713, %v184
  %v3715 = vpop.permute.xlu0 %3714
  %3718 = vset.pattern.permute.xlu0 0
  %3719 = vperm.xlu0 %3718, %v185
  %v3720 = vpop.permute.xlu0 %3719
  %3723 = vset.pattern.permute.xlu0 0
  %3724 = vperm.xlu0 %3723, %v186
  %v3725 = vpop.permute.xlu0 %3724
  %3728 = vset.pattern.permute.xlu0 0
  %3729 = vperm.xlu0 %3728, %v187
  %v3730 = vpop.permute.xlu0 %3729
  %3733 = vset.pattern.permute.xlu0 0
  %3734 = vperm.xlu0 %3733, %v188
  %v3735 = vpop.permute.xlu0 %3734
  %3738 = vset.pattern.permute.xlu0 0
  %3739 = vperm.xlu0 %3738, %v189
  %v3740 = vpop.permute.xlu0 %3739
  %3743 = vset.pattern.permute.xlu0 0
  %3744 = vperm.xlu0 %3743, %v190
  %v3745 = vpop.permute.xlu0 %3744
  %3748 = vset.pattern.permute.xlu0 0
  %3749 = vperm.xlu0 %3748, %v191
  %v3750 = vpop.permute.xlu0 %3749
  %3753 = vset.pattern.permute.xlu0 0
  %3754 = vperm.xlu0 %3753, %v192
  %v3755 = vpop.permute.xlu0 %3754
  %3758 = vset.pattern.permute.xlu0 0
  %3759 = vperm.xlu0 %3758, %v193
  %v3760 = vpop.permute.xlu0 %3759
  %3763 = vset.pattern.permute.xlu0 0
  %3764 = vperm.xlu0 %3763, %v194
  %v3765 = vpop.permute.xlu0 %3764
  %v3767 = vsel %vm3509, %v3690, %v3671
  %v3768 = vsel %vm3509, %v3695, %v3672
  %v3769 = vsel %vm3509, %v3700, %v3673
  %v3770 = vsel %vm3509, %v3705, %v3674
  %v3771 = vsel %vm3509, %v3710, %v3675
  %v3772 = vsel %vm3509, %v3715, %v3676
  %v3773 = vsel %vm3509, %v3720, %v3677
  %v3774 = vsel %vm3509, %v3725, %v3678
  %v3775 = vsel %vm3509, %v3730, %v3679
  %v3776 = vsel %vm3509, %v3735, %v3680
  %v3777 = vsel %vm3509, %v3740, %v3681
  %v3778 = vsel %vm3509, %v3745, %v3682
  %v3779 = vsel %vm3509, %v3750, %v3683
  %v3780 = vsel %vm3509, %v3755, %v3684
  %v3781 = vsel %vm3509, %v3760, %v3685
  %v3782 = vsel %vm3509, %v3765, %v3686
  %vm3783 = vcmask 23552
  %3784 = vst.msk [vmem:[%s2] sm:$0xff] %vm3783, %v3767
  %3785 = vst.msk [vmem:[%s2 + $0x8] sm:$0xff] %vm3783, %v3768
  %3786 = vst.msk [vmem:[%s2 + $0x10] sm:$0xff] %vm3783, %v3769
  %3787 = vst.msk [vmem:[%s2 + $0x18] sm:$0xff] %vm3783, %v3770
  %3788 = vst.msk [vmem:[%s2 + $0x20] sm:$0xff] %vm3783, %v3771
  %3789 = vst.msk [vmem:[%s2 + $0x28] sm:$0xff] %vm3783, %v3772
  %3790 = vst.msk [vmem:[%s2 + $0x30] sm:$0xff] %vm3783, %v3773
  %3791 = vst.msk [vmem:[%s2 + $0x38] sm:$0xff] %vm3783, %v3774
  %3792 = vst.msk [vmem:[%s2 + $0x40] sm:$0xff] %vm3783, %v3775
  %3793 = vst.msk [vmem:[%s2 + $0x48] sm:$0xff] %vm3783, %v3776
  %3794 = vst.msk [vmem:[%s2 + $0x50] sm:$0xff] %vm3783, %v3777
  %3795 = vst.msk [vmem:[%s2 + $0x58] sm:$0xff] %vm3783, %v3778
  %3796 = vst.msk [vmem:[%s2 + $0x60] sm:$0xff] %vm3783, %v3779
  %3797 = vst.msk [vmem:[%s2 + $0x68] sm:$0xff] %vm3783, %v3780
  %3798 = vst.msk [vmem:[%s2 + $0x70] sm:$0xff] %vm3783, %v3781
  %3799 = vst.msk [vmem:[%s2 + $0x78] sm:$0xff] %vm3783, %v3782
  // Predicated region
  $region10: #{dummy_positional_encoding.1} parent=0 // pred_check
    _
  $region11: #{dummy_positional_encoding.1} parent=0 // pred_check_branch
    %3801 = sbr.rel (0) target = $region13
  $region12: #{dummy_positional_encoding.1} parent=0 // pred_region
    _
  $region13: #{dummy_positional_encoding.1} parent=0 // pred_fallthru
    _
  // Predicated region
  $region14: #{dummy_positional_encoding.1} parent=0 // pred_check
    _
  $region15: #{dummy_positional_encoding.1} parent=0 // pred_check_branch
    %3803 = sbr.rel (0) target = $region17
  $region16: #{dummy_positional_encoding.1} parent=0 // pred_region
    _
  $region17: #{dummy_positional_encoding.1} parent=0 // pred_fallthru
    _

</llo_original>
